<compile_context>
chip_gen: v7x
topology: tpu7x:2x2x1
jax: 0.10.0
libtpu: 0.0.40
codegen_flags: <defaults>
</compile_context>

<pallas_src>
import numpy as np
import jax
import jax.numpy as jnp
from jax.experimental import pallas as pl
from jax.experimental.pallas import tpu as pltpu


# ----------------------- weight-slab layout (shared) ----------------------- #
def _round8(n):
    return -(-n // 8) * 8


def _slab_layout(F, E, W, OUT):
    """Row offsets (8-aligned starts) of every parameter inside one [R, C] slab."""
    entries = [
        ("vecE",   8,      E),      # bs1,bs2,gn1_w,gn1_b,gn1_s,gn2_w,gn2_b,gn2_s
        ("gbias",  4,      3 * E),  # g1_bih, g1_bhh, g2_bih, g2_bhh (lanes [r|z|n])
        ("linb",   1,      OUT),
        ("ws1",    2 * F,  E),      # [self-half ; neighbor-half]
        ("ws2",    2 * E,  E),
        ("g1wih",  2 * E,  3 * E),
        ("g1whh",  E,      3 * E),
        ("g2wih",  E,      3 * E),
        ("g2whh",  E,      3 * E),
        ("lwskip", W * F,  OUT),
        ("lwh12",  2 * E,  OUT),
    ]
    layout, off, ncols = {}, 0, 0
    for name, rows, cols in entries:
        layout[name] = (off, rows, cols)
        off += _round8(rows)
        ncols = max(ncols, cols)
    return layout, off, ncols


# ----------------------------- Pallas kernel ------------------------------ #
def make_dcsage_kernel(N, F, E, W, OUT):
    WN, WF = W * N, W * F
    layout, _, _ = _slab_layout(F, E, W, OUT)

    def rd(ref, name):
        off, rows, cols = layout[name]
        return ref[off:off + rows, 0:cols]          # static, 8-aligned sublane start

    def kernel(xs_ref, sq_ref, w_ref, out_ref):
        f32 = jnp.float32

        def mm(a, b):
            return jnp.dot(a, b, preferred_element_type=f32)

        # ---- packed inputs ------------------------------------------------
        A    = sq_ref[0]                            # [WN, WN] block-diag mean adjacency
        Mavg = sq_ref[1]                            # [WN, WN] block-diag per-day 1/N avg
        xb    = xs_ref[0:WN, 0:F]                   # [WN, F]  day-major node features
        xskip = xs_ref[WN:WN + N, 0:WF]             # [N, WF]  node-major window features

        vecE = rd(w_ref, "vecE")
        bs1, bs2 = vecE[0:1], vecE[1:2]
        gn1w, gn1b, gn1s = vecE[2:3], vecE[3:4], vecE[4:5]
        gn2w, gn2b, gn2s = vecE[5:6], vecE[6:7], vecE[7:8]
        gbias = rd(w_ref, "gbias")
        g1bih, g1bhh, g2bih, g2bhh = gbias[0:1], gbias[1:2], gbias[2:3], gbias[3:4]
        linb   = rd(w_ref, "linb")
        ws1    = rd(w_ref, "ws1")
        ws2    = rd(w_ref, "ws2")
        g1wih  = rd(w_ref, "g1wih")
        g1whh  = rd(w_ref, "g1whh")
        g2wih  = rd(w_ref, "g2wih")
        g2whh  = rd(w_ref, "g2whh")
        lwskip = rd(w_ref, "lwskip")
        lwh12  = rd(w_ref, "lwh12")

        def graph_norm(h, w, b, s):
            # per-day mean and mean-of-squares in ONE block-diagonal MXU matmul
            stats = mm(Mavg, jnp.concatenate([h, h * h], axis=1))      # [WN, 2E]
            mean, meansq = stats[:, 0:E], stats[:, E:2 * E]
            var = meansq - mean * mean * s * (2.0 - s)                  # E[(h-mean*s)^2]
            return (h - mean * s) * jax.lax.rsqrt(var + 1e-5) * w + b

        # ============ batched SAGE phase: all W days at once ===============
        if F == 1:
            # degenerate K=1 matmuls -> VPU broadcast multiplies (1 real matmul)
            s1 = xb * ws1[0:1, :] + mm(A, xb * ws1[1:2, :]) + bs1
        else:
            s1 = mm(xb, ws1[0:F, :]) + mm(A, mm(xb, ws1[F:2 * F, :])) + bs1
        x1 = jnp.maximum(graph_norm(s1, gn1w, gn1b, gn1s), 0.0)         # [WN, E]

        aggr2 = mm(A, x1)
        s2 = mm(jnp.concatenate([x1, aggr2], axis=1), ws2) + bs2
        x2 = jnp.maximum(graph_norm(s2, gn2w, gn2b, gn2s), 0.0)         # [WN, E]

        # GRU1 input projection has no h-dependence -> one batched matmul
        gx1_all = mm(jnp.concatenate([x1, x2], axis=1), g1wih) + g1bih  # [WN, 3E]

        # skip half of the readout: independent of the recurrence
        pred_skip = mm(jnp.maximum(xskip, 0.0), lwskip) + linb          # [N, OUT]

        # ============ serial GRU recurrence: 3 small matmuls / day =========
        def gru_gates(gx, gh, h):
            rz = jax.nn.sigmoid(gx[:, 0:2 * E] + gh[:, 0:2 * E])        # fused r|z
            r, z = rz[:, 0:E], rz[:, E:2 * E]
            n = jnp.tanh(gx[:, 2 * E:3 * E] + r * gh[:, 2 * E:3 * E])
            return (1.0 - z) * n + z * h

        h1 = jnp.zeros((N, E), f32)
        h2 = jnp.zeros((N, E), f32)
        # W is small & static: full unroll with constant slice offsets.
        for d in range(W):
            gx1 = gx1_all[d * N:(d + 1) * N, :]
            gh1 = mm(h1, g1whh) + g1bhh
            h1 = gru_gates(gx1, gh1, h1)
            gx2 = mm(h1, g2wih) + g2bih
            gh2 = mm(h2, g2whh) + g2bhh
            h2 = gru_gates(gx2, gh2, h2)

        # ============ readout, written straight into lane slices ===========
        h12 = jnp.concatenate([h1, h2], axis=1)                          # [N, 2E]
        pred = pred_skip + mm(jnp.maximum(h12, 0.0), lwh12)              # [N, OUT]
        out_ref[:, 0:2 * E] = h12
        out_ref[:, 2 * E:2 * E + OUT] = pred

    return kernel


# --------------------------- wrapper / packing ----------------------------- #
def _pack_gate_weight(w):      # (3, in, E) -> (in, 3E), lanes ordered [r|z|n]
    return jnp.transpose(w, (1, 0, 2)).reshape(w.shape[1], -1)


def _pack_gate_bias(b):        # (3, 1, E) -> (1, 3E)
    return jnp.transpose(b, (1, 0, 2)).reshape(1, -1)


@jax.jit
def dcsage_gru_forward(x_all, adj_mean, params):
    """x_all: [W,N,F]; adj_mean[d,i,j] = w(j->i)/in_deg(i). Returns (pred,h1,h2)."""
    W, N, F = x_all.shape
    E = params["gn1_w"].shape[-1]
    OUT = params["lin_w"].shape[-1]
    WN, WF = W * N, W * F

    # ----- slab 1: block-diag mean adjacency + block-diag per-day averaging ----
    A_blk = jnp.zeros((WN, WN), jnp.float32)
    for d in range(W):
        A_blk = jax.lax.dynamic_update_slice(
            A_blk, adj_mean[d].astype(jnp.float32), (d * N, d * N))
    Mavg = jnp.kron(jnp.eye(W, dtype=jnp.float32),
                    jnp.full((N, N), 1.0 / N, jnp.float32))
    sq = jnp.stack([A_blk, Mavg])                                   # [2, WN, WN]

    # ----- slab 2: day-major features + node-major skip features --------------
    xcols = max(F, WF)
    xs = jnp.zeros((WN + N, xcols), jnp.float32)
    xs = xs.at[0:WN, 0:F].set(x_all.reshape(WN, F).astype(jnp.float32))
    xs = xs.at[WN:WN + N, 0:WF].set(
        jnp.transpose(x_all, (1, 0, 2)).reshape(N, WF).astype(jnp.float32))

    # ----- slab 3: every weight / bias at a fixed 8-aligned sublane offset ----
    layout, nrows, ncols = _slab_layout(F, E, W, OUT)

    def put(slab, name, val):
        off, rows, cols = layout[name]
        return slab.at[off:off + rows, 0:cols].set(val.astype(jnp.float32))

    vecE = jnp.concatenate(
        [params["bs1"], params["bs2"],
         params["gn1_w"], params["gn1_b"], params["gn1_s"],
         params["gn2_w"], params["gn2_b"], params["gn2_s"]], axis=0)       # [8, E]
    gbias = jnp.concatenate(
        [_pack_gate_bias(params["g1_bih"]), _pack_gate_bias(params["g1_bhh"]),
         _pack_gate_bias(params["g2_bih"]), _pack_gate_bias(params["g2_bhh"])],
        axis=0)                                                             # [4, 3E]

    wslab = jnp.zeros((nrows, ncols), jnp.float32)
    wslab = put(wslab, "vecE", vecE)
    wslab = put(wslab, "gbias", gbias)
    wslab = put(wslab, "linb", params["lin_b"])
    wslab = put(wslab, "ws1", params["ws1"])
    wslab = put(wslab, "ws2", params["ws2"])
    wslab = put(wslab, "g1wih", _pack_gate_weight(params["g1_wih"]))
    wslab = put(wslab, "g1whh", _pack_gate_weight(params["g1_whh"]))
    wslab = put(wslab, "g2wih", _pack_gate_weight(params["g2_wih"]))
    wslab = put(wslab, "g2whh", _pack_gate_weight(params["g2_whh"]))
    wslab = put(wslab, "lwskip", params["lin_w"][:WF])
    wslab = put(wslab, "lwh12", params["lin_w"][WF:WF + 2 * E])

    vmem = pl.BlockSpec(memory_space=pltpu.MemorySpace.VMEM)
    out = pl.pallas_call(
        make_dcsage_kernel(N, F, E, W, OUT),
        out_shape=jax.ShapeDtypeStruct((N, 2 * E + OUT), jnp.float32),
        in_specs=[vmem, vmem, vmem],
        out_specs=vmem,
    )(xs, sq, wslab)

    h1 = out[:, 0:E]
    h2 = out[:, E:2 * E]
    pred = out[:, 2 * E:2 * E + OUT]
    return pred, h1, h2


# ------------------------- pure-numpy reference ---------------------------- #
def reference_forward(x_all, adj, dinv, params):
    p = {k: np.asarray(v, dtype=np.float64) for k, v in params.items()}
    x_all = np.asarray(x_all, np.float64)
    adj = np.asarray(adj, np.float64)
    dinv = np.asarray(dinv, np.float64)
    W, N, F = x_all.shape
    E = p["gn1_w"].shape[-1]

    def sigmoid(v):
        return 1.0 / (1.0 + np.exp(-v))

    h1 = np.zeros((N, E))
    h2 = np.zeros((N, E))
    skip = []
    for d in range(W):
        x, A, di = x_all[d], adj[d], dinv[d]
        skip.append(x)

        def sage(h, w, b):
            aggr = (A @ h) * di
            return np.concatenate([h, aggr], axis=1) @ w + b

        def gn(h, w, b, s):
            mean = h.mean(0, keepdims=True)
            out = h - mean * s
            var = (out * out).mean(0, keepdims=True)
            return out / np.sqrt(var + 1e-5) * w + b

        x1 = np.maximum(gn(sage(x, p["ws1"], p["bs1"]),
                           p["gn1_w"], p["gn1_b"], p["gn1_s"]), 0.0)
        x2 = np.maximum(gn(sage(x1, p["ws2"], p["bs2"]),
                           p["gn2_w"], p["gn2_b"], p["gn2_s"]), 0.0)
        xc = np.concatenate([x1, x2], axis=1)

        def gru(inp, h, wih, whh, bih, bhh):
            r = sigmoid(inp @ wih[0] + bih[0] + h @ whh[0] + bhh[0])
            z = sigmoid(inp @ wih[1] + bih[1] + h @ whh[1] + bhh[1])
            n = np.tanh(inp @ wih[2] + bih[2] + r * (h @ whh[2] + bhh[2]))
            return (1.0 - z) * n + z * h

        h1 = gru(xc, h1, p["g1_wih"], p["g1_whh"], p["g1_bih"], p["g1_bhh"])
        h2 = gru(h1, h2, p["g2_wih"], p["g2_whh"], p["g2_bih"], p["g2_bhh"])

    feat = np.concatenate(skip + [h1, h2], axis=1)
    pred = np.maximum(feat, 0.0) @ p["lin_w"] + p["lin_b"]
    return pred, h1, h2


# ---------------------------------- main ----------------------------------- #
if __name__ == "__main__":
    # Small shapes consistent with the module's forward (x is [10, ...]).
    N = 10          # nodes per day graph
    F = 1           # node_features = 1 so skip-concat width == window_size
    E = 10          # emb_dim
    Wd = 8          # window_size (sequence length)
    OUT = 1         # output
    N_EDGES = 30    # edges per day graph

    key = jax.random.PRNGKey(0)
    ks = list(jax.random.split(key, 32))

    def u(k, shape, scale=0.3):
        return jax.random.uniform(k, shape, jnp.float32, -scale, scale)

    params = {
        "ws1": u(ks[0], (2 * F, E)),   "bs1": u(ks[1], (1, E)),
        "ws2": u(ks[2], (2 * E, E)),   "bs2": u(ks[3], (1, E)),
        "gn1_w": u(ks[4], (1, E)) + 1.0, "gn1_b": u(ks[5], (1, E)),
        "gn1_s": u(ks[6], (1, E)) + 1.0,
        "gn2_w": u(ks[7], (1, E)) + 1.0, "gn2_b": u(ks[8], (1, E)),
        "gn2_s": u(ks[9], (1, E)) + 1.0,
        "g1_wih": u(ks[10], (3, 2 * E, E)), "g1_whh": u(ks[11], (3, E, E)),
        "g1_bih": u(ks[12], (3, 1, E)),     "g1_bhh": u(ks[13], (3, 1, E)),
        "g2_wih": u(ks[14], (3, E, E)),     "g2_whh": u(ks[15], (3, E, E)),
        "g2_bih": u(ks[16], (3, 1, E)),     "g2_bhh": u(ks[17], (3, 1, E)),
        "lin_w": u(ks[18], (Wd * F + 2 * E, OUT)), "lin_b": u(ks[19], (1, OUT)),
    }

    # Per-day graphs: node features + random weighted edge lists.
    x_all = jax.random.normal(ks[20], (Wd, N, F), jnp.float32)
    src = np.asarray(jax.random.randint(ks[21], (Wd, N_EDGES), 0, N))
    dst = np.asarray(jax.random.randint(ks[22], (Wd, N_EDGES), 0, N))
    ew = np.asarray(jax.random.uniform(ks[23], (Wd, N_EDGES), jnp.float32, 0.0, 1.0))

    # Glue: densify edge_index / edge_attr into adjacency; fold PyG "mean"
    # aggregation (1 / in-degree) into the adjacency at data-prep time.
    adj = np.zeros((Wd, N, N), np.float32)
    deg = np.zeros((Wd, N), np.float32)
    for d in range(Wd):
        np.add.at(adj[d], (dst[d], src[d]), ew[d])
        np.add.at(deg[d], dst[d], 1.0)
    dinv = np.where(deg > 0, 1.0 / np.maximum(deg, 1.0), 0.0)[..., None]
    adj_mean = jnp.asarray(adj * dinv)

    pred, h1, h2 = jax.block_until_ready(
        dcsage_gru_forward(x_all, adj_mean, params))

    pred_ref, h1_ref, h2_ref = reference_forward(np.asarray(x_all), adj, dinv,
                                                 params)
    assert np.allclose(np.asarray(pred), pred_ref, atol=2e-3, rtol=2e-3)
    assert np.allclose(np.asarray(h1), h1_ref, atol=2e-3, rtol=2e-3)
    assert np.allclose(np.asarray(h2), h2_ref, atol=2e-3, rtol=2e-3)

    print("KERNEL_OK")
</pallas_src>

<mosaic_0001>
module attributes {stable_mosaic.version = 11 : i64} {
  func.func @kernel(%arg0: memref<90x8xf32, #tpu.memory_space<vmem>>, %arg1: memref<2x80x80xf32, #tpu.memory_space<vmem>>, %arg2: memref<160x30xf32, #tpu.memory_space<vmem>>, %arg3: memref<10x21xf32, #tpu.memory_space<vmem>>) attributes {dimension_semantics = [], scalar_prefetch = 0 : i64, scratch_operands = 0 : i64, tpu.core_type = #tpu.core_type<tc>} {
    %c0 = arith.constant 0 : index
    %c0_0 = arith.constant 0 : index
    %c0_1 = arith.constant 0 : index
    %0 = vector.load %arg1[%c0, %c0_0, %c0_1] : memref<2x80x80xf32, #tpu.memory_space<vmem>>, vector<1x80x80xf32>
    %1 = vector.shape_cast %0 : vector<1x80x80xf32> to vector<80x80xf32>
    %c1 = arith.constant 1 : index
    %c0_2 = arith.constant 0 : index
    %c0_3 = arith.constant 0 : index
    %2 = vector.load %arg1[%c1, %c0_2, %c0_3] : memref<2x80x80xf32, #tpu.memory_space<vmem>>, vector<1x80x80xf32>
    %3 = vector.shape_cast %2 : vector<1x80x80xf32> to vector<80x80xf32>
    %c0_4 = arith.constant 0 : index
    %c0_5 = arith.constant 0 : index
    %4 = vector.load %arg0[%c0_4, %c0_5] : memref<90x8xf32, #tpu.memory_space<vmem>>, vector<80x1xf32>
    %c80 = arith.constant 80 : index
    %c0_6 = arith.constant 0 : index
    %5 = vector.load %arg0[%c80, %c0_6] : memref<90x8xf32, #tpu.memory_space<vmem>>, vector<10x8xf32>
    %c0_7 = arith.constant 0 : index
    %c0_8 = arith.constant 0 : index
    %6 = vector.load %arg2[%c0_7, %c0_8] : memref<160x30xf32, #tpu.memory_space<vmem>>, vector<8x10xf32>
    %7 = vector.extract_strided_slice %6 {offsets = [0, 0], sizes = [1, 10], strides = [1, 1]} : vector<8x10xf32> to vector<1x10xf32>
    %8 = vector.extract_strided_slice %6 {offsets = [1, 0], sizes = [1, 10], strides = [1, 1]} : vector<8x10xf32> to vector<1x10xf32>
    %9 = vector.extract_strided_slice %6 {offsets = [2, 0], sizes = [1, 10], strides = [1, 1]} : vector<8x10xf32> to vector<1x10xf32>
    %10 = vector.extract_strided_slice %6 {offsets = [3, 0], sizes = [1, 10], strides = [1, 1]} : vector<8x10xf32> to vector<1x10xf32>
    %11 = vector.extract_strided_slice %6 {offsets = [4, 0], sizes = [1, 10], strides = [1, 1]} : vector<8x10xf32> to vector<1x10xf32>
    %12 = vector.extract_strided_slice %6 {offsets = [5, 0], sizes = [1, 10], strides = [1, 1]} : vector<8x10xf32> to vector<1x10xf32>
    %13 = vector.extract_strided_slice %6 {offsets = [6, 0], sizes = [1, 10], strides = [1, 1]} : vector<8x10xf32> to vector<1x10xf32>
    %14 = vector.extract_strided_slice %6 {offsets = [7, 0], sizes = [1, 10], strides = [1, 1]} : vector<8x10xf32> to vector<1x10xf32>
    %c8 = arith.constant 8 : index
    %c0_9 = arith.constant 0 : index
    %15 = vector.load %arg2[%c8, %c0_9] : memref<160x30xf32, #tpu.memory_space<vmem>>, vector<4x30xf32>
    %16 = vector.extract_strided_slice %15 {offsets = [0, 0], sizes = [1, 30], strides = [1, 1]} : vector<4x30xf32> to vector<1x30xf32>
    %17 = vector.extract_strided_slice %15 {offsets = [1, 0], sizes = [1, 30], strides = [1, 1]} : vector<4x30xf32> to vector<1x30xf32>
    %18 = vector.extract_strided_slice %15 {offsets = [2, 0], sizes = [1, 30], strides = [1, 1]} : vector<4x30xf32> to vector<1x30xf32>
    %19 = vector.extract_strided_slice %15 {offsets = [3, 0], sizes = [1, 30], strides = [1, 1]} : vector<4x30xf32> to vector<1x30xf32>
    %c16 = arith.constant 16 : index
    %c0_10 = arith.constant 0 : index
    %20 = vector.load %arg2[%c16, %c0_10] : memref<160x30xf32, #tpu.memory_space<vmem>>, vector<1x1xf32>
    %c24 = arith.constant 24 : index
    %c0_11 = arith.constant 0 : index
    %21 = vector.load %arg2[%c24, %c0_11] : memref<160x30xf32, #tpu.memory_space<vmem>>, vector<2x10xf32>
    %c32 = arith.constant 32 : index
    %c0_12 = arith.constant 0 : index
    %22 = vector.load %arg2[%c32, %c0_12] : memref<160x30xf32, #tpu.memory_space<vmem>>, vector<20x10xf32>
    %c56 = arith.constant 56 : index
    %c0_13 = arith.constant 0 : index
    %23 = vector.load %arg2[%c56, %c0_13] : memref<160x30xf32, #tpu.memory_space<vmem>>, vector<20x30xf32>
    %c80_14 = arith.constant 80 : index
    %c0_15 = arith.constant 0 : index
    %24 = vector.load %arg2[%c80_14, %c0_15] : memref<160x30xf32, #tpu.memory_space<vmem>>, vector<10x30xf32>
    %c96 = arith.constant 96 : index
    %c0_16 = arith.constant 0 : index
    %25 = vector.load %arg2[%c96, %c0_16] : memref<160x30xf32, #tpu.memory_space<vmem>>, vector<10x30xf32>
    %c112 = arith.constant 112 : index
    %c0_17 = arith.constant 0 : index
    %26 = vector.load %arg2[%c112, %c0_17] : memref<160x30xf32, #tpu.memory_space<vmem>>, vector<10x30xf32>
    %c128 = arith.constant 128 : index
    %c0_18 = arith.constant 0 : index
    %27 = vector.load %arg2[%c128, %c0_18] : memref<160x30xf32, #tpu.memory_space<vmem>>, vector<8x1xf32>
    %c136 = arith.constant 136 : index
    %c0_19 = arith.constant 0 : index
    %28 = vector.load %arg2[%c136, %c0_19] : memref<160x30xf32, #tpu.memory_space<vmem>>, vector<20x1xf32>
    %29 = vector.extract_strided_slice %21 {offsets = [0, 0], sizes = [1, 10], strides = [1, 1]} : vector<2x10xf32> to vector<1x10xf32>
    %30 = vector.broadcast %4 : vector<80x1xf32> to vector<80x10xf32>
    %31 = vector.broadcast %29 : vector<1x10xf32> to vector<80x10xf32>
    %32 = arith.mulf %30, %31 : vector<80x10xf32>
    %33 = vector.extract_strided_slice %21 {offsets = [1, 0], sizes = [1, 10], strides = [1, 1]} : vector<2x10xf32> to vector<1x10xf32>
    %34 = vector.broadcast %4 : vector<80x1xf32> to vector<80x10xf32>
    %35 = vector.broadcast %33 : vector<1x10xf32> to vector<80x10xf32>
    %36 = arith.mulf %34, %35 : vector<80x10xf32>
    %cst = arith.constant dense<0.000000e+00> : vector<80x10xf32>
    %37 = tpu.matmul %1, %36, %cst {dimension_numbers = #tpu.dot_dimension_numbers<[1], [0], [0], [1], [0, 0, 1, 1], [], []>} : vector<80x80xf32>, vector<80x10xf32>, vector<80x10xf32> -> vector<80x10xf32>
    %38 = arith.addf %32, %37 : vector<80x10xf32>
    %39 = vector.broadcast %7 : vector<1x10xf32> to vector<80x10xf32>
    %40 = arith.addf %38, %39 : vector<80x10xf32>
    %41 = arith.mulf %40, %40 : vector<80x10xf32>
    %42 = tpu.concatenate %40, %41 in 1 : vector<80x10xf32>, vector<80x10xf32> -> vector<80x20xf32>
    %cst_20 = arith.constant dense<0.000000e+00> : vector<80x20xf32>
    %43 = tpu.matmul %3, %42, %cst_20 {dimension_numbers = #tpu.dot_dimension_numbers<[1], [0], [0], [1], [0, 0, 1, 1], [], []>} : vector<80x80xf32>, vector<80x20xf32>, vector<80x20xf32> -> vector<80x20xf32>
    %44 = vector.extract_strided_slice %43 {offsets = [0, 0], sizes = [80, 10], strides = [1, 1]} : vector<80x20xf32> to vector<80x10xf32>
    %45 = vector.extract_strided_slice %43 {offsets = [0, 10], sizes = [80, 10], strides = [1, 1]} : vector<80x20xf32> to vector<80x10xf32>
    %46 = arith.mulf %44, %44 : vector<80x10xf32>
    %47 = vector.broadcast %11 : vector<1x10xf32> to vector<80x10xf32>
    %48 = arith.mulf %46, %47 : vector<80x10xf32>
    %cst_21 = arith.constant 2.000000e+00 : f32
    %49 = vector.broadcast %cst_21 : f32 to vector<1x10xf32>
    %50 = arith.subf %49, %11 : vector<1x10xf32>
    %51 = vector.broadcast %50 : vector<1x10xf32> to vector<80x10xf32>
    %52 = arith.mulf %48, %51 : vector<80x10xf32>
    %53 = arith.subf %45, %52 : vector<80x10xf32>
    %54 = vector.broadcast %11 : vector<1x10xf32> to vector<80x10xf32>
    %55 = arith.mulf %44, %54 : vector<80x10xf32>
    %56 = arith.subf %40, %55 : vector<80x10xf32>
    %cst_22 = arith.constant 9.99999974E-6 : f32
    %57 = vector.broadcast %cst_22 : f32 to vector<80x10xf32>
    %58 = arith.addf %53, %57 : vector<80x10xf32>
    %59 = math.rsqrt %58 : vector<80x10xf32>
    %60 = arith.mulf %56, %59 : vector<80x10xf32>
    %61 = vector.broadcast %9 : vector<1x10xf32> to vector<80x10xf32>
    %62 = arith.mulf %60, %61 : vector<80x10xf32>
    %63 = vector.broadcast %10 : vector<1x10xf32> to vector<80x10xf32>
    %64 = arith.addf %62, %63 : vector<80x10xf32>
    %cst_23 = arith.constant 0.000000e+00 : f32
    %65 = vector.broadcast %cst_23 : f32 to vector<80x10xf32>
    %66 = arith.maximumf %64, %65 : vector<80x10xf32>
    %cst_24 = arith.constant dense<0.000000e+00> : vector<80x10xf32>
    %67 = tpu.matmul %1, %66, %cst_24 {dimension_numbers = #tpu.dot_dimension_numbers<[1], [0], [0], [1], [0, 0, 1, 1], [], []>} : vector<80x80xf32>, vector<80x10xf32>, vector<80x10xf32> -> vector<80x10xf32>
    %68 = tpu.concatenate %66, %67 in 1 : vector<80x10xf32>, vector<80x10xf32> -> vector<80x20xf32>
    %cst_25 = arith.constant dense<0.000000e+00> : vector<80x10xf32>
    %69 = tpu.matmul %68, %22, %cst_25 {dimension_numbers = #tpu.dot_dimension_numbers<[1], [0], [0], [1], [0, 0, 1, 1], [], []>} : vector<80x20xf32>, vector<20x10xf32>, vector<80x10xf32> -> vector<80x10xf32>
    %70 = vector.broadcast %8 : vector<1x10xf32> to vector<80x10xf32>
    %71 = arith.addf %69, %70 : vector<80x10xf32>
    %72 = arith.mulf %71, %71 : vector<80x10xf32>
    %73 = tpu.concatenate %71, %72 in 1 : vector<80x10xf32>, vector<80x10xf32> -> vector<80x20xf32>
    %cst_26 = arith.constant dense<0.000000e+00> : vector<80x20xf32>
    %74 = tpu.matmul %3, %73, %cst_26 {dimension_numbers = #tpu.dot_dimension_numbers<[1], [0], [0], [1], [0, 0, 1, 1], [], []>} : vector<80x80xf32>, vector<80x20xf32>, vector<80x20xf32> -> vector<80x20xf32>
    %75 = vector.extract_strided_slice %74 {offsets = [0, 0], sizes = [80, 10], strides = [1, 1]} : vector<80x20xf32> to vector<80x10xf32>
    %76 = vector.extract_strided_slice %74 {offsets = [0, 10], sizes = [80, 10], strides = [1, 1]} : vector<80x20xf32> to vector<80x10xf32>
    %77 = arith.mulf %75, %75 : vector<80x10xf32>
    %78 = vector.broadcast %14 : vector<1x10xf32> to vector<80x10xf32>
    %79 = arith.mulf %77, %78 : vector<80x10xf32>
    %cst_27 = arith.constant 2.000000e+00 : f32
    %80 = vector.broadcast %cst_27 : f32 to vector<1x10xf32>
    %81 = arith.subf %80, %14 : vector<1x10xf32>
    %82 = vector.broadcast %81 : vector<1x10xf32> to vector<80x10xf32>
    %83 = arith.mulf %79, %82 : vector<80x10xf32>
    %84 = arith.subf %76, %83 : vector<80x10xf32>
    %85 = vector.broadcast %14 : vector<1x10xf32> to vector<80x10xf32>
    %86 = arith.mulf %75, %85 : vector<80x10xf32>
    %87 = arith.subf %71, %86 : vector<80x10xf32>
    %cst_28 = arith.constant 9.99999974E-6 : f32
    %88 = vector.broadcast %cst_28 : f32 to vector<80x10xf32>
    %89 = arith.addf %84, %88 : vector<80x10xf32>
    %90 = math.rsqrt %89 : vector<80x10xf32>
    %91 = arith.mulf %87, %90 : vector<80x10xf32>
    %92 = vector.broadcast %12 : vector<1x10xf32> to vector<80x10xf32>
    %93 = arith.mulf %91, %92 : vector<80x10xf32>
    %94 = vector.broadcast %13 : vector<1x10xf32> to vector<80x10xf32>
    %95 = arith.addf %93, %94 : vector<80x10xf32>
    %cst_29 = arith.constant 0.000000e+00 : f32
    %96 = vector.broadcast %cst_29 : f32 to vector<80x10xf32>
    %97 = arith.maximumf %95, %96 : vector<80x10xf32>
    %98 = tpu.concatenate %66, %97 in 1 : vector<80x10xf32>, vector<80x10xf32> -> vector<80x20xf32>
    %cst_30 = arith.constant dense<0.000000e+00> : vector<80x30xf32>
    %99 = tpu.matmul %98, %23, %cst_30 {dimension_numbers = #tpu.dot_dimension_numbers<[1], [0], [0], [1], [0, 0, 1, 1], [], []>} : vector<80x20xf32>, vector<20x30xf32>, vector<80x30xf32> -> vector<80x30xf32>
    %100 = vector.broadcast %16 : vector<1x30xf32> to vector<80x30xf32>
    %101 = arith.addf %99, %100 : vector<80x30xf32>
    %cst_31 = arith.constant 0.000000e+00 : f32
    %102 = vector.broadcast %cst_31 : f32 to vector<10x8xf32>
    %103 = arith.maximumf %5, %102 : vector<10x8xf32>
    %cst_32 = arith.constant dense<0.000000e+00> : vector<10x1xf32>
    %104 = tpu.matmul %103, %27, %cst_32 {dimension_numbers = #tpu.dot_dimension_numbers<[1], [0], [0], [1], [0, 0, 1, 1], [], []>} : vector<10x8xf32>, vector<8x1xf32>, vector<10x1xf32> -> vector<10x1xf32>
    %105 = vector.broadcast %20 : vector<1x1xf32> to vector<10x1xf32>
    %106 = arith.addf %104, %105 : vector<10x1xf32>
    %cst_33 = arith.constant 0.000000e+00 : f32
    %107 = vector.broadcast %cst_33 : f32 to vector<10x10xf32>
    %cst_34 = arith.constant 0.000000e+00 : f32
    %108 = vector.broadcast %cst_34 : f32 to vector<10x10xf32>
    %109 = vector.extract_strided_slice %101 {offsets = [0, 0], sizes = [10, 30], strides = [1, 1]} : vector<80x30xf32> to vector<10x30xf32>
    %cst_35 = arith.constant dense<0.000000e+00> : vector<10x30xf32>
    %110 = tpu.matmul %107, %24, %cst_35 {dimension_numbers = #tpu.dot_dimension_numbers<[1], [0], [0], [1], [0, 0, 1, 1], [], []>} : vector<10x10xf32>, vector<10x30xf32>, vector<10x30xf32> -> vector<10x30xf32>
    %111 = vector.broadcast %17 : vector<1x30xf32> to vector<10x30xf32>
    %112 = arith.addf %110, %111 : vector<10x30xf32>
    %113 = vector.extract_strided_slice %109 {offsets = [0, 0], sizes = [10, 20], strides = [1, 1]} : vector<10x30xf32> to vector<10x20xf32>
    %114 = vector.extract_strided_slice %112 {offsets = [0, 0], sizes = [10, 20], strides = [1, 1]} : vector<10x30xf32> to vector<10x20xf32>
    %115 = arith.addf %113, %114 : vector<10x20xf32>
    %116 = arith.negf %115 : vector<10x20xf32>
    %117 = math.exp %116 : vector<10x20xf32>
    %cst_36 = arith.constant 1.000000e+00 : f32
    %118 = vector.broadcast %cst_36 : f32 to vector<10x20xf32>
    %119 = arith.addf %118, %117 : vector<10x20xf32>
    %120 = arith.divf %118, %119 : vector<10x20xf32>
    %121 = vector.extract_strided_slice %120 {offsets = [0, 0], sizes = [10, 10], strides = [1, 1]} : vector<10x20xf32> to vector<10x10xf32>
    %122 = vector.extract_strided_slice %120 {offsets = [0, 10], sizes = [10, 10], strides = [1, 1]} : vector<10x20xf32> to vector<10x10xf32>
    %123 = vector.extract_strided_slice %109 {offsets = [0, 20], sizes = [10, 10], strides = [1, 1]} : vector<10x30xf32> to vector<10x10xf32>
    %124 = vector.extract_strided_slice %112 {offsets = [0, 20], sizes = [10, 10], strides = [1, 1]} : vector<10x30xf32> to vector<10x10xf32>
    %125 = arith.mulf %121, %124 : vector<10x10xf32>
    %126 = arith.addf %123, %125 : vector<10x10xf32>
    %127 = math.tanh %126 : vector<10x10xf32>
    %cst_37 = arith.constant 1.000000e+00 : f32
    %128 = vector.broadcast %cst_37 : f32 to vector<10x10xf32>
    %129 = arith.subf %128, %122 : vector<10x10xf32>
    %130 = arith.mulf %129, %127 : vector<10x10xf32>
    %131 = arith.mulf %122, %107 : vector<10x10xf32>
    %132 = arith.addf %130, %131 : vector<10x10xf32>
    %cst_38 = arith.constant dense<0.000000e+00> : vector<10x30xf32>
    %133 = tpu.matmul %132, %25, %cst_38 {dimension_numbers = #tpu.dot_dimension_numbers<[1], [0], [0], [1], [0, 0, 1, 1], [], []>} : vector<10x10xf32>, vector<10x30xf32>, vector<10x30xf32> -> vector<10x30xf32>
    %134 = vector.broadcast %18 : vector<1x30xf32> to vector<10x30xf32>
    %135 = arith.addf %133, %134 : vector<10x30xf32>
    %cst_39 = arith.constant dense<0.000000e+00> : vector<10x30xf32>
    %136 = tpu.matmul %108, %26, %cst_39 {dimension_numbers = #tpu.dot_dimension_numbers<[1], [0], [0], [1], [0, 0, 1, 1], [], []>} : vector<10x10xf32>, vector<10x30xf32>, vector<10x30xf32> -> vector<10x30xf32>
    %137 = vector.broadcast %19 : vector<1x30xf32> to vector<10x30xf32>
    %138 = arith.addf %136, %137 : vector<10x30xf32>
    %139 = vector.extract_strided_slice %135 {offsets = [0, 0], sizes = [10, 20], strides = [1, 1]} : vector<10x30xf32> to vector<10x20xf32>
    %140 = vector.extract_strided_slice %138 {offsets = [0, 0], sizes = [10, 20], strides = [1, 1]} : vector<10x30xf32> to vector<10x20xf32>
    %141 = arith.addf %139, %140 : vector<10x20xf32>
    %142 = arith.negf %141 : vector<10x20xf32>
    %143 = math.exp %142 : vector<10x20xf32>
    %cst_40 = arith.constant 1.000000e+00 : f32
    %144 = vector.broadcast %cst_40 : f32 to vector<10x20xf32>
    %145 = arith.addf %144, %143 : vector<10x20xf32>
    %146 = arith.divf %144, %145 : vector<10x20xf32>
    %147 = vector.extract_strided_slice %146 {offsets = [0, 0], sizes = [10, 10], strides = [1, 1]} : vector<10x20xf32> to vector<10x10xf32>
    %148 = vector.extract_strided_slice %146 {offsets = [0, 10], sizes = [10, 10], strides = [1, 1]} : vector<10x20xf32> to vector<10x10xf32>
    %149 = vector.extract_strided_slice %135 {offsets = [0, 20], sizes = [10, 10], strides = [1, 1]} : vector<10x30xf32> to vector<10x10xf32>
    %150 = vector.extract_strided_slice %138 {offsets = [0, 20], sizes = [10, 10], strides = [1, 1]} : vector<10x30xf32> to vector<10x10xf32>
    %151 = arith.mulf %147, %150 : vector<10x10xf32>
    %152 = arith.addf %149, %151 : vector<10x10xf32>
    %153 = math.tanh %152 : vector<10x10xf32>
    %cst_41 = arith.constant 1.000000e+00 : f32
    %154 = vector.broadcast %cst_41 : f32 to vector<10x10xf32>
    %155 = arith.subf %154, %148 : vector<10x10xf32>
    %156 = arith.mulf %155, %153 : vector<10x10xf32>
    %157 = arith.mulf %148, %108 : vector<10x10xf32>
    %158 = arith.addf %156, %157 : vector<10x10xf32>
    %159 = vector.extract_strided_slice %101 {offsets = [10, 0], sizes = [10, 30], strides = [1, 1]} : vector<80x30xf32> to vector<10x30xf32>
    %cst_42 = arith.constant dense<0.000000e+00> : vector<10x30xf32>
    %160 = tpu.matmul %132, %24, %cst_42 {dimension_numbers = #tpu.dot_dimension_numbers<[1], [0], [0], [1], [0, 0, 1, 1], [], []>} : vector<10x10xf32>, vector<10x30xf32>, vector<10x30xf32> -> vector<10x30xf32>
    %161 = vector.broadcast %17 : vector<1x30xf32> to vector<10x30xf32>
    %162 = arith.addf %160, %161 : vector<10x30xf32>
    %163 = vector.extract_strided_slice %159 {offsets = [0, 0], sizes = [10, 20], strides = [1, 1]} : vector<10x30xf32> to vector<10x20xf32>
    %164 = vector.extract_strided_slice %162 {offsets = [0, 0], sizes = [10, 20], strides = [1, 1]} : vector<10x30xf32> to vector<10x20xf32>
    %165 = arith.addf %163, %164 : vector<10x20xf32>
    %166 = arith.negf %165 : vector<10x20xf32>
    %167 = math.exp %166 : vector<10x20xf32>
    %cst_43 = arith.constant 1.000000e+00 : f32
    %168 = vector.broadcast %cst_43 : f32 to vector<10x20xf32>
    %169 = arith.addf %168, %167 : vector<10x20xf32>
    %170 = arith.divf %168, %169 : vector<10x20xf32>
    %171 = vector.extract_strided_slice %170 {offsets = [0, 0], sizes = [10, 10], strides = [1, 1]} : vector<10x20xf32> to vector<10x10xf32>
    %172 = vector.extract_strided_slice %170 {offsets = [0, 10], sizes = [10, 10], strides = [1, 1]} : vector<10x20xf32> to vector<10x10xf32>
    %173 = vector.extract_strided_slice %159 {offsets = [0, 20], sizes = [10, 10], strides = [1, 1]} : vector<10x30xf32> to vector<10x10xf32>
    %174 = vector.extract_strided_slice %162 {offsets = [0, 20], sizes = [10, 10], strides = [1, 1]} : vector<10x30xf32> to vector<10x10xf32>
    %175 = arith.mulf %171, %174 : vector<10x10xf32>
    %176 = arith.addf %173, %175 : vector<10x10xf32>
    %177 = math.tanh %176 : vector<10x10xf32>
    %cst_44 = arith.constant 1.000000e+00 : f32
    %178 = vector.broadcast %cst_44 : f32 to vector<10x10xf32>
    %179 = arith.subf %178, %172 : vector<10x10xf32>
    %180 = arith.mulf %179, %177 : vector<10x10xf32>
    %181 = arith.mulf %172, %132 : vector<10x10xf32>
    %182 = arith.addf %180, %181 : vector<10x10xf32>
    %cst_45 = arith.constant dense<0.000000e+00> : vector<10x30xf32>
    %183 = tpu.matmul %182, %25, %cst_45 {dimension_numbers = #tpu.dot_dimension_numbers<[1], [0], [0], [1], [0, 0, 1, 1], [], []>} : vector<10x10xf32>, vector<10x30xf32>, vector<10x30xf32> -> vector<10x30xf32>
    %184 = vector.broadcast %18 : vector<1x30xf32> to vector<10x30xf32>
    %185 = arith.addf %183, %184 : vector<10x30xf32>
    %cst_46 = arith.constant dense<0.000000e+00> : vector<10x30xf32>
    %186 = tpu.matmul %158, %26, %cst_46 {dimension_numbers = #tpu.dot_dimension_numbers<[1], [0], [0], [1], [0, 0, 1, 1], [], []>} : vector<10x10xf32>, vector<10x30xf32>, vector<10x30xf32> -> vector<10x30xf32>
    %187 = vector.broadcast %19 : vector<1x30xf32> to vector<10x30xf32>
    %188 = arith.addf %186, %187 : vector<10x30xf32>
    %189 = vector.extract_strided_slice %185 {offsets = [0, 0], sizes = [10, 20], strides = [1, 1]} : vector<10x30xf32> to vector<10x20xf32>
    %190 = vector.extract_strided_slice %188 {offsets = [0, 0], sizes = [10, 20], strides = [1, 1]} : vector<10x30xf32> to vector<10x20xf32>
    %191 = arith.addf %189, %190 : vector<10x20xf32>
    %192 = arith.negf %191 : vector<10x20xf32>
    %193 = math.exp %192 : vector<10x20xf32>
    %cst_47 = arith.constant 1.000000e+00 : f32
    %194 = vector.broadcast %cst_47 : f32 to vector<10x20xf32>
    %195 = arith.addf %194, %193 : vector<10x20xf32>
    %196 = arith.divf %194, %195 : vector<10x20xf32>
    %197 = vector.extract_strided_slice %196 {offsets = [0, 0], sizes = [10, 10], strides = [1, 1]} : vector<10x20xf32> to vector<10x10xf32>
    %198 = vector.extract_strided_slice %196 {offsets = [0, 10], sizes = [10, 10], strides = [1, 1]} : vector<10x20xf32> to vector<10x10xf32>
    %199 = vector.extract_strided_slice %185 {offsets = [0, 20], sizes = [10, 10], strides = [1, 1]} : vector<10x30xf32> to vector<10x10xf32>
    %200 = vector.extract_strided_slice %188 {offsets = [0, 20], sizes = [10, 10], strides = [1, 1]} : vector<10x30xf32> to vector<10x10xf32>
    %201 = arith.mulf %197, %200 : vector<10x10xf32>
    %202 = arith.addf %199, %201 : vector<10x10xf32>
    %203 = math.tanh %202 : vector<10x10xf32>
    %cst_48 = arith.constant 1.000000e+00 : f32
    %204 = vector.broadcast %cst_48 : f32 to vector<10x10xf32>
    %205 = arith.subf %204, %198 : vector<10x10xf32>
    %206 = arith.mulf %205, %203 : vector<10x10xf32>
    %207 = arith.mulf %198, %158 : vector<10x10xf32>
    %208 = arith.addf %206, %207 : vector<10x10xf32>
    %209 = vector.extract_strided_slice %101 {offsets = [20, 0], sizes = [10, 30], strides = [1, 1]} : vector<80x30xf32> to vector<10x30xf32>
    %cst_49 = arith.constant dense<0.000000e+00> : vector<10x30xf32>
    %210 = tpu.matmul %182, %24, %cst_49 {dimension_numbers = #tpu.dot_dimension_numbers<[1], [0], [0], [1], [0, 0, 1, 1], [], []>} : vector<10x10xf32>, vector<10x30xf32>, vector<10x30xf32> -> vector<10x30xf32>
    %211 = vector.broadcast %17 : vector<1x30xf32> to vector<10x30xf32>
    %212 = arith.addf %210, %211 : vector<10x30xf32>
    %213 = vector.extract_strided_slice %209 {offsets = [0, 0], sizes = [10, 20], strides = [1, 1]} : vector<10x30xf32> to vector<10x20xf32>
    %214 = vector.extract_strided_slice %212 {offsets = [0, 0], sizes = [10, 20], strides = [1, 1]} : vector<10x30xf32> to vector<10x20xf32>
    %215 = arith.addf %213, %214 : vector<10x20xf32>
    %216 = arith.negf %215 : vector<10x20xf32>
    %217 = math.exp %216 : vector<10x20xf32>
    %cst_50 = arith.constant 1.000000e+00 : f32
    %218 = vector.broadcast %cst_50 : f32 to vector<10x20xf32>
    %219 = arith.addf %218, %217 : vector<10x20xf32>
    %220 = arith.divf %218, %219 : vector<10x20xf32>
    %221 = vector.extract_strided_slice %220 {offsets = [0, 0], sizes = [10, 10], strides = [1, 1]} : vector<10x20xf32> to vector<10x10xf32>
    %222 = vector.extract_strided_slice %220 {offsets = [0, 10], sizes = [10, 10], strides = [1, 1]} : vector<10x20xf32> to vector<10x10xf32>
    %223 = vector.extract_strided_slice %209 {offsets = [0, 20], sizes = [10, 10], strides = [1, 1]} : vector<10x30xf32> to vector<10x10xf32>
    %224 = vector.extract_strided_slice %212 {offsets = [0, 20], sizes = [10, 10], strides = [1, 1]} : vector<10x30xf32> to vector<10x10xf32>
    %225 = arith.mulf %221, %224 : vector<10x10xf32>
    %226 = arith.addf %223, %225 : vector<10x10xf32>
    %227 = math.tanh %226 : vector<10x10xf32>
    %cst_51 = arith.constant 1.000000e+00 : f32
    %228 = vector.broadcast %cst_51 : f32 to vector<10x10xf32>
    %229 = arith.subf %228, %222 : vector<10x10xf32>
    %230 = arith.mulf %229, %227 : vector<10x10xf32>
    %231 = arith.mulf %222, %182 : vector<10x10xf32>
    %232 = arith.addf %230, %231 : vector<10x10xf32>
    %cst_52 = arith.constant dense<0.000000e+00> : vector<10x30xf32>
    %233 = tpu.matmul %232, %25, %cst_52 {dimension_numbers = #tpu.dot_dimension_numbers<[1], [0], [0], [1], [0, 0, 1, 1], [], []>} : vector<10x10xf32>, vector<10x30xf32>, vector<10x30xf32> -> vector<10x30xf32>
    %234 = vector.broadcast %18 : vector<1x30xf32> to vector<10x30xf32>
    %235 = arith.addf %233, %234 : vector<10x30xf32>
    %cst_53 = arith.constant dense<0.000000e+00> : vector<10x30xf32>
    %236 = tpu.matmul %208, %26, %cst_53 {dimension_numbers = #tpu.dot_dimension_numbers<[1], [0], [0], [1], [0, 0, 1, 1], [], []>} : vector<10x10xf32>, vector<10x30xf32>, vector<10x30xf32> -> vector<10x30xf32>
    %237 = vector.broadcast %19 : vector<1x30xf32> to vector<10x30xf32>
    %238 = arith.addf %236, %237 : vector<10x30xf32>
    %239 = vector.extract_strided_slice %235 {offsets = [0, 0], sizes = [10, 20], strides = [1, 1]} : vector<10x30xf32> to vector<10x20xf32>
    %240 = vector.extract_strided_slice %238 {offsets = [0, 0], sizes = [10, 20], strides = [1, 1]} : vector<10x30xf32> to vector<10x20xf32>
    %241 = arith.addf %239, %240 : vector<10x20xf32>
    %242 = arith.negf %241 : vector<10x20xf32>
    %243 = math.exp %242 : vector<10x20xf32>
    %cst_54 = arith.constant 1.000000e+00 : f32
    %244 = vector.broadcast %cst_54 : f32 to vector<10x20xf32>
    %245 = arith.addf %244, %243 : vector<10x20xf32>
    %246 = arith.divf %244, %245 : vector<10x20xf32>
    %247 = vector.extract_strided_slice %246 {offsets = [0, 0], sizes = [10, 10], strides = [1, 1]} : vector<10x20xf32> to vector<10x10xf32>
    %248 = vector.extract_strided_slice %246 {offsets = [0, 10], sizes = [10, 10], strides = [1, 1]} : vector<10x20xf32> to vector<10x10xf32>
    %249 = vector.extract_strided_slice %235 {offsets = [0, 20], sizes = [10, 10], strides = [1, 1]} : vector<10x30xf32> to vector<10x10xf32>
    %250 = vector.extract_strided_slice %238 {offsets = [0, 20], sizes = [10, 10], strides = [1, 1]} : vector<10x30xf32> to vector<10x10xf32>
    %251 = arith.mulf %247, %250 : vector<10x10xf32>
    %252 = arith.addf %249, %251 : vector<10x10xf32>
    %253 = math.tanh %252 : vector<10x10xf32>
    %cst_55 = arith.constant 1.000000e+00 : f32
    %254 = vector.broadcast %cst_55 : f32 to vector<10x10xf32>
    %255 = arith.subf %254, %248 : vector<10x10xf32>
    %256 = arith.mulf %255, %253 : vector<10x10xf32>
    %257 = arith.mulf %248, %208 : vector<10x10xf32>
    %258 = arith.addf %256, %257 : vector<10x10xf32>
    %259 = vector.extract_strided_slice %101 {offsets = [30, 0], sizes = [10, 30], strides = [1, 1]} : vector<80x30xf32> to vector<10x30xf32>
    %cst_56 = arith.constant dense<0.000000e+00> : vector<10x30xf32>
    %260 = tpu.matmul %232, %24, %cst_56 {dimension_numbers = #tpu.dot_dimension_numbers<[1], [0], [0], [1], [0, 0, 1, 1], [], []>} : vector<10x10xf32>, vector<10x30xf32>, vector<10x30xf32> -> vector<10x30xf32>
    %261 = vector.broadcast %17 : vector<1x30xf32> to vector<10x30xf32>
    %262 = arith.addf %260, %261 : vector<10x30xf32>
    %263 = vector.extract_strided_slice %259 {offsets = [0, 0], sizes = [10, 20], strides = [1, 1]} : vector<10x30xf32> to vector<10x20xf32>
    %264 = vector.extract_strided_slice %262 {offsets = [0, 0], sizes = [10, 20], strides = [1, 1]} : vector<10x30xf32> to vector<10x20xf32>
    %265 = arith.addf %263, %264 : vector<10x20xf32>
    %266 = arith.negf %265 : vector<10x20xf32>
    %267 = math.exp %266 : vector<10x20xf32>
    %cst_57 = arith.constant 1.000000e+00 : f32
    %268 = vector.broadcast %cst_57 : f32 to vector<10x20xf32>
    %269 = arith.addf %268, %267 : vector<10x20xf32>
    %270 = arith.divf %268, %269 : vector<10x20xf32>
    %271 = vector.extract_strided_slice %270 {offsets = [0, 0], sizes = [10, 10], strides = [1, 1]} : vector<10x20xf32> to vector<10x10xf32>
    %272 = vector.extract_strided_slice %270 {offsets = [0, 10], sizes = [10, 10], strides = [1, 1]} : vector<10x20xf32> to vector<10x10xf32>
    %273 = vector.extract_strided_slice %259 {offsets = [0, 20], sizes = [10, 10], strides = [1, 1]} : vector<10x30xf32> to vector<10x10xf32>
    %274 = vector.extract_strided_slice %262 {offsets = [0, 20], sizes = [10, 10], strides = [1, 1]} : vector<10x30xf32> to vector<10x10xf32>
    %275 = arith.mulf %271, %274 : vector<10x10xf32>
    %276 = arith.addf %273, %275 : vector<10x10xf32>
    %277 = math.tanh %276 : vector<10x10xf32>
    %cst_58 = arith.constant 1.000000e+00 : f32
    %278 = vector.broadcast %cst_58 : f32 to vector<10x10xf32>
    %279 = arith.subf %278, %272 : vector<10x10xf32>
    %280 = arith.mulf %279, %277 : vector<10x10xf32>
    %281 = arith.mulf %272, %232 : vector<10x10xf32>
    %282 = arith.addf %280, %281 : vector<10x10xf32>
    %cst_59 = arith.constant dense<0.000000e+00> : vector<10x30xf32>
    %283 = tpu.matmul %282, %25, %cst_59 {dimension_numbers = #tpu.dot_dimension_numbers<[1], [0], [0], [1], [0, 0, 1, 1], [], []>} : vector<10x10xf32>, vector<10x30xf32>, vector<10x30xf32> -> vector<10x30xf32>
    %284 = vector.broadcast %18 : vector<1x30xf32> to vector<10x30xf32>
    %285 = arith.addf %283, %284 : vector<10x30xf32>
    %cst_60 = arith.constant dense<0.000000e+00> : vector<10x30xf32>
    %286 = tpu.matmul %258, %26, %cst_60 {dimension_numbers = #tpu.dot_dimension_numbers<[1], [0], [0], [1], [0, 0, 1, 1], [], []>} : vector<10x10xf32>, vector<10x30xf32>, vector<10x30xf32> -> vector<10x30xf32>
    %287 = vector.broadcast %19 : vector<1x30xf32> to vector<10x30xf32>
    %288 = arith.addf %286, %287 : vector<10x30xf32>
    %289 = vector.extract_strided_slice %285 {offsets = [0, 0], sizes = [10, 20], strides = [1, 1]} : vector<10x30xf32> to vector<10x20xf32>
    %290 = vector.extract_strided_slice %288 {offsets = [0, 0], sizes = [10, 20], strides = [1, 1]} : vector<10x30xf32> to vector<10x20xf32>
    %291 = arith.addf %289, %290 : vector<10x20xf32>
    %292 = arith.negf %291 : vector<10x20xf32>
    %293 = math.exp %292 : vector<10x20xf32>
    %cst_61 = arith.constant 1.000000e+00 : f32
    %294 = vector.broadcast %cst_61 : f32 to vector<10x20xf32>
    %295 = arith.addf %294, %293 : vector<10x20xf32>
    %296 = arith.divf %294, %295 : vector<10x20xf32>
    %297 = vector.extract_strided_slice %296 {offsets = [0, 0], sizes = [10, 10], strides = [1, 1]} : vector<10x20xf32> to vector<10x10xf32>
    %298 = vector.extract_strided_slice %296 {offsets = [0, 10], sizes = [10, 10], strides = [1, 1]} : vector<10x20xf32> to vector<10x10xf32>
    %299 = vector.extract_strided_slice %285 {offsets = [0, 20], sizes = [10, 10], strides = [1, 1]} : vector<10x30xf32> to vector<10x10xf32>
    %300 = vector.extract_strided_slice %288 {offsets = [0, 20], sizes = [10, 10], strides = [1, 1]} : vector<10x30xf32> to vector<10x10xf32>
    %301 = arith.mulf %297, %300 : vector<10x10xf32>
    %302 = arith.addf %299, %301 : vector<10x10xf32>
    %303 = math.tanh %302 : vector<10x10xf32>
    %cst_62 = arith.constant 1.000000e+00 : f32
    %304 = vector.broadcast %cst_62 : f32 to vector<10x10xf32>
    %305 = arith.subf %304, %298 : vector<10x10xf32>
    %306 = arith.mulf %305, %303 : vector<10x10xf32>
    %307 = arith.mulf %298, %258 : vector<10x10xf32>
    %308 = arith.addf %306, %307 : vector<10x10xf32>
    %309 = vector.extract_strided_slice %101 {offsets = [40, 0], sizes = [10, 30], strides = [1, 1]} : vector<80x30xf32> to vector<10x30xf32>
    %cst_63 = arith.constant dense<0.000000e+00> : vector<10x30xf32>
    %310 = tpu.matmul %282, %24, %cst_63 {dimension_numbers = #tpu.dot_dimension_numbers<[1], [0], [0], [1], [0, 0, 1, 1], [], []>} : vector<10x10xf32>, vector<10x30xf32>, vector<10x30xf32> -> vector<10x30xf32>
    %311 = vector.broadcast %17 : vector<1x30xf32> to vector<10x30xf32>
    %312 = arith.addf %310, %311 : vector<10x30xf32>
    %313 = vector.extract_strided_slice %309 {offsets = [0, 0], sizes = [10, 20], strides = [1, 1]} : vector<10x30xf32> to vector<10x20xf32>
    %314 = vector.extract_strided_slice %312 {offsets = [0, 0], sizes = [10, 20], strides = [1, 1]} : vector<10x30xf32> to vector<10x20xf32>
    %315 = arith.addf %313, %314 : vector<10x20xf32>
    %316 = arith.negf %315 : vector<10x20xf32>
    %317 = math.exp %316 : vector<10x20xf32>
    %cst_64 = arith.constant 1.000000e+00 : f32
    %318 = vector.broadcast %cst_64 : f32 to vector<10x20xf32>
    %319 = arith.addf %318, %317 : vector<10x20xf32>
    %320 = arith.divf %318, %319 : vector<10x20xf32>
    %321 = vector.extract_strided_slice %320 {offsets = [0, 0], sizes = [10, 10], strides = [1, 1]} : vector<10x20xf32> to vector<10x10xf32>
    %322 = vector.extract_strided_slice %320 {offsets = [0, 10], sizes = [10, 10], strides = [1, 1]} : vector<10x20xf32> to vector<10x10xf32>
    %323 = vector.extract_strided_slice %309 {offsets = [0, 20], sizes = [10, 10], strides = [1, 1]} : vector<10x30xf32> to vector<10x10xf32>
    %324 = vector.extract_strided_slice %312 {offsets = [0, 20], sizes = [10, 10], strides = [1, 1]} : vector<10x30xf32> to vector<10x10xf32>
    %325 = arith.mulf %321, %324 : vector<10x10xf32>
    %326 = arith.addf %323, %325 : vector<10x10xf32>
    %327 = math.tanh %326 : vector<10x10xf32>
    %cst_65 = arith.constant 1.000000e+00 : f32
    %328 = vector.broadcast %cst_65 : f32 to vector<10x10xf32>
    %329 = arith.subf %328, %322 : vector<10x10xf32>
    %330 = arith.mulf %329, %327 : vector<10x10xf32>
    %331 = arith.mulf %322, %282 : vector<10x10xf32>
    %332 = arith.addf %330, %331 : vector<10x10xf32>
    %cst_66 = arith.constant dense<0.000000e+00> : vector<10x30xf32>
    %333 = tpu.matmul %332, %25, %cst_66 {dimension_numbers = #tpu.dot_dimension_numbers<[1], [0], [0], [1], [0, 0, 1, 1], [], []>} : vector<10x10xf32>, vector<10x30xf32>, vector<10x30xf32> -> vector<10x30xf32>
    %334 = vector.broadcast %18 : vector<1x30xf32> to vector<10x30xf32>
    %335 = arith.addf %333, %334 : vector<10x30xf32>
    %cst_67 = arith.constant dense<0.000000e+00> : vector<10x30xf32>
    %336 = tpu.matmul %308, %26, %cst_67 {dimension_numbers = #tpu.dot_dimension_numbers<[1], [0], [0], [1], [0, 0, 1, 1], [], []>} : vector<10x10xf32>, vector<10x30xf32>, vector<10x30xf32> -> vector<10x30xf32>
    %337 = vector.broadcast %19 : vector<1x30xf32> to vector<10x30xf32>
    %338 = arith.addf %336, %337 : vector<10x30xf32>
    %339 = vector.extract_strided_slice %335 {offsets = [0, 0], sizes = [10, 20], strides = [1, 1]} : vector<10x30xf32> to vector<10x20xf32>
    %340 = vector.extract_strided_slice %338 {offsets = [0, 0], sizes = [10, 20], strides = [1, 1]} : vector<10x30xf32> to vector<10x20xf32>
    %341 = arith.addf %339, %340 : vector<10x20xf32>
    %342 = arith.negf %341 : vector<10x20xf32>
    %343 = math.exp %342 : vector<10x20xf32>
    %cst_68 = arith.constant 1.000000e+00 : f32
    %344 = vector.broadcast %cst_68 : f32 to vector<10x20xf32>
    %345 = arith.addf %344, %343 : vector<10x20xf32>
    %346 = arith.divf %344, %345 : vector<10x20xf32>
    %347 = vector.extract_strided_slice %346 {offsets = [0, 0], sizes = [10, 10], strides = [1, 1]} : vector<10x20xf32> to vector<10x10xf32>
    %348 = vector.extract_strided_slice %346 {offsets = [0, 10], sizes = [10, 10], strides = [1, 1]} : vector<10x20xf32> to vector<10x10xf32>
    %349 = vector.extract_strided_slice %335 {offsets = [0, 20], sizes = [10, 10], strides = [1, 1]} : vector<10x30xf32> to vector<10x10xf32>
    %350 = vector.extract_strided_slice %338 {offsets = [0, 20], sizes = [10, 10], strides = [1, 1]} : vector<10x30xf32> to vector<10x10xf32>
    %351 = arith.mulf %347, %350 : vector<10x10xf32>
    %352 = arith.addf %349, %351 : vector<10x10xf32>
    %353 = math.tanh %352 : vector<10x10xf32>
    %cst_69 = arith.constant 1.000000e+00 : f32
    %354 = vector.broadcast %cst_69 : f32 to vector<10x10xf32>
    %355 = arith.subf %354, %348 : vector<10x10xf32>
    %356 = arith.mulf %355, %353 : vector<10x10xf32>
    %357 = arith.mulf %348, %308 : vector<10x10xf32>
    %358 = arith.addf %356, %357 : vector<10x10xf32>
    %359 = vector.extract_strided_slice %101 {offsets = [50, 0], sizes = [10, 30], strides = [1, 1]} : vector<80x30xf32> to vector<10x30xf32>
    %cst_70 = arith.constant dense<0.000000e+00> : vector<10x30xf32>
    %360 = tpu.matmul %332, %24, %cst_70 {dimension_numbers = #tpu.dot_dimension_numbers<[1], [0], [0], [1], [0, 0, 1, 1], [], []>} : vector<10x10xf32>, vector<10x30xf32>, vector<10x30xf32> -> vector<10x30xf32>
    %361 = vector.broadcast %17 : vector<1x30xf32> to vector<10x30xf32>
    %362 = arith.addf %360, %361 : vector<10x30xf32>
    %363 = vector.extract_strided_slice %359 {offsets = [0, 0], sizes = [10, 20], strides = [1, 1]} : vector<10x30xf32> to vector<10x20xf32>
    %364 = vector.extract_strided_slice %362 {offsets = [0, 0], sizes = [10, 20], strides = [1, 1]} : vector<10x30xf32> to vector<10x20xf32>
    %365 = arith.addf %363, %364 : vector<10x20xf32>
    %366 = arith.negf %365 : vector<10x20xf32>
    %367 = math.exp %366 : vector<10x20xf32>
    %cst_71 = arith.constant 1.000000e+00 : f32
    %368 = vector.broadcast %cst_71 : f32 to vector<10x20xf32>
    %369 = arith.addf %368, %367 : vector<10x20xf32>
    %370 = arith.divf %368, %369 : vector<10x20xf32>
    %371 = vector.extract_strided_slice %370 {offsets = [0, 0], sizes = [10, 10], strides = [1, 1]} : vector<10x20xf32> to vector<10x10xf32>
    %372 = vector.extract_strided_slice %370 {offsets = [0, 10], sizes = [10, 10], strides = [1, 1]} : vector<10x20xf32> to vector<10x10xf32>
    %373 = vector.extract_strided_slice %359 {offsets = [0, 20], sizes = [10, 10], strides = [1, 1]} : vector<10x30xf32> to vector<10x10xf32>
    %374 = vector.extract_strided_slice %362 {offsets = [0, 20], sizes = [10, 10], strides = [1, 1]} : vector<10x30xf32> to vector<10x10xf32>
    %375 = arith.mulf %371, %374 : vector<10x10xf32>
    %376 = arith.addf %373, %375 : vector<10x10xf32>
    %377 = math.tanh %376 : vector<10x10xf32>
    %cst_72 = arith.constant 1.000000e+00 : f32
    %378 = vector.broadcast %cst_72 : f32 to vector<10x10xf32>
    %379 = arith.subf %378, %372 : vector<10x10xf32>
    %380 = arith.mulf %379, %377 : vector<10x10xf32>
    %381 = arith.mulf %372, %332 : vector<10x10xf32>
    %382 = arith.addf %380, %381 : vector<10x10xf32>
    %cst_73 = arith.constant dense<0.000000e+00> : vector<10x30xf32>
    %383 = tpu.matmul %382, %25, %cst_73 {dimension_numbers = #tpu.dot_dimension_numbers<[1], [0], [0], [1], [0, 0, 1, 1], [], []>} : vector<10x10xf32>, vector<10x30xf32>, vector<10x30xf32> -> vector<10x30xf32>
    %384 = vector.broadcast %18 : vector<1x30xf32> to vector<10x30xf32>
    %385 = arith.addf %383, %384 : vector<10x30xf32>
    %cst_74 = arith.constant dense<0.000000e+00> : vector<10x30xf32>
    %386 = tpu.matmul %358, %26, %cst_74 {dimension_numbers = #tpu.dot_dimension_numbers<[1], [0], [0], [1], [0, 0, 1, 1], [], []>} : vector<10x10xf32>, vector<10x30xf32>, vector<10x30xf32> -> vector<10x30xf32>
    %387 = vector.broadcast %19 : vector<1x30xf32> to vector<10x30xf32>
    %388 = arith.addf %386, %387 : vector<10x30xf32>
    %389 = vector.extract_strided_slice %385 {offsets = [0, 0], sizes = [10, 20], strides = [1, 1]} : vector<10x30xf32> to vector<10x20xf32>
    %390 = vector.extract_strided_slice %388 {offsets = [0, 0], sizes = [10, 20], strides = [1, 1]} : vector<10x30xf32> to vector<10x20xf32>
    %391 = arith.addf %389, %390 : vector<10x20xf32>
    %392 = arith.negf %391 : vector<10x20xf32>
    %393 = math.exp %392 : vector<10x20xf32>
    %cst_75 = arith.constant 1.000000e+00 : f32
    %394 = vector.broadcast %cst_75 : f32 to vector<10x20xf32>
    %395 = arith.addf %394, %393 : vector<10x20xf32>
    %396 = arith.divf %394, %395 : vector<10x20xf32>
    %397 = vector.extract_strided_slice %396 {offsets = [0, 0], sizes = [10, 10], strides = [1, 1]} : vector<10x20xf32> to vector<10x10xf32>
    %398 = vector.extract_strided_slice %396 {offsets = [0, 10], sizes = [10, 10], strides = [1, 1]} : vector<10x20xf32> to vector<10x10xf32>
    %399 = vector.extract_strided_slice %385 {offsets = [0, 20], sizes = [10, 10], strides = [1, 1]} : vector<10x30xf32> to vector<10x10xf32>
    %400 = vector.extract_strided_slice %388 {offsets = [0, 20], sizes = [10, 10], strides = [1, 1]} : vector<10x30xf32> to vector<10x10xf32>
    %401 = arith.mulf %397, %400 : vector<10x10xf32>
    %402 = arith.addf %399, %401 : vector<10x10xf32>
    %403 = math.tanh %402 : vector<10x10xf32>
    %cst_76 = arith.constant 1.000000e+00 : f32
    %404 = vector.broadcast %cst_76 : f32 to vector<10x10xf32>
    %405 = arith.subf %404, %398 : vector<10x10xf32>
    %406 = arith.mulf %405, %403 : vector<10x10xf32>
    %407 = arith.mulf %398, %358 : vector<10x10xf32>
    %408 = arith.addf %406, %407 : vector<10x10xf32>
    %409 = vector.extract_strided_slice %101 {offsets = [60, 0], sizes = [10, 30], strides = [1, 1]} : vector<80x30xf32> to vector<10x30xf32>
    %cst_77 = arith.constant dense<0.000000e+00> : vector<10x30xf32>
    %410 = tpu.matmul %382, %24, %cst_77 {dimension_numbers = #tpu.dot_dimension_numbers<[1], [0], [0], [1], [0, 0, 1, 1], [], []>} : vector<10x10xf32>, vector<10x30xf32>, vector<10x30xf32> -> vector<10x30xf32>
    %411 = vector.broadcast %17 : vector<1x30xf32> to vector<10x30xf32>
    %412 = arith.addf %410, %411 : vector<10x30xf32>
    %413 = vector.extract_strided_slice %409 {offsets = [0, 0], sizes = [10, 20], strides = [1, 1]} : vector<10x30xf32> to vector<10x20xf32>
    %414 = vector.extract_strided_slice %412 {offsets = [0, 0], sizes = [10, 20], strides = [1, 1]} : vector<10x30xf32> to vector<10x20xf32>
    %415 = arith.addf %413, %414 : vector<10x20xf32>
    %416 = arith.negf %415 : vector<10x20xf32>
    %417 = math.exp %416 : vector<10x20xf32>
    %cst_78 = arith.constant 1.000000e+00 : f32
    %418 = vector.broadcast %cst_78 : f32 to vector<10x20xf32>
    %419 = arith.addf %418, %417 : vector<10x20xf32>
    %420 = arith.divf %418, %419 : vector<10x20xf32>
    %421 = vector.extract_strided_slice %420 {offsets = [0, 0], sizes = [10, 10], strides = [1, 1]} : vector<10x20xf32> to vector<10x10xf32>
    %422 = vector.extract_strided_slice %420 {offsets = [0, 10], sizes = [10, 10], strides = [1, 1]} : vector<10x20xf32> to vector<10x10xf32>
    %423 = vector.extract_strided_slice %409 {offsets = [0, 20], sizes = [10, 10], strides = [1, 1]} : vector<10x30xf32> to vector<10x10xf32>
    %424 = vector.extract_strided_slice %412 {offsets = [0, 20], sizes = [10, 10], strides = [1, 1]} : vector<10x30xf32> to vector<10x10xf32>
    %425 = arith.mulf %421, %424 : vector<10x10xf32>
    %426 = arith.addf %423, %425 : vector<10x10xf32>
    %427 = math.tanh %426 : vector<10x10xf32>
    %cst_79 = arith.constant 1.000000e+00 : f32
    %428 = vector.broadcast %cst_79 : f32 to vector<10x10xf32>
    %429 = arith.subf %428, %422 : vector<10x10xf32>
    %430 = arith.mulf %429, %427 : vector<10x10xf32>
    %431 = arith.mulf %422, %382 : vector<10x10xf32>
    %432 = arith.addf %430, %431 : vector<10x10xf32>
    %cst_80 = arith.constant dense<0.000000e+00> : vector<10x30xf32>
    %433 = tpu.matmul %432, %25, %cst_80 {dimension_numbers = #tpu.dot_dimension_numbers<[1], [0], [0], [1], [0, 0, 1, 1], [], []>} : vector<10x10xf32>, vector<10x30xf32>, vector<10x30xf32> -> vector<10x30xf32>
    %434 = vector.broadcast %18 : vector<1x30xf32> to vector<10x30xf32>
    %435 = arith.addf %433, %434 : vector<10x30xf32>
    %cst_81 = arith.constant dense<0.000000e+00> : vector<10x30xf32>
    %436 = tpu.matmul %408, %26, %cst_81 {dimension_numbers = #tpu.dot_dimension_numbers<[1], [0], [0], [1], [0, 0, 1, 1], [], []>} : vector<10x10xf32>, vector<10x30xf32>, vector<10x30xf32> -> vector<10x30xf32>
    %437 = vector.broadcast %19 : vector<1x30xf32> to vector<10x30xf32>
    %438 = arith.addf %436, %437 : vector<10x30xf32>
    %439 = vector.extract_strided_slice %435 {offsets = [0, 0], sizes = [10, 20], strides = [1, 1]} : vector<10x30xf32> to vector<10x20xf32>
    %440 = vector.extract_strided_slice %438 {offsets = [0, 0], sizes = [10, 20], strides = [1, 1]} : vector<10x30xf32> to vector<10x20xf32>
    %441 = arith.addf %439, %440 : vector<10x20xf32>
    %442 = arith.negf %441 : vector<10x20xf32>
    %443 = math.exp %442 : vector<10x20xf32>
    %cst_82 = arith.constant 1.000000e+00 : f32
    %444 = vector.broadcast %cst_82 : f32 to vector<10x20xf32>
    %445 = arith.addf %444, %443 : vector<10x20xf32>
    %446 = arith.divf %444, %445 : vector<10x20xf32>
    %447 = vector.extract_strided_slice %446 {offsets = [0, 0], sizes = [10, 10], strides = [1, 1]} : vector<10x20xf32> to vector<10x10xf32>
    %448 = vector.extract_strided_slice %446 {offsets = [0, 10], sizes = [10, 10], strides = [1, 1]} : vector<10x20xf32> to vector<10x10xf32>
    %449 = vector.extract_strided_slice %435 {offsets = [0, 20], sizes = [10, 10], strides = [1, 1]} : vector<10x30xf32> to vector<10x10xf32>
    %450 = vector.extract_strided_slice %438 {offsets = [0, 20], sizes = [10, 10], strides = [1, 1]} : vector<10x30xf32> to vector<10x10xf32>
    %451 = arith.mulf %447, %450 : vector<10x10xf32>
    %452 = arith.addf %449, %451 : vector<10x10xf32>
    %453 = math.tanh %452 : vector<10x10xf32>
    %cst_83 = arith.constant 1.000000e+00 : f32
    %454 = vector.broadcast %cst_83 : f32 to vector<10x10xf32>
    %455 = arith.subf %454, %448 : vector<10x10xf32>
    %456 = arith.mulf %455, %453 : vector<10x10xf32>
    %457 = arith.mulf %448, %408 : vector<10x10xf32>
    %458 = arith.addf %456, %457 : vector<10x10xf32>
    %459 = vector.extract_strided_slice %101 {offsets = [70, 0], sizes = [10, 30], strides = [1, 1]} : vector<80x30xf32> to vector<10x30xf32>
    %cst_84 = arith.constant dense<0.000000e+00> : vector<10x30xf32>
    %460 = tpu.matmul %432, %24, %cst_84 {dimension_numbers = #tpu.dot_dimension_numbers<[1], [0], [0], [1], [0, 0, 1, 1], [], []>} : vector<10x10xf32>, vector<10x30xf32>, vector<10x30xf32> -> vector<10x30xf32>
    %461 = vector.broadcast %17 : vector<1x30xf32> to vector<10x30xf32>
    %462 = arith.addf %460, %461 : vector<10x30xf32>
    %463 = vector.extract_strided_slice %459 {offsets = [0, 0], sizes = [10, 20], strides = [1, 1]} : vector<10x30xf32> to vector<10x20xf32>
    %464 = vector.extract_strided_slice %462 {offsets = [0, 0], sizes = [10, 20], strides = [1, 1]} : vector<10x30xf32> to vector<10x20xf32>
    %465 = arith.addf %463, %464 : vector<10x20xf32>
    %466 = arith.negf %465 : vector<10x20xf32>
    %467 = math.exp %466 : vector<10x20xf32>
    %cst_85 = arith.constant 1.000000e+00 : f32
    %468 = vector.broadcast %cst_85 : f32 to vector<10x20xf32>
    %469 = arith.addf %468, %467 : vector<10x20xf32>
    %470 = arith.divf %468, %469 : vector<10x20xf32>
    %471 = vector.extract_strided_slice %470 {offsets = [0, 0], sizes = [10, 10], strides = [1, 1]} : vector<10x20xf32> to vector<10x10xf32>
    %472 = vector.extract_strided_slice %470 {offsets = [0, 10], sizes = [10, 10], strides = [1, 1]} : vector<10x20xf32> to vector<10x10xf32>
    %473 = vector.extract_strided_slice %459 {offsets = [0, 20], sizes = [10, 10], strides = [1, 1]} : vector<10x30xf32> to vector<10x10xf32>
    %474 = vector.extract_strided_slice %462 {offsets = [0, 20], sizes = [10, 10], strides = [1, 1]} : vector<10x30xf32> to vector<10x10xf32>
    %475 = arith.mulf %471, %474 : vector<10x10xf32>
    %476 = arith.addf %473, %475 : vector<10x10xf32>
    %477 = math.tanh %476 : vector<10x10xf32>
    %cst_86 = arith.constant 1.000000e+00 : f32
    %478 = vector.broadcast %cst_86 : f32 to vector<10x10xf32>
    %479 = arith.subf %478, %472 : vector<10x10xf32>
    %480 = arith.mulf %479, %477 : vector<10x10xf32>
    %481 = arith.mulf %472, %432 : vector<10x10xf32>
    %482 = arith.addf %480, %481 : vector<10x10xf32>
    %cst_87 = arith.constant dense<0.000000e+00> : vector<10x30xf32>
    %483 = tpu.matmul %482, %25, %cst_87 {dimension_numbers = #tpu.dot_dimension_numbers<[1], [0], [0], [1], [0, 0, 1, 1], [], []>} : vector<10x10xf32>, vector<10x30xf32>, vector<10x30xf32> -> vector<10x30xf32>
    %484 = vector.broadcast %18 : vector<1x30xf32> to vector<10x30xf32>
    %485 = arith.addf %483, %484 : vector<10x30xf32>
    %cst_88 = arith.constant dense<0.000000e+00> : vector<10x30xf32>
    %486 = tpu.matmul %458, %26, %cst_88 {dimension_numbers = #tpu.dot_dimension_numbers<[1], [0], [0], [1], [0, 0, 1, 1], [], []>} : vector<10x10xf32>, vector<10x30xf32>, vector<10x30xf32> -> vector<10x30xf32>
    %487 = vector.broadcast %19 : vector<1x30xf32> to vector<10x30xf32>
    %488 = arith.addf %486, %487 : vector<10x30xf32>
    %489 = vector.extract_strided_slice %485 {offsets = [0, 0], sizes = [10, 20], strides = [1, 1]} : vector<10x30xf32> to vector<10x20xf32>
    %490 = vector.extract_strided_slice %488 {offsets = [0, 0], sizes = [10, 20], strides = [1, 1]} : vector<10x30xf32> to vector<10x20xf32>
    %491 = arith.addf %489, %490 : vector<10x20xf32>
    %492 = arith.negf %491 : vector<10x20xf32>
    %493 = math.exp %492 : vector<10x20xf32>
    %cst_89 = arith.constant 1.000000e+00 : f32
    %494 = vector.broadcast %cst_89 : f32 to vector<10x20xf32>
    %495 = arith.addf %494, %493 : vector<10x20xf32>
    %496 = arith.divf %494, %495 : vector<10x20xf32>
    %497 = vector.extract_strided_slice %496 {offsets = [0, 0], sizes = [10, 10], strides = [1, 1]} : vector<10x20xf32> to vector<10x10xf32>
    %498 = vector.extract_strided_slice %496 {offsets = [0, 10], sizes = [10, 10], strides = [1, 1]} : vector<10x20xf32> to vector<10x10xf32>
    %499 = vector.extract_strided_slice %485 {offsets = [0, 20], sizes = [10, 10], strides = [1, 1]} : vector<10x30xf32> to vector<10x10xf32>
    %500 = vector.extract_strided_slice %488 {offsets = [0, 20], sizes = [10, 10], strides = [1, 1]} : vector<10x30xf32> to vector<10x10xf32>
    %501 = arith.mulf %497, %500 : vector<10x10xf32>
    %502 = arith.addf %499, %501 : vector<10x10xf32>
    %503 = math.tanh %502 : vector<10x10xf32>
    %cst_90 = arith.constant 1.000000e+00 : f32
    %504 = vector.broadcast %cst_90 : f32 to vector<10x10xf32>
    %505 = arith.subf %504, %498 : vector<10x10xf32>
    %506 = arith.mulf %505, %503 : vector<10x10xf32>
    %507 = arith.mulf %498, %458 : vector<10x10xf32>
    %508 = arith.addf %506, %507 : vector<10x10xf32>
    %509 = tpu.concatenate %482, %508 in 1 : vector<10x10xf32>, vector<10x10xf32> -> vector<10x20xf32>
    %cst_91 = arith.constant 0.000000e+00 : f32
    %510 = vector.broadcast %cst_91 : f32 to vector<10x20xf32>
    %511 = arith.maximumf %509, %510 : vector<10x20xf32>
    %cst_92 = arith.constant dense<0.000000e+00> : vector<10x1xf32>
    %512 = tpu.matmul %511, %28, %cst_92 {dimension_numbers = #tpu.dot_dimension_numbers<[1], [0], [0], [1], [0, 0, 1, 1], [], []>} : vector<10x20xf32>, vector<20x1xf32>, vector<10x1xf32> -> vector<10x1xf32>
    %513 = arith.addf %106, %512 : vector<10x1xf32>
    %c0_93 = arith.constant 0 : index
    %c0_94 = arith.constant 0 : index
    %514 = vector.load %arg3[%c0_93, %c0_94] : memref<10x21xf32, #tpu.memory_space<vmem>>, vector<10x20xf32>
    tpu.vector_store %arg3[%c0_93, %c0_94], %509 {strides = array<i32>} : memref<10x21xf32, #tpu.memory_space<vmem>>, vector<10x20xf32>,
    %c0_95 = arith.constant 0 : index
    %c20 = arith.constant 20 : index
    %515 = vector.load %arg3[%c0_95, %c20] : memref<10x21xf32, #tpu.memory_space<vmem>>, vector<10x1xf32>
    tpu.vector_store %arg3[%c0_95, %c20], %513 {strides = array<i32>} : memref<10x21xf32, #tpu.memory_space<vmem>>, vector<10x1xf32>,
    return
  }
}

</mosaic_0001>

<llo_original>
// kernel: dcsage_gru_forward.1
$region0: #{dcsage_gru_forward.1}
  #allocation0 [shape = 'u32[]', space=smem, size = 0x4, offset = 0x4, fixed_abs, tag = 'smem constant byte address 0x4 - core index']
  #allocation1 [shape = 'u32[144,128]{1,0:T(1,128)}', space=vmem, size = 0x12000, scoped, tag = 'internal scratch']
  %s0 = inlined_call_operand.vmem [shape: f32[90,8], index: 0, kind: input, shape index: {}]
  %s1 = inlined_call_operand.vmem [shape: f32[2,80,80], index: 1, kind: input, shape index: {}]
  %s2 = inlined_call_operand.vmem [shape: f32[160,30], index: 2, kind: input, shape index: {}]
  %s3 = inlined_call_operand.vmem [shape: f32[10,21], index: 3, kind: output, shape index: {}]
  %s4 = sld [smem:[#allocation0]]
  $region22: #{dcsage_gru_forward.1} parent=0
    _
  %s6 = ssub.s32 1, %s4
  %s7 = scalar_select 0, %s6, %s4
  // Predicated region
  $region2: #{dcsage_gru_forward.1} parent=0 // pred_check
    _
  $region3: #{dcsage_gru_forward.1} parent=0 // pred_check_branch
    %9 = sbr.rel (0) target = $region5
  $region4: #{dcsage_gru_forward.1} parent=0 // pred_region
    _
  $region5: #{dcsage_gru_forward.1} parent=0 // pred_fallthru
    _
  // Predicated region
  $region6: #{dcsage_gru_forward.1} parent=0 // pred_check
    _
  $region7: #{dcsage_gru_forward.1} parent=0 // pred_check_branch
    %11 = sbr.rel (0) target = $region9
  $region8: #{dcsage_gru_forward.1} parent=0 // pred_region
    _
  $region9: #{dcsage_gru_forward.1} parent=0 // pred_fallthru
    _
  // Predicated region
  $region10: #{dcsage_gru_forward.1} parent=0 // pred_check
    _
  $region11: #{dcsage_gru_forward.1} parent=0 // pred_check_branch
    %13 = sbr.rel (0) target = $region13
  $region12: #{dcsage_gru_forward.1} parent=0 // pred_region
    _
  $region13: #{dcsage_gru_forward.1} parent=0 // pred_fallthru
    _
  %v14 = vld [vmem:[%s1] sm:$0xff]
  %v15 = vld [vmem:[%s1 + $0x8] sm:$0xff]
  %v16 = vld [vmem:[%s1 + $0x10] sm:$0xff]
  %v17 = vld [vmem:[%s1 + $0x18] sm:$0xff]
  %v18 = vld [vmem:[%s1 + $0x20] sm:$0xff]
  %v19 = vld [vmem:[%s1 + $0x28] sm:$0xff]
  %v20 = vld [vmem:[%s1 + $0x30] sm:$0xff]
  %v21 = vld [vmem:[%s1 + $0x38] sm:$0xff]
  %v22 = vld [vmem:[%s1 + $0x40] sm:$0xff]
  %v23 = vld [vmem:[%s1 + $0x48] sm:$0xff]
  %s24 = scalar_lea.vmem %s1, 80
  %v25 = vld [vmem:[%s24] sm:$0xff]
  %v26 = vld [vmem:[%s24 + $0x8] sm:$0xff]
  %v27 = vld [vmem:[%s24 + $0x10] sm:$0xff]
  %v28 = vld [vmem:[%s24 + $0x18] sm:$0xff]
  %v29 = vld [vmem:[%s24 + $0x20] sm:$0xff]
  %v30 = vld [vmem:[%s24 + $0x28] sm:$0xff]
  %v31 = vld [vmem:[%s24 + $0x30] sm:$0xff]
  %v32 = vld [vmem:[%s24 + $0x38] sm:$0xff]
  %v33 = vld [vmem:[%s24 + $0x40] sm:$0xff]
  %v34 = vld [vmem:[%s24 + $0x48] sm:$0xff]
  %v35 = vld [vmem:[%s0] sm:$0xff]
  %v36 = vld [vmem:[%s0 + $0x8] sm:$0xff]
  %v37 = vld [vmem:[%s0 + $0x10] sm:$0xff]
  %v38 = vld [vmem:[%s0 + $0x18] sm:$0xff]
  %v39 = vld [vmem:[%s0 + $0x20] sm:$0xff]
  %v40 = vld [vmem:[%s0 + $0x28] sm:$0xff]
  %v41 = vld [vmem:[%s0 + $0x30] sm:$0xff]
  %v42 = vld [vmem:[%s0 + $0x38] sm:$0xff]
  %v43 = vld [vmem:[%s0 + $0x40] sm:$0xff]
  %v44 = vld [vmem:[%s0 + $0x48] sm:$0xff]
  %v45 = vld [vmem:[%s0 + $0x50] sm:$0xff]
  %v46 = vld [vmem:[%s0 + $0x58] sm:$0x3]
  %v47 = vld [vmem:[%s2] sm:$0xff]
  %v48 = vld [vmem:[%s2 + $0x8] sm:$0xf]
  %v49 = vld [vmem:[%s2 + $0x10] sm:$0x1]
  %v50 = vld [vmem:[%s2 + $0x18] sm:$0x3]
  %v51 = vld [vmem:[%s2 + $0x20] sm:$0xff]
  %v52 = vld [vmem:[%s2 + $0x28] sm:$0xff]
  %v53 = vld [vmem:[%s2 + $0x30] sm:$0xf]
  %v54 = vld [vmem:[%s2 + $0x38] sm:$0xff]
  %v55 = vld [vmem:[%s2 + $0x40] sm:$0xff]
  %v56 = vld [vmem:[%s2 + $0x48] sm:$0xf]
  %v57 = vld [vmem:[%s2 + $0x50] sm:$0xff]
  %v58 = vld [vmem:[%s2 + $0x58] sm:$0x3]
  %v59 = vld [vmem:[%s2 + $0x60] sm:$0xff]
  %v60 = vld [vmem:[%s2 + $0x68] sm:$0x3]
  %v61 = vld [vmem:[%s2 + $0x70] sm:$0xff]
  %v62 = vld [vmem:[%s2 + $0x78] sm:$0x3]
  %v63 = vld [vmem:[%s2 + $0x80] sm:$0xff]
  %v64 = vld [vmem:[%s2 + $0x88] sm:$0xff]
  %v65 = vld [vmem:[%s2 + $0x90] sm:$0xff]
  %v66 = vld [vmem:[%s2 + $0x98] sm:$0xf]
  %68 = vset.pattern.permute.xlu0 0
  %69 = vperm.xlu0 %68, %v35
  %v70 = vpop.permute.xlu0 %69
  %73 = vset.pattern.permute.xlu0 0
  %74 = vperm.xlu0 %73, %v36
  %v75 = vpop.permute.xlu0 %74
  %78 = vset.pattern.permute.xlu0 0
  %79 = vperm.xlu0 %78, %v37
  %v80 = vpop.permute.xlu0 %79
  %83 = vset.pattern.permute.xlu0 0
  %84 = vperm.xlu0 %83, %v38
  %v85 = vpop.permute.xlu0 %84
  %88 = vset.pattern.permute.xlu0 0
  %89 = vperm.xlu0 %88, %v39
  %v90 = vpop.permute.xlu0 %89
  %93 = vset.pattern.permute.xlu0 0
  %94 = vperm.xlu0 %93, %v40
  %v95 = vpop.permute.xlu0 %94
  %98 = vset.pattern.permute.xlu0 0
  %99 = vperm.xlu0 %98, %v41
  %v100 = vpop.permute.xlu0 %99
  %103 = vset.pattern.permute.xlu0 0
  %104 = vperm.xlu0 %103, %v42
  %v105 = vpop.permute.xlu0 %104
  %108 = vset.pattern.permute.xlu0 0
  %109 = vperm.xlu0 %108, %v43
  %v110 = vpop.permute.xlu0 %109
  %113 = vset.pattern.permute.xlu0 0
  %114 = vperm.xlu0 %113, %v44
  %v115 = vpop.permute.xlu0 %114
  %v117 = vlaneseq
  %v118 = vshrl.u32 %v117, 7
  %v119 = vsub.s32 0, %v118
  %v120 = vrot.slane %v50, %v119
  %v121 = vmul.f32 %v70, %v120
  %v122 = vmul.f32 %v75, %v120
  %v123 = vmul.f32 %v80, %v120
  %v124 = vmul.f32 %v85, %v120
  %v125 = vmul.f32 %v90, %v120
  %v126 = vmul.f32 %v95, %v120
  %v127 = vmul.f32 %v100, %v120
  %v128 = vmul.f32 %v105, %v120
  %v129 = vmul.f32 %v110, %v120
  %v130 = vmul.f32 %v115, %v120
  %v131 = vlaneseq
  %v132 = vshrl.u32 %v131, 7
  %v133 = vsub.s32 1, %v132
  %v134 = vrot.slane %v50, %v133
  %v135 = vmul.f32 %v70, %v134
  %v136 = vmul.f32 %v75, %v134
  %v137 = vmul.f32 %v80, %v134
  %v138 = vmul.f32 %v85, %v134
  %v139 = vmul.f32 %v90, %v134
  %v140 = vmul.f32 %v95, %v134
  %v141 = vmul.f32 %v100, %v134
  %v142 = vmul.f32 %v105, %v134
  %v143 = vmul.f32 %v110, %v134
  %v144 = vmul.f32 %v115, %v134
  %vm145 = vcmask 654336
  %v147 = vsel %vm145, %v14, 0
  %v150 = vsel %vm145, %v15, 0
  %v153 = vsel %vm145, %v16, 0
  %v156 = vsel %vm145, %v17, 0
  %v159 = vsel %vm145, %v18, 0
  %v162 = vsel %vm145, %v19, 0
  %v165 = vsel %vm145, %v20, 0
  %v168 = vsel %vm145, %v21, 0
  %v171 = vsel %vm145, %v22, 0
  %v174 = vsel %vm145, %v23, 0
  %176 = vmatprep.subr.mxu0 0.0
  %177 = vmatpush1.msra.mxu0 %v135
  %178 = vmatprep.subr.mxu0 0.0
  %179 = vmatpush1.msra.mxu0 %v136
  %180 = vmatprep.subr.mxu0 0.0
  %181 = vmatpush1.msra.mxu0 %v137
  %182 = vmatprep.subr.mxu0 0.0
  %183 = vmatpush1.msra.mxu0 %v138
  %184 = vmatprep.subr.mxu0 0.0
  %185 = vmatpush1.msra.mxu0 %v139
  %186 = vmatprep.subr.mxu0 0.0
  %187 = vmatpush1.msra.mxu0 %v140
  %188 = vmatprep.subr.mxu0 0.0
  %189 = vmatpush1.msra.mxu0 %v141
  %190 = vmatprep.subr.mxu0 0.0
  %191 = vmatpush1.msra.mxu0 %v142
  %192 = vmatprep.subr.mxu0 0.0
  %193 = vmatpush1.msra.mxu0 %v143
  %194 = vmatprep.subr.mxu0 0.0
  %195 = vmatpush1.msra.mxu0 %v144
  %196 = vmatprep.subr.mxu0 0.0
  %197 = vmatpush1.msra.mxu0 0.0
  %198 = vmatprep.subr.mxu0 0.0
  %199 = vmatpush1.msra.mxu0 0.0
  %200 = vmatprep.subr.mxu0 0.0
  %201 = vmatpush1.msra.mxu0 0.0
  %202 = vmatprep.subr.mxu0 0.0
  %203 = vmatpush1.msra.mxu0 0.0
  %204 = vmatprep.subr.mxu0 0.0
  %205 = vmatpush1.msra.mxu0 0.0
  %206 = vmatprep.subr.mxu0 0.0
  %207 = vmatpush1.msra.mxu0 0.0
  %208 = vmatprep.subr.mxu0 0.0
  %209 = vmatpush1.msra.mxu0 0.0
  %210 = vmatprep.subr.mxu0 0.0
  %211 = vmatpush1.msra.mxu0 0.0
  %212 = vmatprep.subr.mxu0 0.0
  %213 = vmatpush1.msra.mxu0 0.0
  %214 = vmatprep.subr.mxu0 0.0
  %215 = vmatpush1.msra.mxu0 0.0
  %216 = vmatprep.subr.mxu0 0.0
  %217 = vmatpush1.msra.mxu0 0.0
  %218 = vmatprep.subr.mxu0 0.0
  %219 = vmatpush1.msra.mxu0 0.0
  %220 = vmatprep.subr.mxu0 0.0
  %221 = vmatpush1.msra.mxu0 0.0
  %222 = vmatprep.subr.mxu0 0.0
  %223 = vmatpush1.msra.mxu0 0.0
  %224 = vmatprep.subr.mxu0 0.0
  %225 = vmatpush1.msra.mxu0 0.0
  %226 = vmatprep.subr.mxu0 0.0
  %227 = vmatpush1.msra.mxu0 0.0
  %228 = vmatprep.subr.mxu0 0.0
  %229 = vmatpush1.msra.mxu0 0.0
  %230 = vmatprep.subr.mxu0 0.0
  %231 = vmatpush1.msra.mxu0 0.0
  %232 = vmatprep.subr.mxu0 0.0
  %233 = vmatpush1.msra.mxu0 0.0
  %234 = vmatprep.subr.mxu0 0.0
  %235 = vmatpush1.msra.mxu0 0.0
  %236 = vmatprep.subr.mxu0 0.0
  %237 = vmatpush1.msra.mxu0 0.0
  %238 = vmatprep.subr.mxu0 0.0
  %239 = vmatpush1.msra.mxu0 0.0
  %240 = vmatprep.mubr.f32.mxu0 0.0
  %241 = vmatmul.mubr.f32.gmra.mrb[0].mxu0 %v147
  %v242 = vpop.f32.mrb[0].mxu0
  %v243 = vadd.f32 0.0, %v242
  %v244 = vpop.f32.mrb[0].mxu0
  %245 = vmatprep.mubr.f32.mxu0 0.0
  %246 = vmatmul.mubr.f32.gmra.mrb[0].mxu0 %v150
  %v247 = vpop.f32.mrb[0].mxu0
  %v248 = vadd.f32 0.0, %v247
  %v249 = vpop.f32.mrb[0].mxu0
  %250 = vmatprep.mubr.f32.mxu0 0.0
  %251 = vmatmul.mubr.f32.gmra.mrb[0].mxu0 %v153
  %v252 = vpop.f32.mrb[0].mxu0
  %v253 = vadd.f32 0.0, %v252
  %v254 = vpop.f32.mrb[0].mxu0
  %255 = vmatprep.mubr.f32.mxu0 0.0
  %256 = vmatmul.mubr.f32.gmra.mrb[0].mxu0 %v156
  %v257 = vpop.f32.mrb[0].mxu0
  %v258 = vadd.f32 0.0, %v257
  %v259 = vpop.f32.mrb[0].mxu0
  %260 = vmatprep.mubr.f32.mxu0 0.0
  %261 = vmatmul.mubr.f32.gmra.mrb[0].mxu0 %v159
  %v262 = vpop.f32.mrb[0].mxu0
  %v263 = vadd.f32 0.0, %v262
  %v264 = vpop.f32.mrb[0].mxu0
  %265 = vmatprep.mubr.f32.mxu0 0.0
  %266 = vmatmul.mubr.f32.gmra.mrb[0].mxu0 %v162
  %v267 = vpop.f32.mrb[0].mxu0
  %v268 = vadd.f32 0.0, %v267
  %v269 = vpop.f32.mrb[0].mxu0
  %270 = vmatprep.mubr.f32.mxu0 0.0
  %271 = vmatmul.mubr.f32.gmra.mrb[0].mxu0 %v165
  %v272 = vpop.f32.mrb[0].mxu0
  %v273 = vadd.f32 0.0, %v272
  %v274 = vpop.f32.mrb[0].mxu0
  %275 = vmatprep.mubr.f32.mxu0 0.0
  %276 = vmatmul.mubr.f32.gmra.mrb[0].mxu0 %v168
  %v277 = vpop.f32.mrb[0].mxu0
  %v278 = vadd.f32 0.0, %v277
  %v279 = vpop.f32.mrb[0].mxu0
  %280 = vmatprep.mubr.f32.mxu0 0.0
  %281 = vmatmul.mubr.f32.gmra.mrb[0].mxu0 %v171
  %v282 = vpop.f32.mrb[0].mxu0
  %v283 = vadd.f32 0.0, %v282
  %v284 = vpop.f32.mrb[0].mxu0
  %285 = vmatprep.mubr.f32.mxu0 0.0
  %286 = vmatmul.mubr.f32.gmra.mrb[0].mxu0 %v174
  %v287 = vpop.f32.mrb[0].mxu0
  %v288 = vadd.f32 0.0, %v287
  %v289 = vpop.f32.mrb[0].mxu0
  %290 = vdwg.mxu0
  %v291 = vadd.f32 %v121, %v243
  %v292 = vadd.f32 %v122, %v248
  %v293 = vadd.f32 %v123, %v253
  %v294 = vadd.f32 %v124, %v258
  %v295 = vadd.f32 %v125, %v263
  %v296 = vadd.f32 %v126, %v268
  %v297 = vadd.f32 %v127, %v273
  %v298 = vadd.f32 %v128, %v278
  %v299 = vadd.f32 %v129, %v283
  %v300 = vadd.f32 %v130, %v288
  %v301 = vlaneseq
  %v302 = vshrl.u32 %v301, 7
  %v303 = vsub.s32 0, %v302
  %v304 = vrot.slane %v47, %v303
  %v305 = vadd.f32 %v291, %v304
  %v306 = vadd.f32 %v292, %v304
  %v307 = vadd.f32 %v293, %v304
  %v308 = vadd.f32 %v294, %v304
  %v309 = vadd.f32 %v295, %v304
  %v310 = vadd.f32 %v296, %v304
  %v311 = vadd.f32 %v297, %v304
  %v312 = vadd.f32 %v298, %v304
  %v313 = vadd.f32 %v299, %v304
  %v314 = vadd.f32 %v300, %v304
  %v315 = vmul.f32 %v305, %v305
  %v316 = vmul.f32 %v306, %v306
  %v317 = vmul.f32 %v307, %v307
  %v318 = vmul.f32 %v308, %v308
  %v319 = vmul.f32 %v309, %v309
  %v320 = vmul.f32 %v310, %v310
  %v321 = vmul.f32 %v311, %v311
  %v322 = vmul.f32 %v312, %v312
  %v323 = vmul.f32 %v313, %v313
  %v324 = vmul.f32 %v314, %v314
  %335 = vrot.lane.b32.xlu0 %v315, 10
  %v336 = vpop.permute.xlu0 %335
  %337 = vrot.lane.b32.xlu0 %v316, 10
  %v338 = vpop.permute.xlu0 %337
  %339 = vrot.lane.b32.xlu0 %v317, 10
  %v340 = vpop.permute.xlu0 %339
  %341 = vrot.lane.b32.xlu0 %v318, 10
  %v342 = vpop.permute.xlu0 %341
  %343 = vrot.lane.b32.xlu0 %v319, 10
  %v344 = vpop.permute.xlu0 %343
  %345 = vrot.lane.b32.xlu0 %v320, 10
  %v346 = vpop.permute.xlu0 %345
  %347 = vrot.lane.b32.xlu0 %v321, 10
  %v348 = vpop.permute.xlu0 %347
  %349 = vrot.lane.b32.xlu0 %v322, 10
  %v350 = vpop.permute.xlu0 %349
  %351 = vrot.lane.b32.xlu0 %v323, 10
  %v352 = vpop.permute.xlu0 %351
  %353 = vrot.lane.b32.xlu0 %v324, 10
  %v354 = vpop.permute.xlu0 %353
  %vm365 = vcmask 80896
  %v366 = vsel %vm365, %v305, %v336
  %v367 = vsel %vm365, %v306, %v338
  %v368 = vsel %vm365, %v307, %v340
  %v369 = vsel %vm365, %v308, %v342
  %v370 = vsel %vm365, %v309, %v344
  %v371 = vsel %vm365, %v310, %v346
  %v372 = vsel %vm365, %v311, %v348
  %v373 = vsel %vm365, %v312, %v350
  %v374 = vsel %vm365, %v313, %v352
  %v375 = vsel %vm365, %v314, %v354
  %v377 = vsel %vm145, %v25, 0
  %v380 = vsel %vm145, %v26, 0
  %v383 = vsel %vm145, %v27, 0
  %v386 = vsel %vm145, %v28, 0
  %v389 = vsel %vm145, %v29, 0
  %v392 = vsel %vm145, %v30, 0
  %v395 = vsel %vm145, %v31, 0
  %v398 = vsel %vm145, %v32, 0
  %v401 = vsel %vm145, %v33, 0
  %v404 = vsel %vm145, %v34, 0
  %406 = vmatprep.subr.mxu0 0.0
  %407 = vmatpush1.msra.mxu0 %v366
  %408 = vmatprep.subr.mxu0 0.0
  %409 = vmatpush1.msra.mxu0 %v367
  %410 = vmatprep.subr.mxu0 0.0
  %411 = vmatpush1.msra.mxu0 %v368
  %412 = vmatprep.subr.mxu0 0.0
  %413 = vmatpush1.msra.mxu0 %v369
  %414 = vmatprep.subr.mxu0 0.0
  %415 = vmatpush1.msra.mxu0 %v370
  %416 = vmatprep.subr.mxu0 0.0
  %417 = vmatpush1.msra.mxu0 %v371
  %418 = vmatprep.subr.mxu0 0.0
  %419 = vmatpush1.msra.mxu0 %v372
  %420 = vmatprep.subr.mxu0 0.0
  %421 = vmatpush1.msra.mxu0 %v373
  %422 = vmatprep.subr.mxu0 0.0
  %423 = vmatpush1.msra.mxu0 %v374
  %424 = vmatprep.subr.mxu0 0.0
  %425 = vmatpush1.msra.mxu0 %v375
  %426 = vmatprep.subr.mxu0 0.0
  %427 = vmatpush1.msra.mxu0 0.0
  %428 = vmatprep.subr.mxu0 0.0
  %429 = vmatpush1.msra.mxu0 0.0
  %430 = vmatprep.subr.mxu0 0.0
  %431 = vmatpush1.msra.mxu0 0.0
  %432 = vmatprep.subr.mxu0 0.0
  %433 = vmatpush1.msra.mxu0 0.0
  %434 = vmatprep.subr.mxu0 0.0
  %435 = vmatpush1.msra.mxu0 0.0
  %436 = vmatprep.subr.mxu0 0.0
  %437 = vmatpush1.msra.mxu0 0.0
  %438 = vmatprep.subr.mxu0 0.0
  %439 = vmatpush1.msra.mxu0 0.0
  %440 = vmatprep.subr.mxu0 0.0
  %441 = vmatpush1.msra.mxu0 0.0
  %442 = vmatprep.subr.mxu0 0.0
  %443 = vmatpush1.msra.mxu0 0.0
  %444 = vmatprep.subr.mxu0 0.0
  %445 = vmatpush1.msra.mxu0 0.0
  %446 = vmatprep.subr.mxu0 0.0
  %447 = vmatpush1.msra.mxu0 0.0
  %448 = vmatprep.subr.mxu0 0.0
  %449 = vmatpush1.msra.mxu0 0.0
  %450 = vmatprep.subr.mxu0 0.0
  %451 = vmatpush1.msra.mxu0 0.0
  %452 = vmatprep.subr.mxu0 0.0
  %453 = vmatpush1.msra.mxu0 0.0
  %454 = vmatprep.subr.mxu0 0.0
  %455 = vmatpush1.msra.mxu0 0.0
  %456 = vmatprep.subr.mxu0 0.0
  %457 = vmatpush1.msra.mxu0 0.0
  %458 = vmatprep.subr.mxu0 0.0
  %459 = vmatpush1.msra.mxu0 0.0
  %460 = vmatprep.subr.mxu0 0.0
  %461 = vmatpush1.msra.mxu0 0.0
  %462 = vmatprep.subr.mxu0 0.0
  %463 = vmatpush1.msra.mxu0 0.0
  %464 = vmatprep.subr.mxu0 0.0
  %465 = vmatpush1.msra.mxu0 0.0
  %466 = vmatprep.subr.mxu0 0.0
  %467 = vmatpush1.msra.mxu0 0.0
  %468 = vmatprep.subr.mxu0 0.0
  %469 = vmatpush1.msra.mxu0 0.0
  %470 = vmatprep.mubr.f32.mxu0 0.0
  %471 = vmatmul.mubr.f32.gmra.mrb[0].mxu0 %v377
  %v472 = vpop.f32.mrb[0].mxu0
  %v473 = vadd.f32 0.0, %v472
  %v474 = vpop.f32.mrb[0].mxu0
  %475 = vmatprep.mubr.f32.mxu0 0.0
  %476 = vmatmul.mubr.f32.gmra.mrb[0].mxu0 %v380
  %v477 = vpop.f32.mrb[0].mxu0
  %v478 = vadd.f32 0.0, %v477
  %v479 = vpop.f32.mrb[0].mxu0
  %480 = vmatprep.mubr.f32.mxu0 0.0
  %481 = vmatmul.mubr.f32.gmra.mrb[0].mxu0 %v383
  %v482 = vpop.f32.mrb[0].mxu0
  %v483 = vadd.f32 0.0, %v482
  %v484 = vpop.f32.mrb[0].mxu0
  %485 = vmatprep.mubr.f32.mxu0 0.0
  %486 = vmatmul.mubr.f32.gmra.mrb[0].mxu0 %v386
  %v487 = vpop.f32.mrb[0].mxu0
  %v488 = vadd.f32 0.0, %v487
  %v489 = vpop.f32.mrb[0].mxu0
  %490 = vmatprep.mubr.f32.mxu0 0.0
  %491 = vmatmul.mubr.f32.gmra.mrb[0].mxu0 %v389
  %v492 = vpop.f32.mrb[0].mxu0
  %v493 = vadd.f32 0.0, %v492
  %v494 = vpop.f32.mrb[0].mxu0
  %495 = vmatprep.mubr.f32.mxu0 0.0
  %496 = vmatmul.mubr.f32.gmra.mrb[0].mxu0 %v392
  %v497 = vpop.f32.mrb[0].mxu0
  %v498 = vadd.f32 0.0, %v497
  %v499 = vpop.f32.mrb[0].mxu0
  %500 = vmatprep.mubr.f32.mxu0 0.0
  %501 = vmatmul.mubr.f32.gmra.mrb[0].mxu0 %v395
  %v502 = vpop.f32.mrb[0].mxu0
  %v503 = vadd.f32 0.0, %v502
  %v504 = vpop.f32.mrb[0].mxu0
  %505 = vmatprep.mubr.f32.mxu0 0.0
  %506 = vmatmul.mubr.f32.gmra.mrb[0].mxu0 %v398
  %v507 = vpop.f32.mrb[0].mxu0
  %v508 = vadd.f32 0.0, %v507
  %v509 = vpop.f32.mrb[0].mxu0
  %510 = vmatprep.mubr.f32.mxu0 0.0
  %511 = vmatmul.mubr.f32.gmra.mrb[0].mxu0 %v401
  %v512 = vpop.f32.mrb[0].mxu0
  %v513 = vadd.f32 0.0, %v512
  %v514 = vpop.f32.mrb[0].mxu0
  %515 = vmatprep.mubr.f32.mxu0 0.0
  %516 = vmatmul.mubr.f32.gmra.mrb[0].mxu0 %v404
  %v517 = vpop.f32.mrb[0].mxu0
  %v518 = vadd.f32 0.0, %v517
  %v519 = vpop.f32.mrb[0].mxu0
  %520 = vdwg.mxu0
  %v521 = vmul.f32 %v473, %v473
  %v522 = vmul.f32 %v478, %v478
  %v523 = vmul.f32 %v483, %v483
  %v524 = vmul.f32 %v488, %v488
  %v525 = vmul.f32 %v493, %v493
  %v526 = vmul.f32 %v498, %v498
  %v527 = vmul.f32 %v503, %v503
  %v528 = vmul.f32 %v508, %v508
  %v529 = vmul.f32 %v513, %v513
  %v530 = vmul.f32 %v518, %v518
  %v531 = vlaneseq
  %v532 = vshrl.u32 %v531, 7
  %v533 = vsub.s32 4, %v532
  %v534 = vrot.slane %v47, %v533
  %v535 = vmul.f32 %v521, %v534
  %v536 = vmul.f32 %v522, %v534
  %v537 = vmul.f32 %v523, %v534
  %v538 = vmul.f32 %v524, %v534
  %v539 = vmul.f32 %v525, %v534
  %v540 = vmul.f32 %v526, %v534
  %v541 = vmul.f32 %v527, %v534
  %v542 = vmul.f32 %v528, %v534
  %v543 = vmul.f32 %v529, %v534
  %v544 = vmul.f32 %v530, %v534
  %v545 = vsub.f32 2.0, %v47
  %v546 = vlaneseq
  %v547 = vshrl.u32 %v546, 7
  %v548 = vsub.s32 4, %v547
  %v549 = vrot.slane %v545, %v548
  %v550 = vmul.f32 %v535, %v549
  %v551 = vmul.f32 %v536, %v549
  %v552 = vmul.f32 %v537, %v549
  %v553 = vmul.f32 %v538, %v549
  %v554 = vmul.f32 %v539, %v549
  %v555 = vmul.f32 %v540, %v549
  %v556 = vmul.f32 %v541, %v549
  %v557 = vmul.f32 %v542, %v549
  %v558 = vmul.f32 %v543, %v549
  %v559 = vmul.f32 %v544, %v549
  %570 = vrot.lane.b32.xlu0 %v550, 10
  %v571 = vpop.permute.xlu0 %570
  %572 = vrot.lane.b32.xlu0 %v551, 10
  %v573 = vpop.permute.xlu0 %572
  %574 = vrot.lane.b32.xlu0 %v552, 10
  %v575 = vpop.permute.xlu0 %574
  %576 = vrot.lane.b32.xlu0 %v553, 10
  %v577 = vpop.permute.xlu0 %576
  %578 = vrot.lane.b32.xlu0 %v554, 10
  %v579 = vpop.permute.xlu0 %578
  %580 = vrot.lane.b32.xlu0 %v555, 10
  %v581 = vpop.permute.xlu0 %580
  %582 = vrot.lane.b32.xlu0 %v556, 10
  %v583 = vpop.permute.xlu0 %582
  %584 = vrot.lane.b32.xlu0 %v557, 10
  %v585 = vpop.permute.xlu0 %584
  %586 = vrot.lane.b32.xlu0 %v558, 10
  %v587 = vpop.permute.xlu0 %586
  %588 = vrot.lane.b32.xlu0 %v559, 10
  %v589 = vpop.permute.xlu0 %588
  %v600 = vsub.f32 %v473, %v571
  %v601 = vsub.f32 %v478, %v573
  %v602 = vsub.f32 %v483, %v575
  %v603 = vsub.f32 %v488, %v577
  %v604 = vsub.f32 %v493, %v579
  %v605 = vsub.f32 %v498, %v581
  %v606 = vsub.f32 %v503, %v583
  %v607 = vsub.f32 %v508, %v585
  %v608 = vsub.f32 %v513, %v587
  %v609 = vsub.f32 %v518, %v589
  %v610 = vmul.f32 %v473, %v534
  %v611 = vmul.f32 %v478, %v534
  %v612 = vmul.f32 %v483, %v534
  %v613 = vmul.f32 %v488, %v534
  %v614 = vmul.f32 %v493, %v534
  %v615 = vmul.f32 %v498, %v534
  %v616 = vmul.f32 %v503, %v534
  %v617 = vmul.f32 %v508, %v534
  %v618 = vmul.f32 %v513, %v534
  %v619 = vmul.f32 %v518, %v534
  %v620 = vsub.f32 %v305, %v610
  %v621 = vsub.f32 %v306, %v611
  %v622 = vsub.f32 %v307, %v612
  %v623 = vsub.f32 %v308, %v613
  %v624 = vsub.f32 %v309, %v614
  %v625 = vsub.f32 %v310, %v615
  %v626 = vsub.f32 %v311, %v616
  %v627 = vsub.f32 %v312, %v617
  %v628 = vsub.f32 %v313, %v618
  %v629 = vsub.f32 %v314, %v619
  %v630 = vadd.f32 %v600, 1e-05
  %v631 = vadd.f32 %v601, 1e-05
  %v632 = vadd.f32 %v602, 1e-05
  %v633 = vadd.f32 %v603, 1e-05
  %v634 = vadd.f32 %v604, 1e-05
  %v635 = vadd.f32 %v605, 1e-05
  %v636 = vadd.f32 %v606, 1e-05
  %v637 = vadd.f32 %v607, 1e-05
  %v638 = vadd.f32 %v608, 1e-05
  %v639 = vadd.f32 %v609, 1e-05
  %v640 = vrsqrt.pop %v630
  %v641 = vrsqrt.pop %v631
  %v642 = vrsqrt.pop %v632
  %v643 = vrsqrt.pop %v633
  %v644 = vrsqrt.pop %v634
  %v645 = vrsqrt.pop %v635
  %v646 = vrsqrt.pop %v636
  %v647 = vrsqrt.pop %v637
  %v648 = vrsqrt.pop %v638
  %v649 = vrsqrt.pop %v639
  %660 = vrot.lane.b32.xlu0 %v640, 118
  %v661 = vpop.permute.xlu0 %660
  %662 = vrot.lane.b32.xlu0 %v641, 118
  %v663 = vpop.permute.xlu0 %662
  %664 = vrot.lane.b32.xlu0 %v642, 118
  %v665 = vpop.permute.xlu0 %664
  %666 = vrot.lane.b32.xlu0 %v643, 118
  %v667 = vpop.permute.xlu0 %666
  %668 = vrot.lane.b32.xlu0 %v644, 118
  %v669 = vpop.permute.xlu0 %668
  %670 = vrot.lane.b32.xlu0 %v645, 118
  %v671 = vpop.permute.xlu0 %670
  %672 = vrot.lane.b32.xlu0 %v646, 118
  %v673 = vpop.permute.xlu0 %672
  %674 = vrot.lane.b32.xlu0 %v647, 118
  %v675 = vpop.permute.xlu0 %674
  %676 = vrot.lane.b32.xlu0 %v648, 118
  %v677 = vpop.permute.xlu0 %676
  %678 = vrot.lane.b32.xlu0 %v649, 118
  %v679 = vpop.permute.xlu0 %678
  %v690 = vmul.f32 %v620, %v661
  %v691 = vmul.f32 %v621, %v663
  %v692 = vmul.f32 %v622, %v665
  %v693 = vmul.f32 %v623, %v667
  %v694 = vmul.f32 %v624, %v669
  %v695 = vmul.f32 %v625, %v671
  %v696 = vmul.f32 %v626, %v673
  %v697 = vmul.f32 %v627, %v675
  %v698 = vmul.f32 %v628, %v677
  %v699 = vmul.f32 %v629, %v679
  %v700 = vlaneseq
  %v701 = vshrl.u32 %v700, 7
  %v702 = vsub.s32 2, %v701
  %v703 = vrot.slane %v47, %v702
  %v704 = vmul.f32 %v690, %v703
  %v705 = vmul.f32 %v691, %v703
  %v706 = vmul.f32 %v692, %v703
  %v707 = vmul.f32 %v693, %v703
  %v708 = vmul.f32 %v694, %v703
  %v709 = vmul.f32 %v695, %v703
  %v710 = vmul.f32 %v696, %v703
  %v711 = vmul.f32 %v697, %v703
  %v712 = vmul.f32 %v698, %v703
  %v713 = vmul.f32 %v699, %v703
  %v714 = vlaneseq
  %v715 = vshrl.u32 %v714, 7
  %v716 = vsub.s32 3, %v715
  %v717 = vrot.slane %v47, %v716
  %v718 = vadd.f32 %v704, %v717
  %v719 = vadd.f32 %v705, %v717
  %v720 = vadd.f32 %v706, %v717
  %v721 = vadd.f32 %v707, %v717
  %v722 = vadd.f32 %v708, %v717
  %v723 = vadd.f32 %v709, %v717
  %v724 = vadd.f32 %v710, %v717
  %v725 = vadd.f32 %v711, %v717
  %v726 = vadd.f32 %v712, %v717
  %v727 = vadd.f32 %v713, %v717
  %v728 = vmax.f32 %v718, 0.0
  %v729 = vmax.f32 %v719, 0.0
  %v730 = vmax.f32 %v720, 0.0
  %v731 = vmax.f32 %v721, 0.0
  %v732 = vmax.f32 %v722, 0.0
  %v733 = vmax.f32 %v723, 0.0
  %v734 = vmax.f32 %v724, 0.0
  %v735 = vmax.f32 %v725, 0.0
  %v736 = vmax.f32 %v726, 0.0
  %v737 = vmax.f32 %v727, 0.0
  %738 = vmatprep.subr.mxu0 0.0
  %739 = vmatpush1.msra.mxu0 %v728
  %740 = vmatprep.subr.mxu0 0.0
  %741 = vmatpush1.msra.mxu0 %v729
  %742 = vmatprep.subr.mxu0 0.0
  %743 = vmatpush1.msra.mxu0 %v730
  %744 = vmatprep.subr.mxu0 0.0
  %745 = vmatpush1.msra.mxu0 %v731
  %746 = vmatprep.subr.mxu0 0.0
  %747 = vmatpush1.msra.mxu0 %v732
  %748 = vmatprep.subr.mxu0 0.0
  %749 = vmatpush1.msra.mxu0 %v733
  %750 = vmatprep.subr.mxu0 0.0
  %751 = vmatpush1.msra.mxu0 %v734
  %752 = vmatprep.subr.mxu0 0.0
  %753 = vmatpush1.msra.mxu0 %v735
  %754 = vmatprep.subr.mxu0 0.0
  %755 = vmatpush1.msra.mxu0 %v736
  %756 = vmatprep.subr.mxu0 0.0
  %757 = vmatpush1.msra.mxu0 %v737
  %758 = vmatprep.subr.mxu0 0.0
  %759 = vmatpush1.msra.mxu0 0.0
  %760 = vmatprep.subr.mxu0 0.0
  %761 = vmatpush1.msra.mxu0 0.0
  %762 = vmatprep.subr.mxu0 0.0
  %763 = vmatpush1.msra.mxu0 0.0
  %764 = vmatprep.subr.mxu0 0.0
  %765 = vmatpush1.msra.mxu0 0.0
  %766 = vmatprep.subr.mxu0 0.0
  %767 = vmatpush1.msra.mxu0 0.0
  %768 = vmatprep.subr.mxu0 0.0
  %769 = vmatpush1.msra.mxu0 0.0
  %770 = vmatprep.subr.mxu0 0.0
  %771 = vmatpush1.msra.mxu0 0.0
  %772 = vmatprep.subr.mxu0 0.0
  %773 = vmatpush1.msra.mxu0 0.0
  %774 = vmatprep.subr.mxu0 0.0
  %775 = vmatpush1.msra.mxu0 0.0
  %776 = vmatprep.subr.mxu0 0.0
  %777 = vmatpush1.msra.mxu0 0.0
  %778 = vmatprep.subr.mxu0 0.0
  %779 = vmatpush1.msra.mxu0 0.0
  %780 = vmatprep.subr.mxu0 0.0
  %781 = vmatpush1.msra.mxu0 0.0
  %782 = vmatprep.subr.mxu0 0.0
  %783 = vmatpush1.msra.mxu0 0.0
  %784 = vmatprep.subr.mxu0 0.0
  %785 = vmatpush1.msra.mxu0 0.0
  %786 = vmatprep.subr.mxu0 0.0
  %787 = vmatpush1.msra.mxu0 0.0
  %788 = vmatprep.subr.mxu0 0.0
  %789 = vmatpush1.msra.mxu0 0.0
  %790 = vmatprep.subr.mxu0 0.0
  %791 = vmatpush1.msra.mxu0 0.0
  %792 = vmatprep.subr.mxu0 0.0
  %793 = vmatpush1.msra.mxu0 0.0
  %794 = vmatprep.subr.mxu0 0.0
  %795 = vmatpush1.msra.mxu0 0.0
  %796 = vmatprep.subr.mxu0 0.0
  %797 = vmatpush1.msra.mxu0 0.0
  %798 = vmatprep.subr.mxu0 0.0
  %799 = vmatpush1.msra.mxu0 0.0
  %800 = vmatprep.subr.mxu0 0.0
  %801 = vmatpush1.msra.mxu0 0.0
  %802 = vmatprep.mubr.f32.mxu0 0.0
  %803 = vmatmul.mubr.f32.gmra.mrb[0].mxu0 %v147
  %v804 = vpop.f32.mrb[0].mxu0
  %v805 = vadd.f32 0.0, %v804
  %v806 = vpop.f32.mrb[0].mxu0
  %807 = vmatprep.mubr.f32.mxu0 0.0
  %808 = vmatmul.mubr.f32.gmra.mrb[0].mxu0 %v150
  %v809 = vpop.f32.mrb[0].mxu0
  %v810 = vadd.f32 0.0, %v809
  %v811 = vpop.f32.mrb[0].mxu0
  %812 = vmatprep.mubr.f32.mxu0 0.0
  %813 = vmatmul.mubr.f32.gmra.mrb[0].mxu0 %v153
  %v814 = vpop.f32.mrb[0].mxu0
  %v815 = vadd.f32 0.0, %v814
  %v816 = vpop.f32.mrb[0].mxu0
  %817 = vmatprep.mubr.f32.mxu0 0.0
  %818 = vmatmul.mubr.f32.gmra.mrb[0].mxu0 %v156
  %v819 = vpop.f32.mrb[0].mxu0
  %v820 = vadd.f32 0.0, %v819
  %v821 = vpop.f32.mrb[0].mxu0
  %822 = vmatprep.mubr.f32.mxu0 0.0
  %823 = vmatmul.mubr.f32.gmra.mrb[0].mxu0 %v159
  %v824 = vpop.f32.mrb[0].mxu0
  %v825 = vadd.f32 0.0, %v824
  %v826 = vpop.f32.mrb[0].mxu0
  %827 = vmatprep.mubr.f32.mxu0 0.0
  %828 = vmatmul.mubr.f32.gmra.mrb[0].mxu0 %v162
  %v829 = vpop.f32.mrb[0].mxu0
  %v830 = vadd.f32 0.0, %v829
  %v831 = vpop.f32.mrb[0].mxu0
  %832 = vmatprep.mubr.f32.mxu0 0.0
  %833 = vmatmul.mubr.f32.gmra.mrb[0].mxu0 %v165
  %v834 = vpop.f32.mrb[0].mxu0
  %v835 = vadd.f32 0.0, %v834
  %v836 = vpop.f32.mrb[0].mxu0
  %837 = vmatprep.mubr.f32.mxu0 0.0
  %838 = vmatmul.mubr.f32.gmra.mrb[0].mxu0 %v168
  %v839 = vpop.f32.mrb[0].mxu0
  %v840 = vadd.f32 0.0, %v839
  %v841 = vpop.f32.mrb[0].mxu0
  %842 = vmatprep.mubr.f32.mxu0 0.0
  %843 = vmatmul.mubr.f32.gmra.mrb[0].mxu0 %v171
  %v844 = vpop.f32.mrb[0].mxu0
  %v845 = vadd.f32 0.0, %v844
  %v846 = vpop.f32.mrb[0].mxu0
  %847 = vmatprep.mubr.f32.mxu0 0.0
  %848 = vmatmul.mubr.f32.gmra.mrb[0].mxu0 %v174
  %v849 = vpop.f32.mrb[0].mxu0
  %v850 = vadd.f32 0.0, %v849
  %v851 = vpop.f32.mrb[0].mxu0
  %852 = vdwg.mxu0
  %863 = vrot.lane.b32.xlu0 %v805, 10
  %v864 = vpop.permute.xlu0 %863
  %865 = vrot.lane.b32.xlu0 %v810, 10
  %v866 = vpop.permute.xlu0 %865
  %867 = vrot.lane.b32.xlu0 %v815, 10
  %v868 = vpop.permute.xlu0 %867
  %869 = vrot.lane.b32.xlu0 %v820, 10
  %v870 = vpop.permute.xlu0 %869
  %871 = vrot.lane.b32.xlu0 %v825, 10
  %v872 = vpop.permute.xlu0 %871
  %873 = vrot.lane.b32.xlu0 %v830, 10
  %v874 = vpop.permute.xlu0 %873
  %875 = vrot.lane.b32.xlu0 %v835, 10
  %v876 = vpop.permute.xlu0 %875
  %877 = vrot.lane.b32.xlu0 %v840, 10
  %v878 = vpop.permute.xlu0 %877
  %879 = vrot.lane.b32.xlu0 %v845, 10
  %v880 = vpop.permute.xlu0 %879
  %881 = vrot.lane.b32.xlu0 %v850, 10
  %v882 = vpop.permute.xlu0 %881
  %v893 = vsel %vm365, %v728, %v864
  %v894 = vsel %vm365, %v729, %v866
  %v895 = vsel %vm365, %v730, %v868
  %v896 = vsel %vm365, %v731, %v870
  %v897 = vsel %vm365, %v732, %v872
  %v898 = vsel %vm365, %v733, %v874
  %v899 = vsel %vm365, %v734, %v876
  %v900 = vsel %vm365, %v735, %v878
  %v901 = vsel %vm365, %v736, %v880
  %v902 = vsel %vm365, %v737, %v882
  %v903 = vlaneseq
  %v904 = vshrl.u32 %v903, 7
  %v905 = vsub.s32 1, %v904
  %v906 = vrot.slane %v47, %v905
  %vm907 = vcmask 162816
  %v909 = vsel %vm907, %v893, 0
  %v912 = vsel %vm907, %v894, 0
  %v915 = vsel %vm907, %v895, 0
  %v918 = vsel %vm907, %v896, 0
  %v921 = vsel %vm907, %v897, 0
  %v924 = vsel %vm907, %v898, 0
  %v927 = vsel %vm907, %v899, 0
  %v930 = vsel %vm907, %v900, 0
  %v933 = vsel %vm907, %v901, 0
  %v936 = vsel %vm907, %v902, 0
  %vm938 = vcmask 1043456
  %v940 = vsel %vm938, %v53, 0
  %942 = vmatprep.subr.mxu0 0.0
  %943 = vmatpush1.msra.mxu0 %v51
  %944 = vmatprep.subr.mxu0 0.0
  %945 = vmatpush1.msra.mxu0 %v52
  %946 = vmatprep.subr.mxu0 0.0
  %947 = vmatpush1.msra.mxu0 %v940
  %948 = vmatprep.subr.mxu0 0.0
  %949 = vmatpush1.msra.mxu0 0.0
  %950 = vmatprep.subr.mxu0 0.0
  %951 = vmatpush1.msra.mxu0 0.0
  %952 = vmatprep.subr.mxu0 0.0
  %953 = vmatpush1.msra.mxu0 0.0
  %954 = vmatprep.subr.mxu0 0.0
  %955 = vmatpush1.msra.mxu0 0.0
  %956 = vmatprep.subr.mxu0 0.0
  %957 = vmatpush1.msra.mxu0 0.0
  %958 = vmatprep.subr.mxu0 0.0
  %959 = vmatpush1.msra.mxu0 0.0
  %960 = vmatprep.subr.mxu0 0.0
  %961 = vmatpush1.msra.mxu0 0.0
  %962 = vmatprep.subr.mxu0 0.0
  %963 = vmatpush1.msra.mxu0 0.0
  %964 = vmatprep.subr.mxu0 0.0
  %965 = vmatpush1.msra.mxu0 0.0
  %966 = vmatprep.subr.mxu0 0.0
  %967 = vmatpush1.msra.mxu0 0.0
  %968 = vmatprep.subr.mxu0 0.0
  %969 = vmatpush1.msra.mxu0 0.0
  %970 = vmatprep.subr.mxu0 0.0
  %971 = vmatpush1.msra.mxu0 0.0
  %972 = vmatprep.subr.mxu0 0.0
  %973 = vmatpush1.msra.mxu0 0.0
  %974 = vmatprep.subr.mxu0 0.0
  %975 = vmatpush1.msra.mxu0 0.0
  %976 = vmatprep.subr.mxu0 0.0
  %977 = vmatpush1.msra.mxu0 0.0
  %978 = vmatprep.subr.mxu0 0.0
  %979 = vmatpush1.msra.mxu0 0.0
  %980 = vmatprep.subr.mxu0 0.0
  %981 = vmatpush1.msra.mxu0 0.0
  %982 = vmatprep.subr.mxu0 0.0
  %983 = vmatpush1.msra.mxu0 0.0
  %984 = vmatprep.subr.mxu0 0.0
  %985 = vmatpush1.msra.mxu0 0.0
  %986 = vmatprep.subr.mxu0 0.0
  %987 = vmatpush1.msra.mxu0 0.0
  %988 = vmatprep.subr.mxu0 0.0
  %989 = vmatpush1.msra.mxu0 0.0
  %990 = vmatprep.subr.mxu0 0.0
  %991 = vmatpush1.msra.mxu0 0.0
  %992 = vmatprep.subr.mxu0 0.0
  %993 = vmatpush1.msra.mxu0 0.0
  %994 = vmatprep.subr.mxu0 0.0
  %995 = vmatpush1.msra.mxu0 0.0
  %996 = vmatprep.subr.mxu0 0.0
  %997 = vmatpush1.msra.mxu0 0.0
  %998 = vmatprep.subr.mxu0 0.0
  %999 = vmatpush1.msra.mxu0 0.0
  %1000 = vmatprep.subr.mxu0 0.0
  %1001 = vmatpush1.msra.mxu0 0.0
  %1002 = vmatprep.subr.mxu0 0.0
  %1003 = vmatpush1.msra.mxu0 0.0
  %1004 = vmatprep.subr.mxu0 0.0
  %1005 = vmatpush1.msra.mxu0 0.0
  %1006 = vmatprep.mubr.f32.mxu0 0.0
  %1007 = vmatmul.mubr.f32.gmra.mrb[0].mxu0 %v909
  %v1008 = vpop.f32.mrb[0].mxu0
  %v1009 = vadd.f32 %v906, %v1008
  %v1010 = vpop.f32.mrb[0].mxu0
  %1011 = vmatprep.mubr.f32.mxu0 0.0
  %1012 = vmatmul.mubr.f32.gmra.mrb[0].mxu0 %v912
  %v1013 = vpop.f32.mrb[0].mxu0
  %v1014 = vadd.f32 %v906, %v1013
  %v1015 = vpop.f32.mrb[0].mxu0
  %1016 = vmatprep.mubr.f32.mxu0 0.0
  %1017 = vmatmul.mubr.f32.gmra.mrb[0].mxu0 %v915
  %v1018 = vpop.f32.mrb[0].mxu0
  %v1019 = vadd.f32 %v906, %v1018
  %v1020 = vpop.f32.mrb[0].mxu0
  %1021 = vmatprep.mubr.f32.mxu0 0.0
  %1022 = vmatmul.mubr.f32.gmra.mrb[0].mxu0 %v918
  %v1023 = vpop.f32.mrb[0].mxu0
  %v1024 = vadd.f32 %v906, %v1023
  %v1025 = vpop.f32.mrb[0].mxu0
  %1026 = vmatprep.mubr.f32.mxu0 0.0
  %1027 = vmatmul.mubr.f32.gmra.mrb[0].mxu0 %v921
  %v1028 = vpop.f32.mrb[0].mxu0
  %v1029 = vadd.f32 %v906, %v1028
  %v1030 = vpop.f32.mrb[0].mxu0
  %1031 = vmatprep.mubr.f32.mxu0 0.0
  %1032 = vmatmul.mubr.f32.gmra.mrb[0].mxu0 %v924
  %v1033 = vpop.f32.mrb[0].mxu0
  %v1034 = vadd.f32 %v906, %v1033
  %v1035 = vpop.f32.mrb[0].mxu0
  %1036 = vmatprep.mubr.f32.mxu0 0.0
  %1037 = vmatmul.mubr.f32.gmra.mrb[0].mxu0 %v927
  %v1038 = vpop.f32.mrb[0].mxu0
  %v1039 = vadd.f32 %v906, %v1038
  %v1040 = vpop.f32.mrb[0].mxu0
  %1041 = vmatprep.mubr.f32.mxu0 0.0
  %1042 = vmatmul.mubr.f32.gmra.mrb[0].mxu0 %v930
  %v1043 = vpop.f32.mrb[0].mxu0
  %v1044 = vadd.f32 %v906, %v1043
  %v1045 = vpop.f32.mrb[0].mxu0
  %1046 = vmatprep.mubr.f32.mxu0 0.0
  %1047 = vmatmul.mubr.f32.gmra.mrb[0].mxu0 %v933
  %v1048 = vpop.f32.mrb[0].mxu0
  %v1049 = vadd.f32 %v906, %v1048
  %v1050 = vpop.f32.mrb[0].mxu0
  %1051 = vmatprep.mubr.f32.mxu0 0.0
  %1052 = vmatmul.mubr.f32.gmra.mrb[0].mxu0 %v936
  %v1053 = vpop.f32.mrb[0].mxu0
  %v1054 = vadd.f32 %v906, %v1053
  %v1055 = vpop.f32.mrb[0].mxu0
  %1056 = vdwg.mxu0
  %v1057 = vmul.f32 %v1009, %v1009
  %v1058 = vmul.f32 %v1014, %v1014
  %v1059 = vmul.f32 %v1019, %v1019
  %v1060 = vmul.f32 %v1024, %v1024
  %v1061 = vmul.f32 %v1029, %v1029
  %v1062 = vmul.f32 %v1034, %v1034
  %v1063 = vmul.f32 %v1039, %v1039
  %v1064 = vmul.f32 %v1044, %v1044
  %v1065 = vmul.f32 %v1049, %v1049
  %v1066 = vmul.f32 %v1054, %v1054
  %1077 = vrot.lane.b32.xlu0 %v1057, 10
  %v1078 = vpop.permute.xlu0 %1077
  %1079 = vrot.lane.b32.xlu0 %v1058, 10
  %v1080 = vpop.permute.xlu0 %1079
  %1081 = vrot.lane.b32.xlu0 %v1059, 10
  %v1082 = vpop.permute.xlu0 %1081
  %1083 = vrot.lane.b32.xlu0 %v1060, 10
  %v1084 = vpop.permute.xlu0 %1083
  %1085 = vrot.lane.b32.xlu0 %v1061, 10
  %v1086 = vpop.permute.xlu0 %1085
  %1087 = vrot.lane.b32.xlu0 %v1062, 10
  %v1088 = vpop.permute.xlu0 %1087
  %1089 = vrot.lane.b32.xlu0 %v1063, 10
  %v1090 = vpop.permute.xlu0 %1089
  %1091 = vrot.lane.b32.xlu0 %v1064, 10
  %v1092 = vpop.permute.xlu0 %1091
  %1093 = vrot.lane.b32.xlu0 %v1065, 10
  %v1094 = vpop.permute.xlu0 %1093
  %1095 = vrot.lane.b32.xlu0 %v1066, 10
  %v1096 = vpop.permute.xlu0 %1095
  %v1107 = vsel %vm365, %v1009, %v1078
  %v1108 = vsel %vm365, %v1014, %v1080
  %v1109 = vsel %vm365, %v1019, %v1082
  %v1110 = vsel %vm365, %v1024, %v1084
  %v1111 = vsel %vm365, %v1029, %v1086
  %v1112 = vsel %vm365, %v1034, %v1088
  %v1113 = vsel %vm365, %v1039, %v1090
  %v1114 = vsel %vm365, %v1044, %v1092
  %v1115 = vsel %vm365, %v1049, %v1094
  %v1116 = vsel %vm365, %v1054, %v1096
  %1117 = vmatprep.subr.mxu0 0.0
  %1118 = vmatpush1.msra.mxu0 %v1107
  %1119 = vmatprep.subr.mxu0 0.0
  %1120 = vmatpush1.msra.mxu0 %v1108
  %1121 = vmatprep.subr.mxu0 0.0
  %1122 = vmatpush1.msra.mxu0 %v1109
  %1123 = vmatprep.subr.mxu0 0.0
  %1124 = vmatpush1.msra.mxu0 %v1110
  %1125 = vmatprep.subr.mxu0 0.0
  %1126 = vmatpush1.msra.mxu0 %v1111
  %1127 = vmatprep.subr.mxu0 0.0
  %1128 = vmatpush1.msra.mxu0 %v1112
  %1129 = vmatprep.subr.mxu0 0.0
  %1130 = vmatpush1.msra.mxu0 %v1113
  %1131 = vmatprep.subr.mxu0 0.0
  %1132 = vmatpush1.msra.mxu0 %v1114
  %1133 = vmatprep.subr.mxu0 0.0
  %1134 = vmatpush1.msra.mxu0 %v1115
  %1135 = vmatprep.subr.mxu0 0.0
  %1136 = vmatpush1.msra.mxu0 %v1116
  %1137 = vmatprep.subr.mxu0 0.0
  %1138 = vmatpush1.msra.mxu0 0.0
  %1139 = vmatprep.subr.mxu0 0.0
  %1140 = vmatpush1.msra.mxu0 0.0
  %1141 = vmatprep.subr.mxu0 0.0
  %1142 = vmatpush1.msra.mxu0 0.0
  %1143 = vmatprep.subr.mxu0 0.0
  %1144 = vmatpush1.msra.mxu0 0.0
  %1145 = vmatprep.subr.mxu0 0.0
  %1146 = vmatpush1.msra.mxu0 0.0
  %1147 = vmatprep.subr.mxu0 0.0
  %1148 = vmatpush1.msra.mxu0 0.0
  %1149 = vmatprep.subr.mxu0 0.0
  %1150 = vmatpush1.msra.mxu0 0.0
  %1151 = vmatprep.subr.mxu0 0.0
  %1152 = vmatpush1.msra.mxu0 0.0
  %1153 = vmatprep.subr.mxu0 0.0
  %1154 = vmatpush1.msra.mxu0 0.0
  %1155 = vmatprep.subr.mxu0 0.0
  %1156 = vmatpush1.msra.mxu0 0.0
  %1157 = vmatprep.subr.mxu0 0.0
  %1158 = vmatpush1.msra.mxu0 0.0
  %1159 = vmatprep.subr.mxu0 0.0
  %1160 = vmatpush1.msra.mxu0 0.0
  %1161 = vmatprep.subr.mxu0 0.0
  %1162 = vmatpush1.msra.mxu0 0.0
  %1163 = vmatprep.subr.mxu0 0.0
  %1164 = vmatpush1.msra.mxu0 0.0
  %1165 = vmatprep.subr.mxu0 0.0
  %1166 = vmatpush1.msra.mxu0 0.0
  %1167 = vmatprep.subr.mxu0 0.0
  %1168 = vmatpush1.msra.mxu0 0.0
  %1169 = vmatprep.subr.mxu0 0.0
  %1170 = vmatpush1.msra.mxu0 0.0
  %1171 = vmatprep.subr.mxu0 0.0
  %1172 = vmatpush1.msra.mxu0 0.0
  %1173 = vmatprep.subr.mxu0 0.0
  %1174 = vmatpush1.msra.mxu0 0.0
  %1175 = vmatprep.subr.mxu0 0.0
  %1176 = vmatpush1.msra.mxu0 0.0
  %1177 = vmatprep.subr.mxu0 0.0
  %1178 = vmatpush1.msra.mxu0 0.0
  %1179 = vmatprep.subr.mxu0 0.0
  %1180 = vmatpush1.msra.mxu0 0.0
  %1181 = vmatprep.mubr.f32.mxu0 0.0
  %1182 = vmatmul.mubr.f32.gmra.mrb[0].mxu0 %v377
  %v1183 = vpop.f32.mrb[0].mxu0
  %v1184 = vadd.f32 0.0, %v1183
  %v1185 = vpop.f32.mrb[0].mxu0
  %1186 = vmatprep.mubr.f32.mxu0 0.0
  %1187 = vmatmul.mubr.f32.gmra.mrb[0].mxu0 %v380
  %v1188 = vpop.f32.mrb[0].mxu0
  %v1189 = vadd.f32 0.0, %v1188
  %v1190 = vpop.f32.mrb[0].mxu0
  %1191 = vmatprep.mubr.f32.mxu0 0.0
  %1192 = vmatmul.mubr.f32.gmra.mrb[0].mxu0 %v383
  %v1193 = vpop.f32.mrb[0].mxu0
  %v1194 = vadd.f32 0.0, %v1193
  %v1195 = vpop.f32.mrb[0].mxu0
  %1196 = vmatprep.mubr.f32.mxu0 0.0
  %1197 = vmatmul.mubr.f32.gmra.mrb[0].mxu0 %v386
  %v1198 = vpop.f32.mrb[0].mxu0
  %v1199 = vadd.f32 0.0, %v1198
  %v1200 = vpop.f32.mrb[0].mxu0
  %1201 = vmatprep.mubr.f32.mxu0 0.0
  %1202 = vmatmul.mubr.f32.gmra.mrb[0].mxu0 %v389
  %v1203 = vpop.f32.mrb[0].mxu0
  %v1204 = vadd.f32 0.0, %v1203
  %v1205 = vpop.f32.mrb[0].mxu0
  %1206 = vmatprep.mubr.f32.mxu0 0.0
  %1207 = vmatmul.mubr.f32.gmra.mrb[0].mxu0 %v392
  %v1208 = vpop.f32.mrb[0].mxu0
  %v1209 = vadd.f32 0.0, %v1208
  %v1210 = vpop.f32.mrb[0].mxu0
  %1211 = vmatprep.mubr.f32.mxu0 0.0
  %1212 = vmatmul.mubr.f32.gmra.mrb[0].mxu0 %v395
  %v1213 = vpop.f32.mrb[0].mxu0
  %v1214 = vadd.f32 0.0, %v1213
  %v1215 = vpop.f32.mrb[0].mxu0
  %1216 = vmatprep.mubr.f32.mxu0 0.0
  %1217 = vmatmul.mubr.f32.gmra.mrb[0].mxu0 %v398
  %v1218 = vpop.f32.mrb[0].mxu0
  %v1219 = vadd.f32 0.0, %v1218
  %v1220 = vpop.f32.mrb[0].mxu0
  %1221 = vmatprep.mubr.f32.mxu0 0.0
  %1222 = vmatmul.mubr.f32.gmra.mrb[0].mxu0 %v401
  %v1223 = vpop.f32.mrb[0].mxu0
  %v1224 = vadd.f32 0.0, %v1223
  %v1225 = vpop.f32.mrb[0].mxu0
  %1226 = vmatprep.mubr.f32.mxu0 0.0
  %1227 = vmatmul.mubr.f32.gmra.mrb[0].mxu0 %v404
  %v1228 = vpop.f32.mrb[0].mxu0
  %v1229 = vadd.f32 0.0, %v1228
  %v1230 = vpop.f32.mrb[0].mxu0
  %1231 = vdwg.mxu0
  %v1232 = vmul.f32 %v1184, %v1184
  %v1233 = vmul.f32 %v1189, %v1189
  %v1234 = vmul.f32 %v1194, %v1194
  %v1235 = vmul.f32 %v1199, %v1199
  %v1236 = vmul.f32 %v1204, %v1204
  %v1237 = vmul.f32 %v1209, %v1209
  %v1238 = vmul.f32 %v1214, %v1214
  %v1239 = vmul.f32 %v1219, %v1219
  %v1240 = vmul.f32 %v1224, %v1224
  %v1241 = vmul.f32 %v1229, %v1229
  %v1242 = vlaneseq
  %v1243 = vshrl.u32 %v1242, 7
  %v1244 = vsub.s32 7, %v1243
  %v1245 = vrot.slane %v47, %v1244
  %v1246 = vmul.f32 %v1232, %v1245
  %v1247 = vmul.f32 %v1233, %v1245
  %v1248 = vmul.f32 %v1234, %v1245
  %v1249 = vmul.f32 %v1235, %v1245
  %v1250 = vmul.f32 %v1236, %v1245
  %v1251 = vmul.f32 %v1237, %v1245
  %v1252 = vmul.f32 %v1238, %v1245
  %v1253 = vmul.f32 %v1239, %v1245
  %v1254 = vmul.f32 %v1240, %v1245
  %v1255 = vmul.f32 %v1241, %v1245
  %v1256 = vlaneseq
  %v1257 = vshrl.u32 %v1256, 7
  %v1258 = vsub.s32 7, %v1257
  %v1259 = vrot.slane %v545, %v1258
  %v1260 = vmul.f32 %v1246, %v1259
  %v1261 = vmul.f32 %v1247, %v1259
  %v1262 = vmul.f32 %v1248, %v1259
  %v1263 = vmul.f32 %v1249, %v1259
  %v1264 = vmul.f32 %v1250, %v1259
  %v1265 = vmul.f32 %v1251, %v1259
  %v1266 = vmul.f32 %v1252, %v1259
  %v1267 = vmul.f32 %v1253, %v1259
  %v1268 = vmul.f32 %v1254, %v1259
  %v1269 = vmul.f32 %v1255, %v1259
  %1280 = vrot.lane.b32.xlu0 %v1260, 10
  %v1281 = vpop.permute.xlu0 %1280
  %1282 = vrot.lane.b32.xlu0 %v1261, 10
  %v1283 = vpop.permute.xlu0 %1282
  %1284 = vrot.lane.b32.xlu0 %v1262, 10
  %v1285 = vpop.permute.xlu0 %1284
  %1286 = vrot.lane.b32.xlu0 %v1263, 10
  %v1287 = vpop.permute.xlu0 %1286
  %1288 = vrot.lane.b32.xlu0 %v1264, 10
  %v1289 = vpop.permute.xlu0 %1288
  %1290 = vrot.lane.b32.xlu0 %v1265, 10
  %v1291 = vpop.permute.xlu0 %1290
  %1292 = vrot.lane.b32.xlu0 %v1266, 10
  %v1293 = vpop.permute.xlu0 %1292
  %1294 = vrot.lane.b32.xlu0 %v1267, 10
  %v1295 = vpop.permute.xlu0 %1294
  %1296 = vrot.lane.b32.xlu0 %v1268, 10
  %v1297 = vpop.permute.xlu0 %1296
  %1298 = vrot.lane.b32.xlu0 %v1269, 10
  %v1299 = vpop.permute.xlu0 %1298
  %v1310 = vsub.f32 %v1184, %v1281
  %v1311 = vsub.f32 %v1189, %v1283
  %v1312 = vsub.f32 %v1194, %v1285
  %v1313 = vsub.f32 %v1199, %v1287
  %v1314 = vsub.f32 %v1204, %v1289
  %v1315 = vsub.f32 %v1209, %v1291
  %v1316 = vsub.f32 %v1214, %v1293
  %v1317 = vsub.f32 %v1219, %v1295
  %v1318 = vsub.f32 %v1224, %v1297
  %v1319 = vsub.f32 %v1229, %v1299
  %v1320 = vmul.f32 %v1184, %v1245
  %v1321 = vmul.f32 %v1189, %v1245
  %v1322 = vmul.f32 %v1194, %v1245
  %v1323 = vmul.f32 %v1199, %v1245
  %v1324 = vmul.f32 %v1204, %v1245
  %v1325 = vmul.f32 %v1209, %v1245
  %v1326 = vmul.f32 %v1214, %v1245
  %v1327 = vmul.f32 %v1219, %v1245
  %v1328 = vmul.f32 %v1224, %v1245
  %v1329 = vmul.f32 %v1229, %v1245
  %v1330 = vsub.f32 %v1009, %v1320
  %v1331 = vsub.f32 %v1014, %v1321
  %v1332 = vsub.f32 %v1019, %v1322
  %v1333 = vsub.f32 %v1024, %v1323
  %v1334 = vsub.f32 %v1029, %v1324
  %v1335 = vsub.f32 %v1034, %v1325
  %v1336 = vsub.f32 %v1039, %v1326
  %v1337 = vsub.f32 %v1044, %v1327
  %v1338 = vsub.f32 %v1049, %v1328
  %v1339 = vsub.f32 %v1054, %v1329
  %v1340 = vadd.f32 %v1310, 1e-05
  %v1341 = vadd.f32 %v1311, 1e-05
  %v1342 = vadd.f32 %v1312, 1e-05
  %v1343 = vadd.f32 %v1313, 1e-05
  %v1344 = vadd.f32 %v1314, 1e-05
  %v1345 = vadd.f32 %v1315, 1e-05
  %v1346 = vadd.f32 %v1316, 1e-05
  %v1347 = vadd.f32 %v1317, 1e-05
  %v1348 = vadd.f32 %v1318, 1e-05
  %v1349 = vadd.f32 %v1319, 1e-05
  %v1350 = vrsqrt.pop %v1340
  %v1351 = vrsqrt.pop %v1341
  %v1352 = vrsqrt.pop %v1342
  %v1353 = vrsqrt.pop %v1343
  %v1354 = vrsqrt.pop %v1344
  %v1355 = vrsqrt.pop %v1345
  %v1356 = vrsqrt.pop %v1346
  %v1357 = vrsqrt.pop %v1347
  %v1358 = vrsqrt.pop %v1348
  %v1359 = vrsqrt.pop %v1349
  %1370 = vrot.lane.b32.xlu0 %v1350, 118
  %v1371 = vpop.permute.xlu0 %1370
  %1372 = vrot.lane.b32.xlu0 %v1351, 118
  %v1373 = vpop.permute.xlu0 %1372
  %1374 = vrot.lane.b32.xlu0 %v1352, 118
  %v1375 = vpop.permute.xlu0 %1374
  %1376 = vrot.lane.b32.xlu0 %v1353, 118
  %v1377 = vpop.permute.xlu0 %1376
  %1378 = vrot.lane.b32.xlu0 %v1354, 118
  %v1379 = vpop.permute.xlu0 %1378
  %1380 = vrot.lane.b32.xlu0 %v1355, 118
  %v1381 = vpop.permute.xlu0 %1380
  %1382 = vrot.lane.b32.xlu0 %v1356, 118
  %v1383 = vpop.permute.xlu0 %1382
  %1384 = vrot.lane.b32.xlu0 %v1357, 118
  %v1385 = vpop.permute.xlu0 %1384
  %1386 = vrot.lane.b32.xlu0 %v1358, 118
  %v1387 = vpop.permute.xlu0 %1386
  %1388 = vrot.lane.b32.xlu0 %v1359, 118
  %v1389 = vpop.permute.xlu0 %1388
  %v1400 = vmul.f32 %v1330, %v1371
  %v1401 = vmul.f32 %v1331, %v1373
  %v1402 = vmul.f32 %v1332, %v1375
  %v1403 = vmul.f32 %v1333, %v1377
  %v1404 = vmul.f32 %v1334, %v1379
  %v1405 = vmul.f32 %v1335, %v1381
  %v1406 = vmul.f32 %v1336, %v1383
  %v1407 = vmul.f32 %v1337, %v1385
  %v1408 = vmul.f32 %v1338, %v1387
  %v1409 = vmul.f32 %v1339, %v1389
  %v1410 = vlaneseq
  %v1411 = vshrl.u32 %v1410, 7
  %v1412 = vsub.s32 5, %v1411
  %v1413 = vrot.slane %v47, %v1412
  %v1414 = vmul.f32 %v1400, %v1413
  %v1415 = vmul.f32 %v1401, %v1413
  %v1416 = vmul.f32 %v1402, %v1413
  %v1417 = vmul.f32 %v1403, %v1413
  %v1418 = vmul.f32 %v1404, %v1413
  %v1419 = vmul.f32 %v1405, %v1413
  %v1420 = vmul.f32 %v1406, %v1413
  %v1421 = vmul.f32 %v1407, %v1413
  %v1422 = vmul.f32 %v1408, %v1413
  %v1423 = vmul.f32 %v1409, %v1413
  %v1424 = vlaneseq
  %v1425 = vshrl.u32 %v1424, 7
  %v1426 = vsub.s32 6, %v1425
  %v1427 = vrot.slane %v47, %v1426
  %v1428 = vadd.f32 %v1414, %v1427
  %v1429 = vadd.f32 %v1415, %v1427
  %v1430 = vadd.f32 %v1416, %v1427
  %v1431 = vadd.f32 %v1417, %v1427
  %v1432 = vadd.f32 %v1418, %v1427
  %v1433 = vadd.f32 %v1419, %v1427
  %v1434 = vadd.f32 %v1420, %v1427
  %v1435 = vadd.f32 %v1421, %v1427
  %v1436 = vadd.f32 %v1422, %v1427
  %v1437 = vadd.f32 %v1423, %v1427
  %v1438 = vmax.f32 %v1428, 0.0
  %v1439 = vmax.f32 %v1429, 0.0
  %v1440 = vmax.f32 %v1430, 0.0
  %v1441 = vmax.f32 %v1431, 0.0
  %v1442 = vmax.f32 %v1432, 0.0
  %v1443 = vmax.f32 %v1433, 0.0
  %v1444 = vmax.f32 %v1434, 0.0
  %v1445 = vmax.f32 %v1435, 0.0
  %v1446 = vmax.f32 %v1436, 0.0
  %v1447 = vmax.f32 %v1437, 0.0
  %1458 = vrot.lane.b32.xlu0 %v1438, 10
  %v1459 = vpop.permute.xlu0 %1458
  %1460 = vrot.lane.b32.xlu0 %v1439, 10
  %v1461 = vpop.permute.xlu0 %1460
  %1462 = vrot.lane.b32.xlu0 %v1440, 10
  %v1463 = vpop.permute.xlu0 %1462
  %1464 = vrot.lane.b32.xlu0 %v1441, 10
  %v1465 = vpop.permute.xlu0 %1464
  %1466 = vrot.lane.b32.xlu0 %v1442, 10
  %v1467 = vpop.permute.xlu0 %1466
  %1468 = vrot.lane.b32.xlu0 %v1443, 10
  %v1469 = vpop.permute.xlu0 %1468
  %1470 = vrot.lane.b32.xlu0 %v1444, 10
  %v1471 = vpop.permute.xlu0 %1470
  %1472 = vrot.lane.b32.xlu0 %v1445, 10
  %v1473 = vpop.permute.xlu0 %1472
  %1474 = vrot.lane.b32.xlu0 %v1446, 10
  %v1475 = vpop.permute.xlu0 %1474
  %1476 = vrot.lane.b32.xlu0 %v1447, 10
  %v1477 = vpop.permute.xlu0 %1476
  %v1488 = vsel %vm365, %v728, %v1459
  %v1489 = vsel %vm365, %v729, %v1461
  %v1490 = vsel %vm365, %v730, %v1463
  %v1491 = vsel %vm365, %v731, %v1465
  %v1492 = vsel %vm365, %v732, %v1467
  %v1493 = vsel %vm365, %v733, %v1469
  %v1494 = vsel %vm365, %v734, %v1471
  %v1495 = vsel %vm365, %v735, %v1473
  %v1496 = vsel %vm365, %v736, %v1475
  %v1497 = vsel %vm365, %v737, %v1477
  %v1498 = vlaneseq
  %v1499 = vshrl.u32 %v1498, 7
  %v1500 = vsub.s32 0, %v1499
  %v1501 = vrot.slane %v48, %v1500
  %v1503 = vsel %vm907, %v1488, 0
  %v1506 = vsel %vm907, %v1489, 0
  %v1509 = vsel %vm907, %v1490, 0
  %v1512 = vsel %vm907, %v1491, 0
  %v1515 = vsel %vm907, %v1492, 0
  %v1518 = vsel %vm907, %v1493, 0
  %v1521 = vsel %vm907, %v1494, 0
  %v1524 = vsel %vm907, %v1495, 0
  %v1527 = vsel %vm907, %v1496, 0
  %v1530 = vsel %vm907, %v1497, 0
  %v1533 = vsel %vm938, %v56, 0
  %1535 = vmatprep.subr.mxu0 0.0
  %1536 = vmatpush1.msra.mxu0 %v54
  %1537 = vmatprep.subr.mxu0 0.0
  %1538 = vmatpush1.msra.mxu0 %v55
  %1539 = vmatprep.subr.mxu0 0.0
  %1540 = vmatpush1.msra.mxu0 %v1533
  %1541 = vmatprep.subr.mxu0 0.0
  %1542 = vmatpush1.msra.mxu0 0.0
  %1543 = vmatprep.subr.mxu0 0.0
  %1544 = vmatpush1.msra.mxu0 0.0
  %1545 = vmatprep.subr.mxu0 0.0
  %1546 = vmatpush1.msra.mxu0 0.0
  %1547 = vmatprep.subr.mxu0 0.0
  %1548 = vmatpush1.msra.mxu0 0.0
  %1549 = vmatprep.subr.mxu0 0.0
  %1550 = vmatpush1.msra.mxu0 0.0
  %1551 = vmatprep.subr.mxu0 0.0
  %1552 = vmatpush1.msra.mxu0 0.0
  %1553 = vmatprep.subr.mxu0 0.0
  %1554 = vmatpush1.msra.mxu0 0.0
  %1555 = vmatprep.subr.mxu0 0.0
  %1556 = vmatpush1.msra.mxu0 0.0
  %1557 = vmatprep.subr.mxu0 0.0
  %1558 = vmatpush1.msra.mxu0 0.0
  %1559 = vmatprep.subr.mxu0 0.0
  %1560 = vmatpush1.msra.mxu0 0.0
  %1561 = vmatprep.subr.mxu0 0.0
  %1562 = vmatpush1.msra.mxu0 0.0
  %1563 = vmatprep.subr.mxu0 0.0
  %1564 = vmatpush1.msra.mxu0 0.0
  %1565 = vmatprep.subr.mxu0 0.0
  %1566 = vmatpush1.msra.mxu0 0.0
  %1567 = vmatprep.subr.mxu0 0.0
  %1568 = vmatpush1.msra.mxu0 0.0
  %1569 = vmatprep.subr.mxu0 0.0
  %1570 = vmatpush1.msra.mxu0 0.0
  %1571 = vmatprep.subr.mxu0 0.0
  %1572 = vmatpush1.msra.mxu0 0.0
  %1573 = vmatprep.subr.mxu0 0.0
  %1574 = vmatpush1.msra.mxu0 0.0
  %1575 = vmatprep.subr.mxu0 0.0
  %1576 = vmatpush1.msra.mxu0 0.0
  %1577 = vmatprep.subr.mxu0 0.0
  %1578 = vmatpush1.msra.mxu0 0.0
  %1579 = vmatprep.subr.mxu0 0.0
  %1580 = vmatpush1.msra.mxu0 0.0
  %1581 = vmatprep.subr.mxu0 0.0
  %1582 = vmatpush1.msra.mxu0 0.0
  %1583 = vmatprep.subr.mxu0 0.0
  %1584 = vmatpush1.msra.mxu0 0.0
  %1585 = vmatprep.subr.mxu0 0.0
  %1586 = vmatpush1.msra.mxu0 0.0
  %1587 = vmatprep.subr.mxu0 0.0
  %1588 = vmatpush1.msra.mxu0 0.0
  %1589 = vmatprep.subr.mxu0 0.0
  %1590 = vmatpush1.msra.mxu0 0.0
  %1591 = vmatprep.subr.mxu0 0.0
  %1592 = vmatpush1.msra.mxu0 0.0
  %1593 = vmatprep.subr.mxu0 0.0
  %1594 = vmatpush1.msra.mxu0 0.0
  %1595 = vmatprep.subr.mxu0 0.0
  %1596 = vmatpush1.msra.mxu0 0.0
  %1597 = vmatprep.subr.mxu0 0.0
  %1598 = vmatpush1.msra.mxu0 0.0
  %1599 = vmatprep.mubr.f32.mxu0 0.0
  %1600 = vmatmul.mubr.f32.gmra.mrb[0].mxu0 %v1503
  %v1601 = vpop.f32.mrb[0].mxu0
  %v1602 = vadd.f32 %v1501, %v1601
  %v1603 = vpop.f32.mrb[0].mxu0
  %1604 = vmatprep.mubr.f32.mxu0 0.0
  %1605 = vmatmul.mubr.f32.gmra.mrb[0].mxu0 %v1506
  %v1606 = vpop.f32.mrb[0].mxu0
  %v1607 = vadd.f32 %v1501, %v1606
  %v1608 = vpop.f32.mrb[0].mxu0
  %1609 = vmatprep.mubr.f32.mxu0 0.0
  %1610 = vmatmul.mubr.f32.gmra.mrb[0].mxu0 %v1509
  %v1611 = vpop.f32.mrb[0].mxu0
  %v1612 = vadd.f32 %v1501, %v1611
  %v1613 = vpop.f32.mrb[0].mxu0
  %1614 = vmatprep.mubr.f32.mxu0 0.0
  %1615 = vmatmul.mubr.f32.gmra.mrb[0].mxu0 %v1512
  %v1616 = vpop.f32.mrb[0].mxu0
  %v1617 = vadd.f32 %v1501, %v1616
  %v1618 = vpop.f32.mrb[0].mxu0
  %1619 = vmatprep.mubr.f32.mxu0 0.0
  %1620 = vmatmul.mubr.f32.gmra.mrb[0].mxu0 %v1515
  %v1621 = vpop.f32.mrb[0].mxu0
  %v1622 = vadd.f32 %v1501, %v1621
  %v1623 = vpop.f32.mrb[0].mxu0
  %1624 = vmatprep.mubr.f32.mxu0 0.0
  %1625 = vmatmul.mubr.f32.gmra.mrb[0].mxu0 %v1518
  %v1626 = vpop.f32.mrb[0].mxu0
  %v1627 = vadd.f32 %v1501, %v1626
  %v1628 = vpop.f32.mrb[0].mxu0
  %1629 = vmatprep.mubr.f32.mxu0 0.0
  %1630 = vmatmul.mubr.f32.gmra.mrb[0].mxu0 %v1521
  %v1631 = vpop.f32.mrb[0].mxu0
  %v1632 = vadd.f32 %v1501, %v1631
  %v1633 = vpop.f32.mrb[0].mxu0
  %1634 = vmatprep.mubr.f32.mxu0 0.0
  %1635 = vmatmul.mubr.f32.gmra.mrb[0].mxu0 %v1524
  %v1636 = vpop.f32.mrb[0].mxu0
  %v1637 = vadd.f32 %v1501, %v1636
  %v1638 = vpop.f32.mrb[0].mxu0
  %1639 = vmatprep.mubr.f32.mxu0 0.0
  %1640 = vmatmul.mubr.f32.gmra.mrb[0].mxu0 %v1527
  %v1641 = vpop.f32.mrb[0].mxu0
  %v1642 = vadd.f32 %v1501, %v1641
  %v1643 = vpop.f32.mrb[0].mxu0
  %1644 = vmatprep.mubr.f32.mxu0 0.0
  %1645 = vmatmul.mubr.f32.gmra.mrb[0].mxu0 %v1530
  %v1646 = vpop.f32.mrb[0].mxu0
  %v1647 = vadd.f32 %v1501, %v1646
  %v1648 = vpop.f32.mrb[0].mxu0
  %1649 = vdwg.mxu0
  %v1650 = vmax.f32 %v45, 0.0
  %v1651 = vmax.f32 %v46, 0.0
  %v1652 = vlaneseq
  %v1653 = vshrl.u32 %v1652, 7
  %v1654 = vsub.s32 0, %v1653
  %v1655 = vrot.slane %v49, %v1654
  %vm1656 = vcmask 64512
  %v1658 = vsel %vm1656, %v1650, 0
  %v1661 = vsel %vm1656, %v1651, 0
  %1663 = vmatprep.subr.mxu0 0.0
  %1664 = vmatpush1.msra.mxu0 %v63
  %1665 = vmatprep.subr.mxu0 0.0
  %1666 = vmatpush1.msra.mxu0 0.0
  %1667 = vmatprep.subr.mxu0 0.0
  %1668 = vmatpush1.msra.mxu0 0.0
  %1669 = vmatprep.subr.mxu0 0.0
  %1670 = vmatpush1.msra.mxu0 0.0
  %1671 = vmatprep.subr.mxu0 0.0
  %1672 = vmatpush1.msra.mxu0 0.0
  %1673 = vmatprep.subr.mxu0 0.0
  %1674 = vmatpush1.msra.mxu0 0.0
  %1675 = vmatprep.subr.mxu0 0.0
  %1676 = vmatpush1.msra.mxu0 0.0
  %1677 = vmatprep.subr.mxu0 0.0
  %1678 = vmatpush1.msra.mxu0 0.0
  %1679 = vmatprep.subr.mxu0 0.0
  %1680 = vmatpush1.msra.mxu0 0.0
  %1681 = vmatprep.subr.mxu0 0.0
  %1682 = vmatpush1.msra.mxu0 0.0
  %1683 = vmatprep.subr.mxu0 0.0
  %1684 = vmatpush1.msra.mxu0 0.0
  %1685 = vmatprep.subr.mxu0 0.0
  %1686 = vmatpush1.msra.mxu0 0.0
  %1687 = vmatprep.subr.mxu0 0.0
  %1688 = vmatpush1.msra.mxu0 0.0
  %1689 = vmatprep.subr.mxu0 0.0
  %1690 = vmatpush1.msra.mxu0 0.0
  %1691 = vmatprep.subr.mxu0 0.0
  %1692 = vmatpush1.msra.mxu0 0.0
  %1693 = vmatprep.subr.mxu0 0.0
  %1694 = vmatpush1.msra.mxu0 0.0
  %1695 = vmatprep.subr.mxu0 0.0
  %1696 = vmatpush1.msra.mxu0 0.0
  %1697 = vmatprep.subr.mxu0 0.0
  %1698 = vmatpush1.msra.mxu0 0.0
  %1699 = vmatprep.subr.mxu0 0.0
  %1700 = vmatpush1.msra.mxu0 0.0
  %1701 = vmatprep.subr.mxu0 0.0
  %1702 = vmatpush1.msra.mxu0 0.0
  %1703 = vmatprep.subr.mxu0 0.0
  %1704 = vmatpush1.msra.mxu0 0.0
  %1705 = vmatprep.subr.mxu0 0.0
  %1706 = vmatpush1.msra.mxu0 0.0
  %1707 = vmatprep.subr.mxu0 0.0
  %1708 = vmatpush1.msra.mxu0 0.0
  %1709 = vmatprep.subr.mxu0 0.0
  %1710 = vmatpush1.msra.mxu0 0.0
  %1711 = vmatprep.subr.mxu0 0.0
  %1712 = vmatpush1.msra.mxu0 0.0
  %1713 = vmatprep.subr.mxu0 0.0
  %1714 = vmatpush1.msra.mxu0 0.0
  %1715 = vmatprep.subr.mxu0 0.0
  %1716 = vmatpush1.msra.mxu0 0.0
  %1717 = vmatprep.subr.mxu0 0.0
  %1718 = vmatpush1.msra.mxu0 0.0
  %1719 = vmatprep.subr.mxu0 0.0
  %1720 = vmatpush1.msra.mxu0 0.0
  %1721 = vmatprep.subr.mxu0 0.0
  %1722 = vmatpush1.msra.mxu0 0.0
  %1723 = vmatprep.subr.mxu0 0.0
  %1724 = vmatpush1.msra.mxu0 0.0
  %1725 = vmatprep.subr.mxu0 0.0
  %1726 = vmatpush1.msra.mxu0 0.0
  %1727 = vmatprep.mubr.f32.mxu0 0.0
  %1728 = vmatmul.mubr.f32.gmra.mrb[0].mxu0 %v1658
  %v1729 = vpop.f32.mrb[0].mxu0
  %v1730 = vadd.f32 %v1655, %v1729
  %v1731 = vpop.f32.mrb[0].mxu0
  %1732 = vmatprep.mubr.f32.mxu0 0.0
  %1733 = vmatmul.mubr.f32.gmra.mrb[0].mxu0 %v1661
  %v1734 = vpop.f32.mrb[0].mxu0
  %v1735 = vadd.f32 %v1655, %v1734
  %v1736 = vpop.f32.mrb[0].mxu0
  %1737 = vdwg.mxu0
  %v1738 = vlaneseq
  %v1739 = vshrl.u32 %v1738, 7
  %v1740 = vsub.s32 1, %v1739
  %v1741 = vrot.slane %v48, %v1740
  %v1743 = vsel %vm365, 0.0, 0
  %vm1745 = vcmask 1041408
  %v1747 = vsel %vm1745, %v58, 0
  %1749 = vmatprep.subr.mxu0 0.0
  %1750 = vmatpush1.msra.mxu0 %v57
  %1751 = vmatprep.subr.mxu0 0.0
  %1752 = vmatpush1.msra.mxu0 %v1747
  %1753 = vmatprep.subr.mxu0 0.0
  %1754 = vmatpush1.msra.mxu0 0.0
  %1755 = vmatprep.subr.mxu0 0.0
  %1756 = vmatpush1.msra.mxu0 0.0
  %1757 = vmatprep.subr.mxu0 0.0
  %1758 = vmatpush1.msra.mxu0 0.0
  %1759 = vmatprep.subr.mxu0 0.0
  %1760 = vmatpush1.msra.mxu0 0.0
  %1761 = vmatprep.subr.mxu0 0.0
  %1762 = vmatpush1.msra.mxu0 0.0
  %1763 = vmatprep.subr.mxu0 0.0
  %1764 = vmatpush1.msra.mxu0 0.0
  %1765 = vmatprep.subr.mxu0 0.0
  %1766 = vmatpush1.msra.mxu0 0.0
  %1767 = vmatprep.subr.mxu0 0.0
  %1768 = vmatpush1.msra.mxu0 0.0
  %1769 = vmatprep.subr.mxu0 0.0
  %1770 = vmatpush1.msra.mxu0 0.0
  %1771 = vmatprep.subr.mxu0 0.0
  %1772 = vmatpush1.msra.mxu0 0.0
  %1773 = vmatprep.subr.mxu0 0.0
  %1774 = vmatpush1.msra.mxu0 0.0
  %1775 = vmatprep.subr.mxu0 0.0
  %1776 = vmatpush1.msra.mxu0 0.0
  %1777 = vmatprep.subr.mxu0 0.0
  %1778 = vmatpush1.msra.mxu0 0.0
  %1779 = vmatprep.subr.mxu0 0.0
  %1780 = vmatpush1.msra.mxu0 0.0
  %1781 = vmatprep.subr.mxu0 0.0
  %1782 = vmatpush1.msra.mxu0 0.0
  %1783 = vmatprep.subr.mxu0 0.0
  %1784 = vmatpush1.msra.mxu0 0.0
  %1785 = vmatprep.subr.mxu0 0.0
  %1786 = vmatpush1.msra.mxu0 0.0
  %1787 = vmatprep.subr.mxu0 0.0
  %1788 = vmatpush1.msra.mxu0 0.0
  %1789 = vmatprep.subr.mxu0 0.0
  %1790 = vmatpush1.msra.mxu0 0.0
  %1791 = vmatprep.subr.mxu0 0.0
  %1792 = vmatpush1.msra.mxu0 0.0
  %1793 = vmatprep.subr.mxu0 0.0
  %1794 = vmatpush1.msra.mxu0 0.0
  %1795 = vmatprep.subr.mxu0 0.0
  %1796 = vmatpush1.msra.mxu0 0.0
  %1797 = vmatprep.subr.mxu0 0.0
  %1798 = vmatpush1.msra.mxu0 0.0
  %1799 = vmatprep.subr.mxu0 0.0
  %1800 = vmatpush1.msra.mxu0 0.0
  %1801 = vmatprep.subr.mxu0 0.0
  %1802 = vmatpush1.msra.mxu0 0.0
  %1803 = vmatprep.subr.mxu0 0.0
  %1804 = vmatpush1.msra.mxu0 0.0
  %1805 = vmatprep.subr.mxu0 0.0
  %1806 = vmatpush1.msra.mxu0 0.0
  %1807 = vmatprep.subr.mxu0 0.0
  %1808 = vmatpush1.msra.mxu0 0.0
  %1809 = vmatprep.subr.mxu0 0.0
  %1810 = vmatpush1.msra.mxu0 0.0
  %1811 = vmatprep.subr.mxu0 0.0
  %1812 = vmatpush1.msra.mxu0 0.0
  %1813 = vmatprep.mubr.f32.mxu0 0.0
  %1814 = vmatmul.mubr.f32.gmra.mrb[0].mxu0 %v1743
  %v1815 = vpop.f32.mrb[0].mxu0
  %v1816 = vadd.f32 %v1741, %v1815
  %v1817 = vpop.f32.mrb[0].mxu0
  %1818 = vmatprep.mubr.f32.mxu0 0.0
  %1819 = vmatmul.mubr.f32.gmra.mrb[0].mxu0 %v1743
  %v1820 = vpop.f32.mrb[0].mxu0
  %v1821 = vadd.f32 %v1741, %v1820
  %v1822 = vpop.f32.mrb[0].mxu0
  %1823 = vdwg.mxu0
  %v1824 = vadd.f32 %v1602, %v1816
  %v1825 = vadd.f32 %v1607, %v1821
  %v1826 = vxor.u32 %v1824, 2147483648
  %v1827 = vxor.u32 %v1825, 2147483648
  %v1828 = vmul.f32 %v1826, 1.442695
  %v1829 = vpow.pop %v1828
  %v1830 = vmul.f32 %v1827, 1.442695
  %v1831 = vpow.pop %v1830
  %v1832 = vadd.f32 %v1829, 1.0
  %v1833 = vadd.f32 %v1831, 1.0
  %v1834 = vrcp.pop %v1832
  %v1835 = vmul.f32 1.0, %v1834
  %v1836 = vrcp.pop %v1833
  %v1837 = vmul.f32 1.0, %v1836
  %1840 = vrot.lane.b32.xlu0 %v1816, 108
  %v1841 = vpop.permute.xlu0 %1840
  %1842 = vrot.lane.b32.xlu0 %v1821, 108
  %v1843 = vpop.permute.xlu0 %1842
  %v1846 = vmul.f32 %v1835, %v1841
  %v1847 = vmul.f32 %v1837, %v1843
  %1850 = vrot.lane.b32.xlu0 %v1846, 20
  %v1851 = vpop.permute.xlu0 %1850
  %1852 = vrot.lane.b32.xlu0 %v1847, 20
  %v1853 = vpop.permute.xlu0 %1852
  %v1856 = vadd.f32 %v1602, %v1851
  %v1857 = vadd.f32 %v1607, %v1853
  %v1858 = vtanh.pop %v1856
  %v1859 = vtanh.pop %v1857
  %v1860 = vsub.f32 1.0, %v1835
  %v1861 = vsub.f32 1.0, %v1837
  %1864 = vrot.lane.b32.xlu0 %v1858, 118
  %v1865 = vpop.permute.xlu0 %1864
  %1866 = vrot.lane.b32.xlu0 %v1859, 118
  %v1867 = vpop.permute.xlu0 %1866
  %v1870 = vmul.f32 %v1860, %v1865
  %v1871 = vmul.f32 %v1861, %v1867
  %v1872 = vmul.f32 %v1835, 0.0
  %v1873 = vmul.f32 %v1837, 0.0
  %v1874 = vadd.f32 %v1870, %v1872
  %v1875 = vadd.f32 %v1871, %v1873
  %v1876 = vlaneseq
  %v1877 = vshrl.u32 %v1876, 7
  %v1878 = vsub.s32 2, %v1877
  %v1879 = vrot.slane %v48, %v1878
  %1882 = vrot.lane.b32.xlu0 %v1874, 118
  %v1883 = vpop.permute.xlu0 %1882
  %1884 = vrot.lane.b32.xlu0 %v1875, 118
  %v1885 = vpop.permute.xlu0 %1884
  %v1886 = vsel %vm365, %v1883, 0
  %v1888 = vsel %vm365, %v1885, 0
  %v1891 = vsel %vm1745, %v60, 0
  %1893 = vmatprep.subr.mxu0 0.0
  %1894 = vmatpush1.msra.mxu0 %v59
  %1895 = vmatprep.subr.mxu0 0.0
  %1896 = vmatpush1.msra.mxu0 %v1891
  %1897 = vmatprep.subr.mxu0 0.0
  %1898 = vmatpush1.msra.mxu0 0.0
  %1899 = vmatprep.subr.mxu0 0.0
  %1900 = vmatpush1.msra.mxu0 0.0
  %1901 = vmatprep.subr.mxu0 0.0
  %1902 = vmatpush1.msra.mxu0 0.0
  %1903 = vmatprep.subr.mxu0 0.0
  %1904 = vmatpush1.msra.mxu0 0.0
  %1905 = vmatprep.subr.mxu0 0.0
  %1906 = vmatpush1.msra.mxu0 0.0
  %1907 = vmatprep.subr.mxu0 0.0
  %1908 = vmatpush1.msra.mxu0 0.0
  %1909 = vmatprep.subr.mxu0 0.0
  %1910 = vmatpush1.msra.mxu0 0.0
  %1911 = vmatprep.subr.mxu0 0.0
  %1912 = vmatpush1.msra.mxu0 0.0
  %1913 = vmatprep.subr.mxu0 0.0
  %1914 = vmatpush1.msra.mxu0 0.0
  %1915 = vmatprep.subr.mxu0 0.0
  %1916 = vmatpush1.msra.mxu0 0.0
  %1917 = vmatprep.subr.mxu0 0.0
  %1918 = vmatpush1.msra.mxu0 0.0
  %1919 = vmatprep.subr.mxu0 0.0
  %1920 = vmatpush1.msra.mxu0 0.0
  %1921 = vmatprep.subr.mxu0 0.0
  %1922 = vmatpush1.msra.mxu0 0.0
  %1923 = vmatprep.subr.mxu0 0.0
  %1924 = vmatpush1.msra.mxu0 0.0
  %1925 = vmatprep.subr.mxu0 0.0
  %1926 = vmatpush1.msra.mxu0 0.0
  %1927 = vmatprep.subr.mxu0 0.0
  %1928 = vmatpush1.msra.mxu0 0.0
  %1929 = vmatprep.subr.mxu0 0.0
  %1930 = vmatpush1.msra.mxu0 0.0
  %1931 = vmatprep.subr.mxu0 0.0
  %1932 = vmatpush1.msra.mxu0 0.0
  %1933 = vmatprep.subr.mxu0 0.0
  %1934 = vmatpush1.msra.mxu0 0.0
  %1935 = vmatprep.subr.mxu0 0.0
  %1936 = vmatpush1.msra.mxu0 0.0
  %1937 = vmatprep.subr.mxu0 0.0
  %1938 = vmatpush1.msra.mxu0 0.0
  %1939 = vmatprep.subr.mxu0 0.0
  %1940 = vmatpush1.msra.mxu0 0.0
  %1941 = vmatprep.subr.mxu0 0.0
  %1942 = vmatpush1.msra.mxu0 0.0
  %1943 = vmatprep.subr.mxu0 0.0
  %1944 = vmatpush1.msra.mxu0 0.0
  %1945 = vmatprep.subr.mxu0 0.0
  %1946 = vmatpush1.msra.mxu0 0.0
  %1947 = vmatprep.subr.mxu0 0.0
  %1948 = vmatpush1.msra.mxu0 0.0
  %1949 = vmatprep.subr.mxu0 0.0
  %1950 = vmatpush1.msra.mxu0 0.0
  %1951 = vmatprep.subr.mxu0 0.0
  %1952 = vmatpush1.msra.mxu0 0.0
  %1953 = vmatprep.subr.mxu0 0.0
  %1954 = vmatpush1.msra.mxu0 0.0
  %1955 = vmatprep.subr.mxu0 0.0
  %1956 = vmatpush1.msra.mxu0 0.0
  %1957 = vmatprep.mubr.f32.mxu0 0.0
  %1958 = vmatmul.mubr.f32.gmra.mrb[0].mxu0 %v1886
  %v1959 = vpop.f32.mrb[0].mxu0
  %v1960 = vadd.f32 %v1879, %v1959
  %v1961 = vpop.f32.mrb[0].mxu0
  %1962 = vmatprep.mubr.f32.mxu0 0.0
  %1963 = vmatmul.mubr.f32.gmra.mrb[0].mxu0 %v1888
  %v1964 = vpop.f32.mrb[0].mxu0
  %v1965 = vadd.f32 %v1879, %v1964
  %v1966 = vpop.f32.mrb[0].mxu0
  %1967 = vdwg.mxu0
  %v1968 = vlaneseq
  %v1969 = vshrl.u32 %v1968, 7
  %v1970 = vsub.s32 3, %v1969
  %v1971 = vrot.slane %v48, %v1970
  %v1973 = vsel %vm1745, %v62, 0
  %1975 = vmatprep.subr.mxu0 0.0
  %1976 = vmatpush1.msra.mxu0 %v61
  %1977 = vmatprep.subr.mxu0 0.0
  %1978 = vmatpush1.msra.mxu0 %v1973
  %1979 = vmatprep.subr.mxu0 0.0
  %1980 = vmatpush1.msra.mxu0 0.0
  %1981 = vmatprep.subr.mxu0 0.0
  %1982 = vmatpush1.msra.mxu0 0.0
  %1983 = vmatprep.subr.mxu0 0.0
  %1984 = vmatpush1.msra.mxu0 0.0
  %1985 = vmatprep.subr.mxu0 0.0
  %1986 = vmatpush1.msra.mxu0 0.0
  %1987 = vmatprep.subr.mxu0 0.0
  %1988 = vmatpush1.msra.mxu0 0.0
  %1989 = vmatprep.subr.mxu0 0.0
  %1990 = vmatpush1.msra.mxu0 0.0
  %1991 = vmatprep.subr.mxu0 0.0
  %1992 = vmatpush1.msra.mxu0 0.0
  %1993 = vmatprep.subr.mxu0 0.0
  %1994 = vmatpush1.msra.mxu0 0.0
  %1995 = vmatprep.subr.mxu0 0.0
  %1996 = vmatpush1.msra.mxu0 0.0
  %1997 = vmatprep.subr.mxu0 0.0
  %1998 = vmatpush1.msra.mxu0 0.0
  %1999 = vmatprep.subr.mxu0 0.0
  %2000 = vmatpush1.msra.mxu0 0.0
  %2001 = vmatprep.subr.mxu0 0.0
  %2002 = vmatpush1.msra.mxu0 0.0
  %2003 = vmatprep.subr.mxu0 0.0
  %2004 = vmatpush1.msra.mxu0 0.0
  %2005 = vmatprep.subr.mxu0 0.0
  %2006 = vmatpush1.msra.mxu0 0.0
  %2007 = vmatprep.subr.mxu0 0.0
  %2008 = vmatpush1.msra.mxu0 0.0
  %2009 = vmatprep.subr.mxu0 0.0
  %2010 = vmatpush1.msra.mxu0 0.0
  %2011 = vmatprep.subr.mxu0 0.0
  %2012 = vmatpush1.msra.mxu0 0.0
  %2013 = vmatprep.subr.mxu0 0.0
  %2014 = vmatpush1.msra.mxu0 0.0
  %2015 = vmatprep.subr.mxu0 0.0
  %2016 = vmatpush1.msra.mxu0 0.0
  %2017 = vmatprep.subr.mxu0 0.0
  %2018 = vmatpush1.msra.mxu0 0.0
  %2019 = vmatprep.subr.mxu0 0.0
  %2020 = vmatpush1.msra.mxu0 0.0
  %2021 = vmatprep.subr.mxu0 0.0
  %2022 = vmatpush1.msra.mxu0 0.0
  %2023 = vmatprep.subr.mxu0 0.0
  %2024 = vmatpush1.msra.mxu0 0.0
  %2025 = vmatprep.subr.mxu0 0.0
  %2026 = vmatpush1.msra.mxu0 0.0
  %2027 = vmatprep.subr.mxu0 0.0
  %2028 = vmatpush1.msra.mxu0 0.0
  %2029 = vmatprep.subr.mxu0 0.0
  %2030 = vmatpush1.msra.mxu0 0.0
  %2031 = vmatprep.subr.mxu0 0.0
  %2032 = vmatpush1.msra.mxu0 0.0
  %2033 = vmatprep.subr.mxu0 0.0
  %2034 = vmatpush1.msra.mxu0 0.0
  %2035 = vmatprep.subr.mxu0 0.0
  %2036 = vmatpush1.msra.mxu0 0.0
  %2037 = vmatprep.subr.mxu0 0.0
  %2038 = vmatpush1.msra.mxu0 0.0
  %2039 = vmatprep.mubr.f32.mxu0 0.0
  %2040 = vmatmul.mubr.f32.gmra.mrb[0].mxu0 %v1743
  %v2041 = vpop.f32.mrb[0].mxu0
  %v2042 = vadd.f32 %v1971, %v2041
  %v2043 = vpop.f32.mrb[0].mxu0
  %2044 = vmatprep.mubr.f32.mxu0 0.0
  %2045 = vmatmul.mubr.f32.gmra.mrb[0].mxu0 %v1743
  %v2046 = vpop.f32.mrb[0].mxu0
  %v2047 = vadd.f32 %v1971, %v2046
  %v2048 = vpop.f32.mrb[0].mxu0
  %2049 = vdwg.mxu0
  %v2050 = vadd.f32 %v1960, %v2042
  %v2051 = vadd.f32 %v1965, %v2047
  %v2052 = vxor.u32 %v2050, 2147483648
  %v2053 = vxor.u32 %v2051, 2147483648
  %v2054 = vmul.f32 %v2052, 1.442695
  %v2055 = vpow.pop %v2054
  %v2056 = vmul.f32 %v2053, 1.442695
  %v2057 = vpow.pop %v2056
  %v2058 = vadd.f32 %v2055, 1.0
  %v2059 = vadd.f32 %v2057, 1.0
  %v2060 = vrcp.pop %v2058
  %v2061 = vmul.f32 1.0, %v2060
  %v2062 = vrcp.pop %v2059
  %v2063 = vmul.f32 1.0, %v2062
  %2066 = vrot.lane.b32.xlu0 %v2042, 108
  %v2067 = vpop.permute.xlu0 %2066
  %2068 = vrot.lane.b32.xlu0 %v2047, 108
  %v2069 = vpop.permute.xlu0 %2068
  %v2072 = vmul.f32 %v2061, %v2067
  %v2073 = vmul.f32 %v2063, %v2069
  %2076 = vrot.lane.b32.xlu0 %v2072, 20
  %v2077 = vpop.permute.xlu0 %2076
  %2078 = vrot.lane.b32.xlu0 %v2073, 20
  %v2079 = vpop.permute.xlu0 %2078
  %v2082 = vadd.f32 %v1960, %v2077
  %v2083 = vadd.f32 %v1965, %v2079
  %v2084 = vtanh.pop %v2082
  %v2085 = vtanh.pop %v2083
  %v2086 = vsub.f32 1.0, %v2061
  %v2087 = vsub.f32 1.0, %v2063
  %2090 = vrot.lane.b32.xlu0 %v2084, 118
  %v2091 = vpop.permute.xlu0 %2090
  %2092 = vrot.lane.b32.xlu0 %v2085, 118
  %v2093 = vpop.permute.xlu0 %2092
  %v2096 = vmul.f32 %v2086, %v2091
  %v2097 = vmul.f32 %v2087, %v2093
  %v2098 = vmul.f32 %v2061, 0.0
  %v2099 = vmul.f32 %v2063, 0.0
  %v2100 = vadd.f32 %v2096, %v2098
  %v2101 = vadd.f32 %v2097, %v2099
  %2102 = vmatprep.subr.mxu0 0.0
  %2103 = vmatpush1.msra.mxu0 %v57
  %2104 = vmatprep.subr.mxu0 0.0
  %2105 = vmatpush1.msra.mxu0 %v1747
  %2106 = vmatprep.subr.mxu0 0.0
  %2107 = vmatpush1.msra.mxu0 0.0
  %2108 = vmatprep.subr.mxu0 0.0
  %2109 = vmatpush1.msra.mxu0 0.0
  %2110 = vmatprep.subr.mxu0 0.0
  %2111 = vmatpush1.msra.mxu0 0.0
  %2112 = vmatprep.subr.mxu0 0.0
  %2113 = vmatpush1.msra.mxu0 0.0
  %2114 = vmatprep.subr.mxu0 0.0
  %2115 = vmatpush1.msra.mxu0 0.0
  %2116 = vmatprep.subr.mxu0 0.0
  %2117 = vmatpush1.msra.mxu0 0.0
  %2118 = vmatprep.subr.mxu0 0.0
  %2119 = vmatpush1.msra.mxu0 0.0
  %2120 = vmatprep.subr.mxu0 0.0
  %2121 = vmatpush1.msra.mxu0 0.0
  %2122 = vmatprep.subr.mxu0 0.0
  %2123 = vmatpush1.msra.mxu0 0.0
  %2124 = vmatprep.subr.mxu0 0.0
  %2125 = vmatpush1.msra.mxu0 0.0
  %2126 = vmatprep.subr.mxu0 0.0
  %2127 = vmatpush1.msra.mxu0 0.0
  %2128 = vmatprep.subr.mxu0 0.0
  %2129 = vmatpush1.msra.mxu0 0.0
  %2130 = vmatprep.subr.mxu0 0.0
  %2131 = vmatpush1.msra.mxu0 0.0
  %2132 = vmatprep.subr.mxu0 0.0
  %2133 = vmatpush1.msra.mxu0 0.0
  %2134 = vmatprep.subr.mxu0 0.0
  %2135 = vmatpush1.msra.mxu0 0.0
  %2136 = vmatprep.subr.mxu0 0.0
  %2137 = vmatpush1.msra.mxu0 0.0
  %2138 = vmatprep.subr.mxu0 0.0
  %2139 = vmatpush1.msra.mxu0 0.0
  %2140 = vmatprep.subr.mxu0 0.0
  %2141 = vmatpush1.msra.mxu0 0.0
  %2142 = vmatprep.subr.mxu0 0.0
  %2143 = vmatpush1.msra.mxu0 0.0
  %2144 = vmatprep.subr.mxu0 0.0
  %2145 = vmatpush1.msra.mxu0 0.0
  %2146 = vmatprep.subr.mxu0 0.0
  %2147 = vmatpush1.msra.mxu0 0.0
  %2148 = vmatprep.subr.mxu0 0.0
  %2149 = vmatpush1.msra.mxu0 0.0
  %2150 = vmatprep.subr.mxu0 0.0
  %2151 = vmatpush1.msra.mxu0 0.0
  %2152 = vmatprep.subr.mxu0 0.0
  %2153 = vmatpush1.msra.mxu0 0.0
  %2154 = vmatprep.subr.mxu0 0.0
  %2155 = vmatpush1.msra.mxu0 0.0
  %2156 = vmatprep.subr.mxu0 0.0
  %2157 = vmatpush1.msra.mxu0 0.0
  %2158 = vmatprep.subr.mxu0 0.0
  %2159 = vmatpush1.msra.mxu0 0.0
  %2160 = vmatprep.subr.mxu0 0.0
  %2161 = vmatpush1.msra.mxu0 0.0
  %2162 = vmatprep.subr.mxu0 0.0
  %2163 = vmatpush1.msra.mxu0 0.0
  %2164 = vmatprep.subr.mxu0 0.0
  %2165 = vmatpush1.msra.mxu0 0.0
  %2166 = vmatprep.mubr.f32.mxu0 0.0
  %2167 = vmatmul.mubr.f32.gmra.mrb[0].mxu0 %v1886
  %v2168 = vpop.f32.mrb[0].mxu0
  %v2169 = vadd.f32 %v1741, %v2168
  %v2170 = vpop.f32.mrb[0].mxu0
  %2171 = vmatprep.mubr.f32.mxu0 0.0
  %2172 = vmatmul.mubr.f32.gmra.mrb[0].mxu0 %v1888
  %v2173 = vpop.f32.mrb[0].mxu0
  %v2174 = vadd.f32 %v1741, %v2173
  %v2175 = vpop.f32.mrb[0].mxu0
  %2176 = vdwg.mxu0
  %v2179 = vrot.slane %v2169, 6
  %v2180 = vrot.slane %v2174, 6
  %v2181 = vsel %vm1745, %v2179, %v2180
  %v2184 = vadd.f32 %v1607, %v2179
  %v2185 = vadd.f32 %v1612, %v2181
  %v2186 = vxor.u32 %v2184, 2147483648
  %v2187 = vxor.u32 %v2185, 2147483648
  %v2188 = vmul.f32 %v2186, 1.442695
  %v2189 = vpow.pop %v2188
  %v2190 = vmul.f32 %v2187, 1.442695
  %v2191 = vpow.pop %v2190
  %v2192 = vadd.f32 %v2189, 1.0
  %v2193 = vadd.f32 %v2191, 1.0
  %v2194 = vrcp.pop %v2192
  %v2195 = vmul.f32 1.0, %v2194
  %v2196 = vrcp.pop %v2193
  %v2197 = vmul.f32 1.0, %v2196
  %2198 = vrot.lane.b32.xlu0 %v2179, 108
  %v2199 = vpop.permute.xlu0 %2198
  %2200 = vrot.lane.b32.xlu0 %v2181, 108
  %v2201 = vpop.permute.xlu0 %2200
  %v2204 = vmul.f32 %v2195, %v2199
  %v2205 = vmul.f32 %v2197, %v2201
  %2208 = vrot.lane.b32.xlu0 %v2204, 20
  %v2209 = vpop.permute.xlu0 %2208
  %2210 = vrot.lane.b32.xlu0 %v2205, 20
  %v2211 = vpop.permute.xlu0 %2210
  %v2214 = vadd.f32 %v1607, %v2209
  %v2215 = vadd.f32 %v1612, %v2211
  %v2216 = vtanh.pop %v2214
  %v2217 = vtanh.pop %v2215
  %v2218 = vsub.f32 1.0, %v2195
  %v2219 = vsub.f32 1.0, %v2197
  %2222 = vrot.lane.b32.xlu0 %v2216, 118
  %v2223 = vpop.permute.xlu0 %2222
  %2224 = vrot.lane.b32.xlu0 %v2217, 118
  %v2225 = vpop.permute.xlu0 %2224
  %v2228 = vmul.f32 %v2218, %v2223
  %v2229 = vmul.f32 %v2219, %v2225
  %v2230 = vrot.slane %v1874, 6
  %v2231 = vrot.slane %v1875, 6
  %v2232 = vsel %vm1745, %v2230, %v2231
  %v2235 = vmul.f32 %v2195, %v2230
  %v2236 = vmul.f32 %v2197, %v2232
  %v2237 = vadd.f32 %v2228, %v2235
  %v2238 = vadd.f32 %v2229, %v2236
  %vm2241 = vcmask 1045504
  %v2242 = vrot.slane %v2237, 2
  %v2243 = vrot.slane %v2238, 2
  %v2244 = vsel %vm2241, %v2242, %v2243
  %2245 = vrot.lane.b32.xlu0 %v2244, 118
  %v2246 = vpop.permute.xlu0 %2245
  %2247 = vrot.lane.b32.xlu0 %v2243, 118
  %v2248 = vpop.permute.xlu0 %2247
  %v2249 = vsel %vm365, %v2246, 0
  %v2251 = vsel %vm365, %v2248, 0
  %2253 = vmatprep.subr.mxu0 0.0
  %2254 = vmatpush1.msra.mxu0 %v59
  %2255 = vmatprep.subr.mxu0 0.0
  %2256 = vmatpush1.msra.mxu0 %v1891
  %2257 = vmatprep.subr.mxu0 0.0
  %2258 = vmatpush1.msra.mxu0 0.0
  %2259 = vmatprep.subr.mxu0 0.0
  %2260 = vmatpush1.msra.mxu0 0.0
  %2261 = vmatprep.subr.mxu0 0.0
  %2262 = vmatpush1.msra.mxu0 0.0
  %2263 = vmatprep.subr.mxu0 0.0
  %2264 = vmatpush1.msra.mxu0 0.0
  %2265 = vmatprep.subr.mxu0 0.0
  %2266 = vmatpush1.msra.mxu0 0.0
  %2267 = vmatprep.subr.mxu0 0.0
  %2268 = vmatpush1.msra.mxu0 0.0
  %2269 = vmatprep.subr.mxu0 0.0
  %2270 = vmatpush1.msra.mxu0 0.0
  %2271 = vmatprep.subr.mxu0 0.0
  %2272 = vmatpush1.msra.mxu0 0.0
  %2273 = vmatprep.subr.mxu0 0.0
  %2274 = vmatpush1.msra.mxu0 0.0
  %2275 = vmatprep.subr.mxu0 0.0
  %2276 = vmatpush1.msra.mxu0 0.0
  %2277 = vmatprep.subr.mxu0 0.0
  %2278 = vmatpush1.msra.mxu0 0.0
  %2279 = vmatprep.subr.mxu0 0.0
  %2280 = vmatpush1.msra.mxu0 0.0
  %2281 = vmatprep.subr.mxu0 0.0
  %2282 = vmatpush1.msra.mxu0 0.0
  %2283 = vmatprep.subr.mxu0 0.0
  %2284 = vmatpush1.msra.mxu0 0.0
  %2285 = vmatprep.subr.mxu0 0.0
  %2286 = vmatpush1.msra.mxu0 0.0
  %2287 = vmatprep.subr.mxu0 0.0
  %2288 = vmatpush1.msra.mxu0 0.0
  %2289 = vmatprep.subr.mxu0 0.0
  %2290 = vmatpush1.msra.mxu0 0.0
  %2291 = vmatprep.subr.mxu0 0.0
  %2292 = vmatpush1.msra.mxu0 0.0
  %2293 = vmatprep.subr.mxu0 0.0
  %2294 = vmatpush1.msra.mxu0 0.0
  %2295 = vmatprep.subr.mxu0 0.0
  %2296 = vmatpush1.msra.mxu0 0.0
  %2297 = vmatprep.subr.mxu0 0.0
  %2298 = vmatpush1.msra.mxu0 0.0
  %2299 = vmatprep.subr.mxu0 0.0
  %2300 = vmatpush1.msra.mxu0 0.0
  %2301 = vmatprep.subr.mxu0 0.0
  %2302 = vmatpush1.msra.mxu0 0.0
  %2303 = vmatprep.subr.mxu0 0.0
  %2304 = vmatpush1.msra.mxu0 0.0
  %2305 = vmatprep.subr.mxu0 0.0
  %2306 = vmatpush1.msra.mxu0 0.0
  %2307 = vmatprep.subr.mxu0 0.0
  %2308 = vmatpush1.msra.mxu0 0.0
  %2309 = vmatprep.subr.mxu0 0.0
  %2310 = vmatpush1.msra.mxu0 0.0
  %2311 = vmatprep.subr.mxu0 0.0
  %2312 = vmatpush1.msra.mxu0 0.0
  %2313 = vmatprep.subr.mxu0 0.0
  %2314 = vmatpush1.msra.mxu0 0.0
  %2315 = vmatprep.subr.mxu0 0.0
  %2316 = vmatpush1.msra.mxu0 0.0
  %2317 = vmatprep.mubr.f32.mxu0 0.0
  %2318 = vmatmul.mubr.f32.gmra.mrb[0].mxu0 %v2249
  %v2319 = vpop.f32.mrb[0].mxu0
  %v2320 = vadd.f32 %v1879, %v2319
  %v2321 = vpop.f32.mrb[0].mxu0
  %2322 = vmatprep.mubr.f32.mxu0 0.0
  %2323 = vmatmul.mubr.f32.gmra.mrb[0].mxu0 %v2251
  %v2324 = vpop.f32.mrb[0].mxu0
  %v2325 = vadd.f32 %v1879, %v2324
  %v2326 = vpop.f32.mrb[0].mxu0
  %2327 = vdwg.mxu0
  %2330 = vrot.lane.b32.xlu0 %v2100, 118
  %v2331 = vpop.permute.xlu0 %2330
  %2332 = vrot.lane.b32.xlu0 %v2101, 118
  %v2333 = vpop.permute.xlu0 %2332
  %v2334 = vsel %vm365, %v2331, 0
  %v2336 = vsel %vm365, %v2333, 0
  %2338 = vmatprep.subr.mxu0 0.0
  %2339 = vmatpush1.msra.mxu0 %v61
  %2340 = vmatprep.subr.mxu0 0.0
  %2341 = vmatpush1.msra.mxu0 %v1973
  %2342 = vmatprep.subr.mxu0 0.0
  %2343 = vmatpush1.msra.mxu0 0.0
  %2344 = vmatprep.subr.mxu0 0.0
  %2345 = vmatpush1.msra.mxu0 0.0
  %2346 = vmatprep.subr.mxu0 0.0
  %2347 = vmatpush1.msra.mxu0 0.0
  %2348 = vmatprep.subr.mxu0 0.0
  %2349 = vmatpush1.msra.mxu0 0.0
  %2350 = vmatprep.subr.mxu0 0.0
  %2351 = vmatpush1.msra.mxu0 0.0
  %2352 = vmatprep.subr.mxu0 0.0
  %2353 = vmatpush1.msra.mxu0 0.0
  %2354 = vmatprep.subr.mxu0 0.0
  %2355 = vmatpush1.msra.mxu0 0.0
  %2356 = vmatprep.subr.mxu0 0.0
  %2357 = vmatpush1.msra.mxu0 0.0
  %2358 = vmatprep.subr.mxu0 0.0
  %2359 = vmatpush1.msra.mxu0 0.0
  %2360 = vmatprep.subr.mxu0 0.0
  %2361 = vmatpush1.msra.mxu0 0.0
  %2362 = vmatprep.subr.mxu0 0.0
  %2363 = vmatpush1.msra.mxu0 0.0
  %2364 = vmatprep.subr.mxu0 0.0
  %2365 = vmatpush1.msra.mxu0 0.0
  %2366 = vmatprep.subr.mxu0 0.0
  %2367 = vmatpush1.msra.mxu0 0.0
  %2368 = vmatprep.subr.mxu0 0.0
  %2369 = vmatpush1.msra.mxu0 0.0
  %2370 = vmatprep.subr.mxu0 0.0
  %2371 = vmatpush1.msra.mxu0 0.0
  %2372 = vmatprep.subr.mxu0 0.0
  %2373 = vmatpush1.msra.mxu0 0.0
  %2374 = vmatprep.subr.mxu0 0.0
  %2375 = vmatpush1.msra.mxu0 0.0
  %2376 = vmatprep.subr.mxu0 0.0
  %2377 = vmatpush1.msra.mxu0 0.0
  %2378 = vmatprep.subr.mxu0 0.0
  %2379 = vmatpush1.msra.mxu0 0.0
  %2380 = vmatprep.subr.mxu0 0.0
  %2381 = vmatpush1.msra.mxu0 0.0
  %2382 = vmatprep.subr.mxu0 0.0
  %2383 = vmatpush1.msra.mxu0 0.0
  %2384 = vmatprep.subr.mxu0 0.0
  %2385 = vmatpush1.msra.mxu0 0.0
  %2386 = vmatprep.subr.mxu0 0.0
  %2387 = vmatpush1.msra.mxu0 0.0
  %2388 = vmatprep.subr.mxu0 0.0
  %2389 = vmatpush1.msra.mxu0 0.0
  %2390 = vmatprep.subr.mxu0 0.0
  %2391 = vmatpush1.msra.mxu0 0.0
  %2392 = vmatprep.subr.mxu0 0.0
  %2393 = vmatpush1.msra.mxu0 0.0
  %2394 = vmatprep.subr.mxu0 0.0
  %2395 = vmatpush1.msra.mxu0 0.0
  %2396 = vmatprep.subr.mxu0 0.0
  %2397 = vmatpush1.msra.mxu0 0.0
  %2398 = vmatprep.subr.mxu0 0.0
  %2399 = vmatpush1.msra.mxu0 0.0
  %2400 = vmatprep.subr.mxu0 0.0
  %2401 = vmatpush1.msra.mxu0 0.0
  %2402 = vmatprep.mubr.f32.mxu0 0.0
  %2403 = vmatmul.mubr.f32.gmra.mrb[0].mxu0 %v2334
  %v2404 = vpop.f32.mrb[0].mxu0
  %v2405 = vadd.f32 %v1971, %v2404
  %v2406 = vpop.f32.mrb[0].mxu0
  %2407 = vmatprep.mubr.f32.mxu0 0.0
  %2408 = vmatmul.mubr.f32.gmra.mrb[0].mxu0 %v2336
  %v2409 = vpop.f32.mrb[0].mxu0
  %v2410 = vadd.f32 %v1971, %v2409
  %v2411 = vpop.f32.mrb[0].mxu0
  %2412 = vdwg.mxu0
  %v2413 = vadd.f32 %v2320, %v2405
  %v2414 = vadd.f32 %v2325, %v2410
  %v2415 = vxor.u32 %v2413, 2147483648
  %v2416 = vxor.u32 %v2414, 2147483648
  %v2417 = vmul.f32 %v2415, 1.442695
  %v2418 = vpow.pop %v2417
  %v2419 = vmul.f32 %v2416, 1.442695
  %v2420 = vpow.pop %v2419
  %v2421 = vadd.f32 %v2418, 1.0
  %v2422 = vadd.f32 %v2420, 1.0
  %v2423 = vrcp.pop %v2421
  %v2424 = vmul.f32 1.0, %v2423
  %v2425 = vrcp.pop %v2422
  %v2426 = vmul.f32 1.0, %v2425
  %2429 = vrot.lane.b32.xlu0 %v2405, 108
  %v2430 = vpop.permute.xlu0 %2429
  %2431 = vrot.lane.b32.xlu0 %v2410, 108
  %v2432 = vpop.permute.xlu0 %2431
  %v2435 = vmul.f32 %v2424, %v2430
  %v2436 = vmul.f32 %v2426, %v2432
  %2439 = vrot.lane.b32.xlu0 %v2435, 20
  %v2440 = vpop.permute.xlu0 %2439
  %2441 = vrot.lane.b32.xlu0 %v2436, 20
  %v2442 = vpop.permute.xlu0 %2441
  %v2445 = vadd.f32 %v2320, %v2440
  %v2446 = vadd.f32 %v2325, %v2442
  %v2447 = vtanh.pop %v2445
  %v2448 = vtanh.pop %v2446
  %v2449 = vsub.f32 1.0, %v2424
  %v2450 = vsub.f32 1.0, %v2426
  %2453 = vrot.lane.b32.xlu0 %v2447, 118
  %v2454 = vpop.permute.xlu0 %2453
  %2455 = vrot.lane.b32.xlu0 %v2448, 118
  %v2456 = vpop.permute.xlu0 %2455
  %v2459 = vmul.f32 %v2449, %v2454
  %v2460 = vmul.f32 %v2450, %v2456
  %v2461 = vmul.f32 %v2424, %v2100
  %v2462 = vmul.f32 %v2426, %v2101
  %v2463 = vadd.f32 %v2459, %v2461
  %v2464 = vadd.f32 %v2460, %v2462
  %2465 = vmatprep.subr.mxu0 0.0
  %2466 = vmatpush1.msra.mxu0 %v57
  %2467 = vmatprep.subr.mxu0 0.0
  %2468 = vmatpush1.msra.mxu0 %v1747
  %2469 = vmatprep.subr.mxu0 0.0
  %2470 = vmatpush1.msra.mxu0 0.0
  %2471 = vmatprep.subr.mxu0 0.0
  %2472 = vmatpush1.msra.mxu0 0.0
  %2473 = vmatprep.subr.mxu0 0.0
  %2474 = vmatpush1.msra.mxu0 0.0
  %2475 = vmatprep.subr.mxu0 0.0
  %2476 = vmatpush1.msra.mxu0 0.0
  %2477 = vmatprep.subr.mxu0 0.0
  %2478 = vmatpush1.msra.mxu0 0.0
  %2479 = vmatprep.subr.mxu0 0.0
  %2480 = vmatpush1.msra.mxu0 0.0
  %2481 = vmatprep.subr.mxu0 0.0
  %2482 = vmatpush1.msra.mxu0 0.0
  %2483 = vmatprep.subr.mxu0 0.0
  %2484 = vmatpush1.msra.mxu0 0.0
  %2485 = vmatprep.subr.mxu0 0.0
  %2486 = vmatpush1.msra.mxu0 0.0
  %2487 = vmatprep.subr.mxu0 0.0
  %2488 = vmatpush1.msra.mxu0 0.0
  %2489 = vmatprep.subr.mxu0 0.0
  %2490 = vmatpush1.msra.mxu0 0.0
  %2491 = vmatprep.subr.mxu0 0.0
  %2492 = vmatpush1.msra.mxu0 0.0
  %2493 = vmatprep.subr.mxu0 0.0
  %2494 = vmatpush1.msra.mxu0 0.0
  %2495 = vmatprep.subr.mxu0 0.0
  %2496 = vmatpush1.msra.mxu0 0.0
  %2497 = vmatprep.subr.mxu0 0.0
  %2498 = vmatpush1.msra.mxu0 0.0
  %2499 = vmatprep.subr.mxu0 0.0
  %2500 = vmatpush1.msra.mxu0 0.0
  %2501 = vmatprep.subr.mxu0 0.0
  %2502 = vmatpush1.msra.mxu0 0.0
  %2503 = vmatprep.subr.mxu0 0.0
  %2504 = vmatpush1.msra.mxu0 0.0
  %2505 = vmatprep.subr.mxu0 0.0
  %2506 = vmatpush1.msra.mxu0 0.0
  %2507 = vmatprep.subr.mxu0 0.0
  %2508 = vmatpush1.msra.mxu0 0.0
  %2509 = vmatprep.subr.mxu0 0.0
  %2510 = vmatpush1.msra.mxu0 0.0
  %2511 = vmatprep.subr.mxu0 0.0
  %2512 = vmatpush1.msra.mxu0 0.0
  %2513 = vmatprep.subr.mxu0 0.0
  %2514 = vmatpush1.msra.mxu0 0.0
  %2515 = vmatprep.subr.mxu0 0.0
  %2516 = vmatpush1.msra.mxu0 0.0
  %2517 = vmatprep.subr.mxu0 0.0
  %2518 = vmatpush1.msra.mxu0 0.0
  %2519 = vmatprep.subr.mxu0 0.0
  %2520 = vmatpush1.msra.mxu0 0.0
  %2521 = vmatprep.subr.mxu0 0.0
  %2522 = vmatpush1.msra.mxu0 0.0
  %2523 = vmatprep.subr.mxu0 0.0
  %2524 = vmatpush1.msra.mxu0 0.0
  %2525 = vmatprep.subr.mxu0 0.0
  %2526 = vmatpush1.msra.mxu0 0.0
  %2527 = vmatprep.subr.mxu0 0.0
  %2528 = vmatpush1.msra.mxu0 0.0
  %2529 = vmatprep.mubr.f32.mxu0 0.0
  %2530 = vmatmul.mubr.f32.gmra.mrb[0].mxu0 %v2249
  %v2531 = vpop.f32.mrb[0].mxu0
  %v2532 = vadd.f32 %v1741, %v2531
  %v2533 = vpop.f32.mrb[0].mxu0
  %2534 = vmatprep.mubr.f32.mxu0 0.0
  %2535 = vmatmul.mubr.f32.gmra.mrb[0].mxu0 %v2251
  %v2536 = vpop.f32.mrb[0].mxu0
  %v2537 = vadd.f32 %v1741, %v2536
  %v2538 = vpop.f32.mrb[0].mxu0
  %2539 = vdwg.mxu0
  %v2542 = vrot.slane %v2532, 4
  %v2543 = vrot.slane %v2537, 4
  %v2544 = vsel %vm938, %v2542, %v2543
  %v2547 = vadd.f32 %v1612, %v2542
  %v2548 = vadd.f32 %v1617, %v2544
  %v2549 = vxor.u32 %v2547, 2147483648
  %v2550 = vxor.u32 %v2548, 2147483648
  %v2551 = vmul.f32 %v2549, 1.442695
  %v2552 = vpow.pop %v2551
  %v2553 = vmul.f32 %v2550, 1.442695
  %v2554 = vpow.pop %v2553
  %v2555 = vadd.f32 %v2552, 1.0
  %v2556 = vadd.f32 %v2554, 1.0
  %v2557 = vrcp.pop %v2555
  %v2558 = vmul.f32 1.0, %v2557
  %v2559 = vrcp.pop %v2556
  %v2560 = vmul.f32 1.0, %v2559
  %2561 = vrot.lane.b32.xlu0 %v2542, 108
  %v2562 = vpop.permute.xlu0 %2561
  %2563 = vrot.lane.b32.xlu0 %v2544, 108
  %v2564 = vpop.permute.xlu0 %2563
  %v2567 = vmul.f32 %v2558, %v2562
  %v2568 = vmul.f32 %v2560, %v2564
  %2571 = vrot.lane.b32.xlu0 %v2567, 20
  %v2572 = vpop.permute.xlu0 %2571
  %2573 = vrot.lane.b32.xlu0 %v2568, 20
  %v2574 = vpop.permute.xlu0 %2573
  %v2577 = vadd.f32 %v1612, %v2572
  %v2578 = vadd.f32 %v1617, %v2574
  %v2579 = vtanh.pop %v2577
  %v2580 = vtanh.pop %v2578
  %v2581 = vsub.f32 1.0, %v2558
  %v2582 = vsub.f32 1.0, %v2560
  %2585 = vrot.lane.b32.xlu0 %v2579, 118
  %v2586 = vpop.permute.xlu0 %2585
  %2587 = vrot.lane.b32.xlu0 %v2580, 118
  %v2588 = vpop.permute.xlu0 %2587
  %v2591 = vmul.f32 %v2581, %v2586
  %v2592 = vmul.f32 %v2582, %v2588
  %v2593 = vrot.slane %v2237, 6
  %v2594 = vrot.slane %v2238, 6
  %v2595 = vsel %vm1745, %v2593, %v2594
  %v2598 = vmul.f32 %v2558, %v2593
  %v2599 = vmul.f32 %v2560, %v2595
  %v2600 = vadd.f32 %v2591, %v2598
  %v2601 = vadd.f32 %v2592, %v2599
  %v2604 = vrot.slane %v2600, 4
  %v2605 = vrot.slane %v2601, 4
  %v2606 = vsel %vm938, %v2604, %v2605
  %2607 = vrot.lane.b32.xlu0 %v2606, 118
  %v2608 = vpop.permute.xlu0 %2607
  %2609 = vrot.lane.b32.xlu0 %v2605, 118
  %v2610 = vpop.permute.xlu0 %2609
  %v2611 = vsel %vm365, %v2608, 0
  %v2613 = vsel %vm365, %v2610, 0
  %2615 = vmatprep.subr.mxu0 0.0
  %2616 = vmatpush1.msra.mxu0 %v59
  %2617 = vmatprep.subr.mxu0 0.0
  %2618 = vmatpush1.msra.mxu0 %v1891
  %2619 = vmatprep.subr.mxu0 0.0
  %2620 = vmatpush1.msra.mxu0 0.0
  %2621 = vmatprep.subr.mxu0 0.0
  %2622 = vmatpush1.msra.mxu0 0.0
  %2623 = vmatprep.subr.mxu0 0.0
  %2624 = vmatpush1.msra.mxu0 0.0
  %2625 = vmatprep.subr.mxu0 0.0
  %2626 = vmatpush1.msra.mxu0 0.0
  %2627 = vmatprep.subr.mxu0 0.0
  %2628 = vmatpush1.msra.mxu0 0.0
  %2629 = vmatprep.subr.mxu0 0.0
  %2630 = vmatpush1.msra.mxu0 0.0
  %2631 = vmatprep.subr.mxu0 0.0
  %2632 = vmatpush1.msra.mxu0 0.0
  %2633 = vmatprep.subr.mxu0 0.0
  %2634 = vmatpush1.msra.mxu0 0.0
  %2635 = vmatprep.subr.mxu0 0.0
  %2636 = vmatpush1.msra.mxu0 0.0
  %2637 = vmatprep.subr.mxu0 0.0
  %2638 = vmatpush1.msra.mxu0 0.0
  %2639 = vmatprep.subr.mxu0 0.0
  %2640 = vmatpush1.msra.mxu0 0.0
  %2641 = vmatprep.subr.mxu0 0.0
  %2642 = vmatpush1.msra.mxu0 0.0
  %2643 = vmatprep.subr.mxu0 0.0
  %2644 = vmatpush1.msra.mxu0 0.0
  %2645 = vmatprep.subr.mxu0 0.0
  %2646 = vmatpush1.msra.mxu0 0.0
  %2647 = vmatprep.subr.mxu0 0.0
  %2648 = vmatpush1.msra.mxu0 0.0
  %2649 = vmatprep.subr.mxu0 0.0
  %2650 = vmatpush1.msra.mxu0 0.0
  %2651 = vmatprep.subr.mxu0 0.0
  %2652 = vmatpush1.msra.mxu0 0.0
  %2653 = vmatprep.subr.mxu0 0.0
  %2654 = vmatpush1.msra.mxu0 0.0
  %2655 = vmatprep.subr.mxu0 0.0
  %2656 = vmatpush1.msra.mxu0 0.0
  %2657 = vmatprep.subr.mxu0 0.0
  %2658 = vmatpush1.msra.mxu0 0.0
  %2659 = vmatprep.subr.mxu0 0.0
  %2660 = vmatpush1.msra.mxu0 0.0
  %2661 = vmatprep.subr.mxu0 0.0
  %2662 = vmatpush1.msra.mxu0 0.0
  %2663 = vmatprep.subr.mxu0 0.0
  %2664 = vmatpush1.msra.mxu0 0.0
  %2665 = vmatprep.subr.mxu0 0.0
  %2666 = vmatpush1.msra.mxu0 0.0
  %2667 = vmatprep.subr.mxu0 0.0
  %2668 = vmatpush1.msra.mxu0 0.0
  %2669 = vmatprep.subr.mxu0 0.0
  %2670 = vmatpush1.msra.mxu0 0.0
  %2671 = vmatprep.subr.mxu0 0.0
  %2672 = vmatpush1.msra.mxu0 0.0
  %2673 = vmatprep.subr.mxu0 0.0
  %2674 = vmatpush1.msra.mxu0 0.0
  %2675 = vmatprep.subr.mxu0 0.0
  %2676 = vmatpush1.msra.mxu0 0.0
  %2677 = vmatprep.subr.mxu0 0.0
  %2678 = vmatpush1.msra.mxu0 0.0
  %2679 = vmatprep.mubr.f32.mxu0 0.0
  %2680 = vmatmul.mubr.f32.gmra.mrb[0].mxu0 %v2611
  %v2681 = vpop.f32.mrb[0].mxu0
  %v2682 = vadd.f32 %v1879, %v2681
  %v2683 = vpop.f32.mrb[0].mxu0
  %2684 = vmatprep.mubr.f32.mxu0 0.0
  %2685 = vmatmul.mubr.f32.gmra.mrb[0].mxu0 %v2613
  %v2686 = vpop.f32.mrb[0].mxu0
  %v2687 = vadd.f32 %v1879, %v2686
  %v2688 = vpop.f32.mrb[0].mxu0
  %2689 = vdwg.mxu0
  %2692 = vrot.lane.b32.xlu0 %v2463, 118
  %v2693 = vpop.permute.xlu0 %2692
  %2694 = vrot.lane.b32.xlu0 %v2464, 118
  %v2695 = vpop.permute.xlu0 %2694
  %v2696 = vsel %vm365, %v2693, 0
  %v2698 = vsel %vm365, %v2695, 0
  %2700 = vmatprep.subr.mxu0 0.0
  %2701 = vmatpush1.msra.mxu0 %v61
  %2702 = vmatprep.subr.mxu0 0.0
  %2703 = vmatpush1.msra.mxu0 %v1973
  %2704 = vmatprep.subr.mxu0 0.0
  %2705 = vmatpush1.msra.mxu0 0.0
  %2706 = vmatprep.subr.mxu0 0.0
  %2707 = vmatpush1.msra.mxu0 0.0
  %2708 = vmatprep.subr.mxu0 0.0
  %2709 = vmatpush1.msra.mxu0 0.0
  %2710 = vmatprep.subr.mxu0 0.0
  %2711 = vmatpush1.msra.mxu0 0.0
  %2712 = vmatprep.subr.mxu0 0.0
  %2713 = vmatpush1.msra.mxu0 0.0
  %2714 = vmatprep.subr.mxu0 0.0
  %2715 = vmatpush1.msra.mxu0 0.0
  %2716 = vmatprep.subr.mxu0 0.0
  %2717 = vmatpush1.msra.mxu0 0.0
  %2718 = vmatprep.subr.mxu0 0.0
  %2719 = vmatpush1.msra.mxu0 0.0
  %2720 = vmatprep.subr.mxu0 0.0
  %2721 = vmatpush1.msra.mxu0 0.0
  %2722 = vmatprep.subr.mxu0 0.0
  %2723 = vmatpush1.msra.mxu0 0.0
  %2724 = vmatprep.subr.mxu0 0.0
  %2725 = vmatpush1.msra.mxu0 0.0
  %2726 = vmatprep.subr.mxu0 0.0
  %2727 = vmatpush1.msra.mxu0 0.0
  %2728 = vmatprep.subr.mxu0 0.0
  %2729 = vmatpush1.msra.mxu0 0.0
  %2730 = vmatprep.subr.mxu0 0.0
  %2731 = vmatpush1.msra.mxu0 0.0
  %2732 = vmatprep.subr.mxu0 0.0
  %2733 = vmatpush1.msra.mxu0 0.0
  %2734 = vmatprep.subr.mxu0 0.0
  %2735 = vmatpush1.msra.mxu0 0.0
  %2736 = vmatprep.subr.mxu0 0.0
  %2737 = vmatpush1.msra.mxu0 0.0
  %2738 = vmatprep.subr.mxu0 0.0
  %2739 = vmatpush1.msra.mxu0 0.0
  %2740 = vmatprep.subr.mxu0 0.0
  %2741 = vmatpush1.msra.mxu0 0.0
  %2742 = vmatprep.subr.mxu0 0.0
  %2743 = vmatpush1.msra.mxu0 0.0
  %2744 = vmatprep.subr.mxu0 0.0
  %2745 = vmatpush1.msra.mxu0 0.0
  %2746 = vmatprep.subr.mxu0 0.0
  %2747 = vmatpush1.msra.mxu0 0.0
  %2748 = vmatprep.subr.mxu0 0.0
  %2749 = vmatpush1.msra.mxu0 0.0
  %2750 = vmatprep.subr.mxu0 0.0
  %2751 = vmatpush1.msra.mxu0 0.0
  %2752 = vmatprep.subr.mxu0 0.0
  %2753 = vmatpush1.msra.mxu0 0.0
  %2754 = vmatprep.subr.mxu0 0.0
  %2755 = vmatpush1.msra.mxu0 0.0
  %2756 = vmatprep.subr.mxu0 0.0
  %2757 = vmatpush1.msra.mxu0 0.0
  %2758 = vmatprep.subr.mxu0 0.0
  %2759 = vmatpush1.msra.mxu0 0.0
  %2760 = vmatprep.subr.mxu0 0.0
  %2761 = vmatpush1.msra.mxu0 0.0
  %2762 = vmatprep.subr.mxu0 0.0
  %2763 = vmatpush1.msra.mxu0 0.0
  %2764 = vmatprep.mubr.f32.mxu0 0.0
  %2765 = vmatmul.mubr.f32.gmra.mrb[0].mxu0 %v2696
  %v2766 = vpop.f32.mrb[0].mxu0
  %v2767 = vadd.f32 %v1971, %v2766
  %v2768 = vpop.f32.mrb[0].mxu0
  %2769 = vmatprep.mubr.f32.mxu0 0.0
  %2770 = vmatmul.mubr.f32.gmra.mrb[0].mxu0 %v2698
  %v2771 = vpop.f32.mrb[0].mxu0
  %v2772 = vadd.f32 %v1971, %v2771
  %v2773 = vpop.f32.mrb[0].mxu0
  %2774 = vdwg.mxu0
  %v2775 = vadd.f32 %v2682, %v2767
  %v2776 = vadd.f32 %v2687, %v2772
  %v2777 = vxor.u32 %v2775, 2147483648
  %v2778 = vxor.u32 %v2776, 2147483648
  %v2779 = vmul.f32 %v2777, 1.442695
  %v2780 = vpow.pop %v2779
  %v2781 = vmul.f32 %v2778, 1.442695
  %v2782 = vpow.pop %v2781
  %v2783 = vadd.f32 %v2780, 1.0
  %v2784 = vadd.f32 %v2782, 1.0
  %v2785 = vrcp.pop %v2783
  %v2786 = vmul.f32 1.0, %v2785
  %v2787 = vrcp.pop %v2784
  %v2788 = vmul.f32 1.0, %v2787
  %2791 = vrot.lane.b32.xlu0 %v2767, 108
  %v2792 = vpop.permute.xlu0 %2791
  %2793 = vrot.lane.b32.xlu0 %v2772, 108
  %v2794 = vpop.permute.xlu0 %2793
  %v2797 = vmul.f32 %v2786, %v2792
  %v2798 = vmul.f32 %v2788, %v2794
  %2801 = vrot.lane.b32.xlu0 %v2797, 20
  %v2802 = vpop.permute.xlu0 %2801
  %2803 = vrot.lane.b32.xlu0 %v2798, 20
  %v2804 = vpop.permute.xlu0 %2803
  %v2807 = vadd.f32 %v2682, %v2802
  %v2808 = vadd.f32 %v2687, %v2804
  %v2809 = vtanh.pop %v2807
  %v2810 = vtanh.pop %v2808
  %v2811 = vsub.f32 1.0, %v2786
  %v2812 = vsub.f32 1.0, %v2788
  %2815 = vrot.lane.b32.xlu0 %v2809, 118
  %v2816 = vpop.permute.xlu0 %2815
  %2817 = vrot.lane.b32.xlu0 %v2810, 118
  %v2818 = vpop.permute.xlu0 %2817
  %v2821 = vmul.f32 %v2811, %v2816
  %v2822 = vmul.f32 %v2812, %v2818
  %v2823 = vmul.f32 %v2786, %v2463
  %v2824 = vmul.f32 %v2788, %v2464
  %v2825 = vadd.f32 %v2821, %v2823
  %v2826 = vadd.f32 %v2822, %v2824
  %2827 = vmatprep.subr.mxu0 0.0
  %2828 = vmatpush1.msra.mxu0 %v57
  %2829 = vmatprep.subr.mxu0 0.0
  %2830 = vmatpush1.msra.mxu0 %v1747
  %2831 = vmatprep.subr.mxu0 0.0
  %2832 = vmatpush1.msra.mxu0 0.0
  %2833 = vmatprep.subr.mxu0 0.0
  %2834 = vmatpush1.msra.mxu0 0.0
  %2835 = vmatprep.subr.mxu0 0.0
  %2836 = vmatpush1.msra.mxu0 0.0
  %2837 = vmatprep.subr.mxu0 0.0
  %2838 = vmatpush1.msra.mxu0 0.0
  %2839 = vmatprep.subr.mxu0 0.0
  %2840 = vmatpush1.msra.mxu0 0.0
  %2841 = vmatprep.subr.mxu0 0.0
  %2842 = vmatpush1.msra.mxu0 0.0
  %2843 = vmatprep.subr.mxu0 0.0
  %2844 = vmatpush1.msra.mxu0 0.0
  %2845 = vmatprep.subr.mxu0 0.0
  %2846 = vmatpush1.msra.mxu0 0.0
  %2847 = vmatprep.subr.mxu0 0.0
  %2848 = vmatpush1.msra.mxu0 0.0
  %2849 = vmatprep.subr.mxu0 0.0
  %2850 = vmatpush1.msra.mxu0 0.0
  %2851 = vmatprep.subr.mxu0 0.0
  %2852 = vmatpush1.msra.mxu0 0.0
  %2853 = vmatprep.subr.mxu0 0.0
  %2854 = vmatpush1.msra.mxu0 0.0
  %2855 = vmatprep.subr.mxu0 0.0
  %2856 = vmatpush1.msra.mxu0 0.0
  %2857 = vmatprep.subr.mxu0 0.0
  %2858 = vmatpush1.msra.mxu0 0.0
  %2859 = vmatprep.subr.mxu0 0.0
  %2860 = vmatpush1.msra.mxu0 0.0
  %2861 = vmatprep.subr.mxu0 0.0
  %2862 = vmatpush1.msra.mxu0 0.0
  %2863 = vmatprep.subr.mxu0 0.0
  %2864 = vmatpush1.msra.mxu0 0.0
  %2865 = vmatprep.subr.mxu0 0.0
  %2866 = vmatpush1.msra.mxu0 0.0
  %2867 = vmatprep.subr.mxu0 0.0
  %2868 = vmatpush1.msra.mxu0 0.0
  %2869 = vmatprep.subr.mxu0 0.0
  %2870 = vmatpush1.msra.mxu0 0.0
  %2871 = vmatprep.subr.mxu0 0.0
  %2872 = vmatpush1.msra.mxu0 0.0
  %2873 = vmatprep.subr.mxu0 0.0
  %2874 = vmatpush1.msra.mxu0 0.0
  %2875 = vmatprep.subr.mxu0 0.0
  %2876 = vmatpush1.msra.mxu0 0.0
  %2877 = vmatprep.subr.mxu0 0.0
  %2878 = vmatpush1.msra.mxu0 0.0
  %2879 = vmatprep.subr.mxu0 0.0
  %2880 = vmatpush1.msra.mxu0 0.0
  %2881 = vmatprep.subr.mxu0 0.0
  %2882 = vmatpush1.msra.mxu0 0.0
  %2883 = vmatprep.subr.mxu0 0.0
  %2884 = vmatpush1.msra.mxu0 0.0
  %2885 = vmatprep.subr.mxu0 0.0
  %2886 = vmatpush1.msra.mxu0 0.0
  %2887 = vmatprep.subr.mxu0 0.0
  %2888 = vmatpush1.msra.mxu0 0.0
  %2889 = vmatprep.subr.mxu0 0.0
  %2890 = vmatpush1.msra.mxu0 0.0
  %2891 = vmatprep.mubr.f32.mxu0 0.0
  %2892 = vmatmul.mubr.f32.gmra.mrb[0].mxu0 %v2611
  %v2893 = vpop.f32.mrb[0].mxu0
  %v2894 = vadd.f32 %v1741, %v2893
  %v2895 = vpop.f32.mrb[0].mxu0
  %2896 = vmatprep.mubr.f32.mxu0 0.0
  %2897 = vmatmul.mubr.f32.gmra.mrb[0].mxu0 %v2613
  %v2898 = vpop.f32.mrb[0].mxu0
  %v2899 = vadd.f32 %v1741, %v2898
  %v2900 = vpop.f32.mrb[0].mxu0
  %2901 = vdwg.mxu0
  %v2904 = vrot.slane %v2894, 2
  %v2905 = vrot.slane %v2899, 2
  %v2906 = vsel %vm2241, %v2904, %v2905
  %v2909 = vadd.f32 %v1617, %v2904
  %v2910 = vadd.f32 %v1622, %v2906
  %v2911 = vxor.u32 %v2909, 2147483648
  %v2912 = vxor.u32 %v2910, 2147483648
  %v2913 = vmul.f32 %v2911, 1.442695
  %v2914 = vpow.pop %v2913
  %v2915 = vmul.f32 %v2912, 1.442695
  %v2916 = vpow.pop %v2915
  %v2917 = vadd.f32 %v2914, 1.0
  %v2918 = vadd.f32 %v2916, 1.0
  %v2919 = vrcp.pop %v2917
  %v2920 = vmul.f32 1.0, %v2919
  %v2921 = vrcp.pop %v2918
  %v2922 = vmul.f32 1.0, %v2921
  %2923 = vrot.lane.b32.xlu0 %v2904, 108
  %v2924 = vpop.permute.xlu0 %2923
  %2925 = vrot.lane.b32.xlu0 %v2906, 108
  %v2926 = vpop.permute.xlu0 %2925
  %v2929 = vmul.f32 %v2920, %v2924
  %v2930 = vmul.f32 %v2922, %v2926
  %2933 = vrot.lane.b32.xlu0 %v2929, 20
  %v2934 = vpop.permute.xlu0 %2933
  %2935 = vrot.lane.b32.xlu0 %v2930, 20
  %v2936 = vpop.permute.xlu0 %2935
  %v2939 = vadd.f32 %v1617, %v2934
  %v2940 = vadd.f32 %v1622, %v2936
  %v2941 = vtanh.pop %v2939
  %v2942 = vtanh.pop %v2940
  %v2943 = vsub.f32 1.0, %v2920
  %v2944 = vsub.f32 1.0, %v2922
  %2947 = vrot.lane.b32.xlu0 %v2941, 118
  %v2948 = vpop.permute.xlu0 %2947
  %2949 = vrot.lane.b32.xlu0 %v2942, 118
  %v2950 = vpop.permute.xlu0 %2949
  %v2953 = vmul.f32 %v2943, %v2948
  %v2954 = vmul.f32 %v2944, %v2950
  %v2955 = vrot.slane %v2600, 6
  %v2956 = vrot.slane %v2601, 6
  %v2957 = vsel %vm1745, %v2955, %v2956
  %v2960 = vmul.f32 %v2920, %v2955
  %v2961 = vmul.f32 %v2922, %v2957
  %v2962 = vadd.f32 %v2953, %v2960
  %v2963 = vadd.f32 %v2954, %v2961
  %v2966 = vrot.slane %v2962, 6
  %v2967 = vrot.slane %v2963, 6
  %v2968 = vsel %vm1745, %v2966, %v2967
  %2969 = vrot.lane.b32.xlu0 %v2968, 118
  %v2970 = vpop.permute.xlu0 %2969
  %2971 = vrot.lane.b32.xlu0 %v2967, 118
  %v2972 = vpop.permute.xlu0 %2971
  %v2973 = vsel %vm365, %v2970, 0
  %v2975 = vsel %vm365, %v2972, 0
  %2977 = vmatprep.subr.mxu0 0.0
  %2978 = vmatpush1.msra.mxu0 %v59
  %2979 = vmatprep.subr.mxu0 0.0
  %2980 = vmatpush1.msra.mxu0 %v1891
  %2981 = vmatprep.subr.mxu0 0.0
  %2982 = vmatpush1.msra.mxu0 0.0
  %2983 = vmatprep.subr.mxu0 0.0
  %2984 = vmatpush1.msra.mxu0 0.0
  %2985 = vmatprep.subr.mxu0 0.0
  %2986 = vmatpush1.msra.mxu0 0.0
  %2987 = vmatprep.subr.mxu0 0.0
  %2988 = vmatpush1.msra.mxu0 0.0
  %2989 = vmatprep.subr.mxu0 0.0
  %2990 = vmatpush1.msra.mxu0 0.0
  %2991 = vmatprep.subr.mxu0 0.0
  %2992 = vmatpush1.msra.mxu0 0.0
  %2993 = vmatprep.subr.mxu0 0.0
  %2994 = vmatpush1.msra.mxu0 0.0
  %2995 = vmatprep.subr.mxu0 0.0
  %2996 = vmatpush1.msra.mxu0 0.0
  %2997 = vmatprep.subr.mxu0 0.0
  %2998 = vmatpush1.msra.mxu0 0.0
  %2999 = vmatprep.subr.mxu0 0.0
  %3000 = vmatpush1.msra.mxu0 0.0
  %3001 = vmatprep.subr.mxu0 0.0
  %3002 = vmatpush1.msra.mxu0 0.0
  %3003 = vmatprep.subr.mxu0 0.0
  %3004 = vmatpush1.msra.mxu0 0.0
  %3005 = vmatprep.subr.mxu0 0.0
  %3006 = vmatpush1.msra.mxu0 0.0
  %3007 = vmatprep.subr.mxu0 0.0
  %3008 = vmatpush1.msra.mxu0 0.0
  %3009 = vmatprep.subr.mxu0 0.0
  %3010 = vmatpush1.msra.mxu0 0.0
  %3011 = vmatprep.subr.mxu0 0.0
  %3012 = vmatpush1.msra.mxu0 0.0
  %3013 = vmatprep.subr.mxu0 0.0
  %3014 = vmatpush1.msra.mxu0 0.0
  %3015 = vmatprep.subr.mxu0 0.0
  %3016 = vmatpush1.msra.mxu0 0.0
  %3017 = vmatprep.subr.mxu0 0.0
  %3018 = vmatpush1.msra.mxu0 0.0
  %3019 = vmatprep.subr.mxu0 0.0
  %3020 = vmatpush1.msra.mxu0 0.0
  %3021 = vmatprep.subr.mxu0 0.0
  %3022 = vmatpush1.msra.mxu0 0.0
  %3023 = vmatprep.subr.mxu0 0.0
  %3024 = vmatpush1.msra.mxu0 0.0
  %3025 = vmatprep.subr.mxu0 0.0
  %3026 = vmatpush1.msra.mxu0 0.0
  %3027 = vmatprep.subr.mxu0 0.0
  %3028 = vmatpush1.msra.mxu0 0.0
  %3029 = vmatprep.subr.mxu0 0.0
  %3030 = vmatpush1.msra.mxu0 0.0
  %3031 = vmatprep.subr.mxu0 0.0
  %3032 = vmatpush1.msra.mxu0 0.0
  %3033 = vmatprep.subr.mxu0 0.0
  %3034 = vmatpush1.msra.mxu0 0.0
  %3035 = vmatprep.subr.mxu0 0.0
  %3036 = vmatpush1.msra.mxu0 0.0
  %3037 = vmatprep.subr.mxu0 0.0
  %3038 = vmatpush1.msra.mxu0 0.0
  %3039 = vmatprep.subr.mxu0 0.0
  %3040 = vmatpush1.msra.mxu0 0.0
  %3041 = vmatprep.mubr.f32.mxu0 0.0
  %3042 = vmatmul.mubr.f32.gmra.mrb[0].mxu0 %v2973
  %v3043 = vpop.f32.mrb[0].mxu0
  %v3044 = vadd.f32 %v1879, %v3043
  %v3045 = vpop.f32.mrb[0].mxu0
  %3046 = vmatprep.mubr.f32.mxu0 0.0
  %3047 = vmatmul.mubr.f32.gmra.mrb[0].mxu0 %v2975
  %v3048 = vpop.f32.mrb[0].mxu0
  %v3049 = vadd.f32 %v1879, %v3048
  %v3050 = vpop.f32.mrb[0].mxu0
  %3051 = vdwg.mxu0
  %3054 = vrot.lane.b32.xlu0 %v2825, 118
  %v3055 = vpop.permute.xlu0 %3054
  %3056 = vrot.lane.b32.xlu0 %v2826, 118
  %v3057 = vpop.permute.xlu0 %3056
  %v3058 = vsel %vm365, %v3055, 0
  %v3060 = vsel %vm365, %v3057, 0
  %3062 = vmatprep.subr.mxu0 0.0
  %3063 = vmatpush1.msra.mxu0 %v61
  %3064 = vmatprep.subr.mxu0 0.0
  %3065 = vmatpush1.msra.mxu0 %v1973
  %3066 = vmatprep.subr.mxu0 0.0
  %3067 = vmatpush1.msra.mxu0 0.0
  %3068 = vmatprep.subr.mxu0 0.0
  %3069 = vmatpush1.msra.mxu0 0.0
  %3070 = vmatprep.subr.mxu0 0.0
  %3071 = vmatpush1.msra.mxu0 0.0
  %3072 = vmatprep.subr.mxu0 0.0
  %3073 = vmatpush1.msra.mxu0 0.0
  %3074 = vmatprep.subr.mxu0 0.0
  %3075 = vmatpush1.msra.mxu0 0.0
  %3076 = vmatprep.subr.mxu0 0.0
  %3077 = vmatpush1.msra.mxu0 0.0
  %3078 = vmatprep.subr.mxu0 0.0
  %3079 = vmatpush1.msra.mxu0 0.0
  %3080 = vmatprep.subr.mxu0 0.0
  %3081 = vmatpush1.msra.mxu0 0.0
  %3082 = vmatprep.subr.mxu0 0.0
  %3083 = vmatpush1.msra.mxu0 0.0
  %3084 = vmatprep.subr.mxu0 0.0
  %3085 = vmatpush1.msra.mxu0 0.0
  %3086 = vmatprep.subr.mxu0 0.0
  %3087 = vmatpush1.msra.mxu0 0.0
  %3088 = vmatprep.subr.mxu0 0.0
  %3089 = vmatpush1.msra.mxu0 0.0
  %3090 = vmatprep.subr.mxu0 0.0
  %3091 = vmatpush1.msra.mxu0 0.0
  %3092 = vmatprep.subr.mxu0 0.0
  %3093 = vmatpush1.msra.mxu0 0.0
  %3094 = vmatprep.subr.mxu0 0.0
  %3095 = vmatpush1.msra.mxu0 0.0
  %3096 = vmatprep.subr.mxu0 0.0
  %3097 = vmatpush1.msra.mxu0 0.0
  %3098 = vmatprep.subr.mxu0 0.0
  %3099 = vmatpush1.msra.mxu0 0.0
  %3100 = vmatprep.subr.mxu0 0.0
  %3101 = vmatpush1.msra.mxu0 0.0
  %3102 = vmatprep.subr.mxu0 0.0
  %3103 = vmatpush1.msra.mxu0 0.0
  %3104 = vmatprep.subr.mxu0 0.0
  %3105 = vmatpush1.msra.mxu0 0.0
  %3106 = vmatprep.subr.mxu0 0.0
  %3107 = vmatpush1.msra.mxu0 0.0
  %3108 = vmatprep.subr.mxu0 0.0
  %3109 = vmatpush1.msra.mxu0 0.0
  %3110 = vmatprep.subr.mxu0 0.0
  %3111 = vmatpush1.msra.mxu0 0.0
  %3112 = vmatprep.subr.mxu0 0.0
  %3113 = vmatpush1.msra.mxu0 0.0
  %3114 = vmatprep.subr.mxu0 0.0
  %3115 = vmatpush1.msra.mxu0 0.0
  %3116 = vmatprep.subr.mxu0 0.0
  %3117 = vmatpush1.msra.mxu0 0.0
  %3118 = vmatprep.subr.mxu0 0.0
  %3119 = vmatpush1.msra.mxu0 0.0
  %3120 = vmatprep.subr.mxu0 0.0
  %3121 = vmatpush1.msra.mxu0 0.0
  %3122 = vmatprep.subr.mxu0 0.0
  %3123 = vmatpush1.msra.mxu0 0.0
  %3124 = vmatprep.subr.mxu0 0.0
  %3125 = vmatpush1.msra.mxu0 0.0
  %3126 = vmatprep.mubr.f32.mxu0 0.0
  %3127 = vmatmul.mubr.f32.gmra.mrb[0].mxu0 %v3058
  %v3128 = vpop.f32.mrb[0].mxu0
  %v3129 = vadd.f32 %v1971, %v3128
  %v3130 = vpop.f32.mrb[0].mxu0
  %3131 = vmatprep.mubr.f32.mxu0 0.0
  %3132 = vmatmul.mubr.f32.gmra.mrb[0].mxu0 %v3060
  %v3133 = vpop.f32.mrb[0].mxu0
  %v3134 = vadd.f32 %v1971, %v3133
  %v3135 = vpop.f32.mrb[0].mxu0
  %3136 = vdwg.mxu0
  %v3137 = vadd.f32 %v3044, %v3129
  %v3138 = vadd.f32 %v3049, %v3134
  %v3139 = vxor.u32 %v3137, 2147483648
  %v3140 = vxor.u32 %v3138, 2147483648
  %v3141 = vmul.f32 %v3139, 1.442695
  %v3142 = vpow.pop %v3141
  %v3143 = vmul.f32 %v3140, 1.442695
  %v3144 = vpow.pop %v3143
  %v3145 = vadd.f32 %v3142, 1.0
  %v3146 = vadd.f32 %v3144, 1.0
  %v3147 = vrcp.pop %v3145
  %v3148 = vmul.f32 1.0, %v3147
  %v3149 = vrcp.pop %v3146
  %v3150 = vmul.f32 1.0, %v3149
  %3153 = vrot.lane.b32.xlu0 %v3129, 108
  %v3154 = vpop.permute.xlu0 %3153
  %3155 = vrot.lane.b32.xlu0 %v3134, 108
  %v3156 = vpop.permute.xlu0 %3155
  %v3159 = vmul.f32 %v3148, %v3154
  %v3160 = vmul.f32 %v3150, %v3156
  %3163 = vrot.lane.b32.xlu0 %v3159, 20
  %v3164 = vpop.permute.xlu0 %3163
  %3165 = vrot.lane.b32.xlu0 %v3160, 20
  %v3166 = vpop.permute.xlu0 %3165
  %v3169 = vadd.f32 %v3044, %v3164
  %v3170 = vadd.f32 %v3049, %v3166
  %v3171 = vtanh.pop %v3169
  %v3172 = vtanh.pop %v3170
  %v3173 = vsub.f32 1.0, %v3148
  %v3174 = vsub.f32 1.0, %v3150
  %3177 = vrot.lane.b32.xlu0 %v3171, 118
  %v3178 = vpop.permute.xlu0 %3177
  %3179 = vrot.lane.b32.xlu0 %v3172, 118
  %v3180 = vpop.permute.xlu0 %3179
  %v3183 = vmul.f32 %v3173, %v3178
  %v3184 = vmul.f32 %v3174, %v3180
  %v3185 = vmul.f32 %v3148, %v2825
  %v3186 = vmul.f32 %v3150, %v2826
  %v3187 = vadd.f32 %v3183, %v3185
  %v3188 = vadd.f32 %v3184, %v3186
  %3189 = vmatprep.subr.mxu0 0.0
  %3190 = vmatpush1.msra.mxu0 %v57
  %3191 = vmatprep.subr.mxu0 0.0
  %3192 = vmatpush1.msra.mxu0 %v1747
  %3193 = vmatprep.subr.mxu0 0.0
  %3194 = vmatpush1.msra.mxu0 0.0
  %3195 = vmatprep.subr.mxu0 0.0
  %3196 = vmatpush1.msra.mxu0 0.0
  %3197 = vmatprep.subr.mxu0 0.0
  %3198 = vmatpush1.msra.mxu0 0.0
  %3199 = vmatprep.subr.mxu0 0.0
  %3200 = vmatpush1.msra.mxu0 0.0
  %3201 = vmatprep.subr.mxu0 0.0
  %3202 = vmatpush1.msra.mxu0 0.0
  %3203 = vmatprep.subr.mxu0 0.0
  %3204 = vmatpush1.msra.mxu0 0.0
  %3205 = vmatprep.subr.mxu0 0.0
  %3206 = vmatpush1.msra.mxu0 0.0
  %3207 = vmatprep.subr.mxu0 0.0
  %3208 = vmatpush1.msra.mxu0 0.0
  %3209 = vmatprep.subr.mxu0 0.0
  %3210 = vmatpush1.msra.mxu0 0.0
  %3211 = vmatprep.subr.mxu0 0.0
  %3212 = vmatpush1.msra.mxu0 0.0
  %3213 = vmatprep.subr.mxu0 0.0
  %3214 = vmatpush1.msra.mxu0 0.0
  %3215 = vmatprep.subr.mxu0 0.0
  %3216 = vmatpush1.msra.mxu0 0.0
  %3217 = vmatprep.subr.mxu0 0.0
  %3218 = vmatpush1.msra.mxu0 0.0
  %3219 = vmatprep.subr.mxu0 0.0
  %3220 = vmatpush1.msra.mxu0 0.0
  %3221 = vmatprep.subr.mxu0 0.0
  %3222 = vmatpush1.msra.mxu0 0.0
  %3223 = vmatprep.subr.mxu0 0.0
  %3224 = vmatpush1.msra.mxu0 0.0
  %3225 = vmatprep.subr.mxu0 0.0
  %3226 = vmatpush1.msra.mxu0 0.0
  %3227 = vmatprep.subr.mxu0 0.0
  %3228 = vmatpush1.msra.mxu0 0.0
  %3229 = vmatprep.subr.mxu0 0.0
  %3230 = vmatpush1.msra.mxu0 0.0
  %3231 = vmatprep.subr.mxu0 0.0
  %3232 = vmatpush1.msra.mxu0 0.0
  %3233 = vmatprep.subr.mxu0 0.0
  %3234 = vmatpush1.msra.mxu0 0.0
  %3235 = vmatprep.subr.mxu0 0.0
  %3236 = vmatpush1.msra.mxu0 0.0
  %3237 = vmatprep.subr.mxu0 0.0
  %3238 = vmatpush1.msra.mxu0 0.0
  %3239 = vmatprep.subr.mxu0 0.0
  %3240 = vmatpush1.msra.mxu0 0.0
  %3241 = vmatprep.subr.mxu0 0.0
  %3242 = vmatpush1.msra.mxu0 0.0
  %3243 = vmatprep.subr.mxu0 0.0
  %3244 = vmatpush1.msra.mxu0 0.0
  %3245 = vmatprep.subr.mxu0 0.0
  %3246 = vmatpush1.msra.mxu0 0.0
  %3247 = vmatprep.subr.mxu0 0.0
  %3248 = vmatpush1.msra.mxu0 0.0
  %3249 = vmatprep.subr.mxu0 0.0
  %3250 = vmatpush1.msra.mxu0 0.0
  %3251 = vmatprep.subr.mxu0 0.0
  %3252 = vmatpush1.msra.mxu0 0.0
  %3253 = vmatprep.mubr.f32.mxu0 0.0
  %3254 = vmatmul.mubr.f32.gmra.mrb[0].mxu0 %v2973
  %v3255 = vpop.f32.mrb[0].mxu0
  %v3256 = vadd.f32 %v1741, %v3255
  %v3257 = vpop.f32.mrb[0].mxu0
  %3258 = vmatprep.mubr.f32.mxu0 0.0
  %3259 = vmatmul.mubr.f32.gmra.mrb[0].mxu0 %v2975
  %v3260 = vpop.f32.mrb[0].mxu0
  %v3261 = vadd.f32 %v1741, %v3260
  %v3262 = vpop.f32.mrb[0].mxu0
  %3263 = vdwg.mxu0
  %v3264 = vadd.f32 %v1627, %v3256
  %v3265 = vadd.f32 %v1632, %v3261
  %v3266 = vxor.u32 %v3264, 2147483648
  %v3267 = vxor.u32 %v3265, 2147483648
  %v3268 = vmul.f32 %v3266, 1.442695
  %v3269 = vpow.pop %v3268
  %v3270 = vmul.f32 %v3267, 1.442695
  %v3271 = vpow.pop %v3270
  %v3272 = vadd.f32 %v3269, 1.0
  %v3273 = vadd.f32 %v3271, 1.0
  %v3274 = vrcp.pop %v3272
  %v3275 = vmul.f32 1.0, %v3274
  %v3276 = vrcp.pop %v3273
  %v3277 = vmul.f32 1.0, %v3276
  %3280 = vrot.lane.b32.xlu0 %v3256, 108
  %v3281 = vpop.permute.xlu0 %3280
  %3282 = vrot.lane.b32.xlu0 %v3261, 108
  %v3283 = vpop.permute.xlu0 %3282
  %v3286 = vmul.f32 %v3275, %v3281
  %v3287 = vmul.f32 %v3277, %v3283
  %3290 = vrot.lane.b32.xlu0 %v3286, 20
  %v3291 = vpop.permute.xlu0 %3290
  %3292 = vrot.lane.b32.xlu0 %v3287, 20
  %v3293 = vpop.permute.xlu0 %3292
  %v3296 = vadd.f32 %v1627, %v3291
  %v3297 = vadd.f32 %v1632, %v3293
  %v3298 = vtanh.pop %v3296
  %v3299 = vtanh.pop %v3297
  %v3300 = vsub.f32 1.0, %v3275
  %v3301 = vsub.f32 1.0, %v3277
  %3304 = vrot.lane.b32.xlu0 %v3298, 118
  %v3305 = vpop.permute.xlu0 %3304
  %3306 = vrot.lane.b32.xlu0 %v3299, 118
  %v3307 = vpop.permute.xlu0 %3306
  %v3310 = vmul.f32 %v3300, %v3305
  %v3311 = vmul.f32 %v3301, %v3307
  %v3314 = vmul.f32 %v3275, %v2968
  %v3315 = vmul.f32 %v3277, %v2967
  %v3316 = vadd.f32 %v3310, %v3314
  %v3317 = vadd.f32 %v3311, %v3315
  %3320 = vrot.lane.b32.xlu0 %v3316, 118
  %v3321 = vpop.permute.xlu0 %3320
  %3322 = vrot.lane.b32.xlu0 %v3317, 118
  %v3323 = vpop.permute.xlu0 %3322
  %v3324 = vsel %vm365, %v3321, 0
  %v3326 = vsel %vm365, %v3323, 0
  %3328 = vmatprep.subr.mxu0 0.0
  %3329 = vmatpush1.msra.mxu0 %v59
  %3330 = vmatprep.subr.mxu0 0.0
  %3331 = vmatpush1.msra.mxu0 %v1891
  %3332 = vmatprep.subr.mxu0 0.0
  %3333 = vmatpush1.msra.mxu0 0.0
  %3334 = vmatprep.subr.mxu0 0.0
  %3335 = vmatpush1.msra.mxu0 0.0
  %3336 = vmatprep.subr.mxu0 0.0
  %3337 = vmatpush1.msra.mxu0 0.0
  %3338 = vmatprep.subr.mxu0 0.0
  %3339 = vmatpush1.msra.mxu0 0.0
  %3340 = vmatprep.subr.mxu0 0.0
  %3341 = vmatpush1.msra.mxu0 0.0
  %3342 = vmatprep.subr.mxu0 0.0
  %3343 = vmatpush1.msra.mxu0 0.0
  %3344 = vmatprep.subr.mxu0 0.0
  %3345 = vmatpush1.msra.mxu0 0.0
  %3346 = vmatprep.subr.mxu0 0.0
  %3347 = vmatpush1.msra.mxu0 0.0
  %3348 = vmatprep.subr.mxu0 0.0
  %3349 = vmatpush1.msra.mxu0 0.0
  %3350 = vmatprep.subr.mxu0 0.0
  %3351 = vmatpush1.msra.mxu0 0.0
  %3352 = vmatprep.subr.mxu0 0.0
  %3353 = vmatpush1.msra.mxu0 0.0
  %3354 = vmatprep.subr.mxu0 0.0
  %3355 = vmatpush1.msra.mxu0 0.0
  %3356 = vmatprep.subr.mxu0 0.0
  %3357 = vmatpush1.msra.mxu0 0.0
  %3358 = vmatprep.subr.mxu0 0.0
  %3359 = vmatpush1.msra.mxu0 0.0
  %3360 = vmatprep.subr.mxu0 0.0
  %3361 = vmatpush1.msra.mxu0 0.0
  %3362 = vmatprep.subr.mxu0 0.0
  %3363 = vmatpush1.msra.mxu0 0.0
  %3364 = vmatprep.subr.mxu0 0.0
  %3365 = vmatpush1.msra.mxu0 0.0
  %3366 = vmatprep.subr.mxu0 0.0
  %3367 = vmatpush1.msra.mxu0 0.0
  %3368 = vmatprep.subr.mxu0 0.0
  %3369 = vmatpush1.msra.mxu0 0.0
  %3370 = vmatprep.subr.mxu0 0.0
  %3371 = vmatpush1.msra.mxu0 0.0
  %3372 = vmatprep.subr.mxu0 0.0
  %3373 = vmatpush1.msra.mxu0 0.0
  %3374 = vmatprep.subr.mxu0 0.0
  %3375 = vmatpush1.msra.mxu0 0.0
  %3376 = vmatprep.subr.mxu0 0.0
  %3377 = vmatpush1.msra.mxu0 0.0
  %3378 = vmatprep.subr.mxu0 0.0
  %3379 = vmatpush1.msra.mxu0 0.0
  %3380 = vmatprep.subr.mxu0 0.0
  %3381 = vmatpush1.msra.mxu0 0.0
  %3382 = vmatprep.subr.mxu0 0.0
  %3383 = vmatpush1.msra.mxu0 0.0
  %3384 = vmatprep.subr.mxu0 0.0
  %3385 = vmatpush1.msra.mxu0 0.0
  %3386 = vmatprep.subr.mxu0 0.0
  %3387 = vmatpush1.msra.mxu0 0.0
  %3388 = vmatprep.subr.mxu0 0.0
  %3389 = vmatpush1.msra.mxu0 0.0
  %3390 = vmatprep.subr.mxu0 0.0
  %3391 = vmatpush1.msra.mxu0 0.0
  %3392 = vmatprep.mubr.f32.mxu0 0.0
  %3393 = vmatmul.mubr.f32.gmra.mrb[0].mxu0 %v3324
  %v3394 = vpop.f32.mrb[0].mxu0
  %v3395 = vadd.f32 %v1879, %v3394
  %v3396 = vpop.f32.mrb[0].mxu0
  %3397 = vmatprep.mubr.f32.mxu0 0.0
  %3398 = vmatmul.mubr.f32.gmra.mrb[0].mxu0 %v3326
  %v3399 = vpop.f32.mrb[0].mxu0
  %v3400 = vadd.f32 %v1879, %v3399
  %v3401 = vpop.f32.mrb[0].mxu0
  %3402 = vdwg.mxu0
  %3405 = vrot.lane.b32.xlu0 %v3187, 118
  %v3406 = vpop.permute.xlu0 %3405
  %3407 = vrot.lane.b32.xlu0 %v3188, 118
  %v3408 = vpop.permute.xlu0 %3407
  %v3409 = vsel %vm365, %v3406, 0
  %v3411 = vsel %vm365, %v3408, 0
  %3413 = vmatprep.subr.mxu0 0.0
  %3414 = vmatpush1.msra.mxu0 %v61
  %3415 = vmatprep.subr.mxu0 0.0
  %3416 = vmatpush1.msra.mxu0 %v1973
  %3417 = vmatprep.subr.mxu0 0.0
  %3418 = vmatpush1.msra.mxu0 0.0
  %3419 = vmatprep.subr.mxu0 0.0
  %3420 = vmatpush1.msra.mxu0 0.0
  %3421 = vmatprep.subr.mxu0 0.0
  %3422 = vmatpush1.msra.mxu0 0.0
  %3423 = vmatprep.subr.mxu0 0.0
  %3424 = vmatpush1.msra.mxu0 0.0
  %3425 = vmatprep.subr.mxu0 0.0
  %3426 = vmatpush1.msra.mxu0 0.0
  %3427 = vmatprep.subr.mxu0 0.0
  %3428 = vmatpush1.msra.mxu0 0.0
  %3429 = vmatprep.subr.mxu0 0.0
  %3430 = vmatpush1.msra.mxu0 0.0
  %3431 = vmatprep.subr.mxu0 0.0
  %3432 = vmatpush1.msra.mxu0 0.0
  %3433 = vmatprep.subr.mxu0 0.0
  %3434 = vmatpush1.msra.mxu0 0.0
  %3435 = vmatprep.subr.mxu0 0.0
  %3436 = vmatpush1.msra.mxu0 0.0
  %3437 = vmatprep.subr.mxu0 0.0
  %3438 = vmatpush1.msra.mxu0 0.0
  %3439 = vmatprep.subr.mxu0 0.0
  %3440 = vmatpush1.msra.mxu0 0.0
  %3441 = vmatprep.subr.mxu0 0.0
  %3442 = vmatpush1.msra.mxu0 0.0
  %3443 = vmatprep.subr.mxu0 0.0
  %3444 = vmatpush1.msra.mxu0 0.0
  %3445 = vmatprep.subr.mxu0 0.0
  %3446 = vmatpush1.msra.mxu0 0.0
  %3447 = vmatprep.subr.mxu0 0.0
  %3448 = vmatpush1.msra.mxu0 0.0
  %3449 = vmatprep.subr.mxu0 0.0
  %3450 = vmatpush1.msra.mxu0 0.0
  %3451 = vmatprep.subr.mxu0 0.0
  %3452 = vmatpush1.msra.mxu0 0.0
  %3453 = vmatprep.subr.mxu0 0.0
  %3454 = vmatpush1.msra.mxu0 0.0
  %3455 = vmatprep.subr.mxu0 0.0
  %3456 = vmatpush1.msra.mxu0 0.0
  %3457 = vmatprep.subr.mxu0 0.0
  %3458 = vmatpush1.msra.mxu0 0.0
  %3459 = vmatprep.subr.mxu0 0.0
  %3460 = vmatpush1.msra.mxu0 0.0
  %3461 = vmatprep.subr.mxu0 0.0
  %3462 = vmatpush1.msra.mxu0 0.0
  %3463 = vmatprep.subr.mxu0 0.0
  %3464 = vmatpush1.msra.mxu0 0.0
  %3465 = vmatprep.subr.mxu0 0.0
  %3466 = vmatpush1.msra.mxu0 0.0
  %3467 = vmatprep.subr.mxu0 0.0
  %3468 = vmatpush1.msra.mxu0 0.0
  %3469 = vmatprep.subr.mxu0 0.0
  %3470 = vmatpush1.msra.mxu0 0.0
  %3471 = vmatprep.subr.mxu0 0.0
  %3472 = vmatpush1.msra.mxu0 0.0
  %3473 = vmatprep.subr.mxu0 0.0
  %3474 = vmatpush1.msra.mxu0 0.0
  %3475 = vmatprep.subr.mxu0 0.0
  %3476 = vmatpush1.msra.mxu0 0.0
  %3477 = vmatprep.mubr.f32.mxu0 0.0
  %3478 = vmatmul.mubr.f32.gmra.mrb[0].mxu0 %v3409
  %v3479 = vpop.f32.mrb[0].mxu0
  %v3480 = vadd.f32 %v1971, %v3479
  %v3481 = vpop.f32.mrb[0].mxu0
  %3482 = vmatprep.mubr.f32.mxu0 0.0
  %3483 = vmatmul.mubr.f32.gmra.mrb[0].mxu0 %v3411
  %v3484 = vpop.f32.mrb[0].mxu0
  %v3485 = vadd.f32 %v1971, %v3484
  %v3486 = vpop.f32.mrb[0].mxu0
  %3487 = vdwg.mxu0
  %v3488 = vadd.f32 %v3395, %v3480
  %v3489 = vadd.f32 %v3400, %v3485
  %v3490 = vxor.u32 %v3488, 2147483648
  %v3491 = vxor.u32 %v3489, 2147483648
  %v3492 = vmul.f32 %v3490, 1.442695
  %v3493 = vpow.pop %v3492
  %v3494 = vmul.f32 %v3491, 1.442695
  %v3495 = vpow.pop %v3494
  %v3496 = vadd.f32 %v3493, 1.0
  %v3497 = vadd.f32 %v3495, 1.0
  %v3498 = vrcp.pop %v3496
  %v3499 = vmul.f32 1.0, %v3498
  %v3500 = vrcp.pop %v3497
  %v3501 = vmul.f32 1.0, %v3500
  %3504 = vrot.lane.b32.xlu0 %v3480, 108
  %v3505 = vpop.permute.xlu0 %3504
  %3506 = vrot.lane.b32.xlu0 %v3485, 108
  %v3507 = vpop.permute.xlu0 %3506
  %v3510 = vmul.f32 %v3499, %v3505
  %v3511 = vmul.f32 %v3501, %v3507
  %3514 = vrot.lane.b32.xlu0 %v3510, 20
  %v3515 = vpop.permute.xlu0 %3514
  %3516 = vrot.lane.b32.xlu0 %v3511, 20
  %v3517 = vpop.permute.xlu0 %3516
  %v3520 = vadd.f32 %v3395, %v3515
  %v3521 = vadd.f32 %v3400, %v3517
  %v3522 = vtanh.pop %v3520
  %v3523 = vtanh.pop %v3521
  %v3524 = vsub.f32 1.0, %v3499
  %v3525 = vsub.f32 1.0, %v3501
  %3528 = vrot.lane.b32.xlu0 %v3522, 118
  %v3529 = vpop.permute.xlu0 %3528
  %3530 = vrot.lane.b32.xlu0 %v3523, 118
  %v3531 = vpop.permute.xlu0 %3530
  %v3534 = vmul.f32 %v3524, %v3529
  %v3535 = vmul.f32 %v3525, %v3531
  %v3536 = vmul.f32 %v3499, %v3187
  %v3537 = vmul.f32 %v3501, %v3188
  %v3538 = vadd.f32 %v3534, %v3536
  %v3539 = vadd.f32 %v3535, %v3537
  %3540 = vmatprep.subr.mxu0 0.0
  %3541 = vmatpush1.msra.mxu0 %v57
  %3542 = vmatprep.subr.mxu0 0.0
  %3543 = vmatpush1.msra.mxu0 %v1747
  %3544 = vmatprep.subr.mxu0 0.0
  %3545 = vmatpush1.msra.mxu0 0.0
  %3546 = vmatprep.subr.mxu0 0.0
  %3547 = vmatpush1.msra.mxu0 0.0
  %3548 = vmatprep.subr.mxu0 0.0
  %3549 = vmatpush1.msra.mxu0 0.0
  %3550 = vmatprep.subr.mxu0 0.0
  %3551 = vmatpush1.msra.mxu0 0.0
  %3552 = vmatprep.subr.mxu0 0.0
  %3553 = vmatpush1.msra.mxu0 0.0
  %3554 = vmatprep.subr.mxu0 0.0
  %3555 = vmatpush1.msra.mxu0 0.0
  %3556 = vmatprep.subr.mxu0 0.0
  %3557 = vmatpush1.msra.mxu0 0.0
  %3558 = vmatprep.subr.mxu0 0.0
  %3559 = vmatpush1.msra.mxu0 0.0
  %3560 = vmatprep.subr.mxu0 0.0
  %3561 = vmatpush1.msra.mxu0 0.0
  %3562 = vmatprep.subr.mxu0 0.0
  %3563 = vmatpush1.msra.mxu0 0.0
  %3564 = vmatprep.subr.mxu0 0.0
  %3565 = vmatpush1.msra.mxu0 0.0
  %3566 = vmatprep.subr.mxu0 0.0
  %3567 = vmatpush1.msra.mxu0 0.0
  %3568 = vmatprep.subr.mxu0 0.0
  %3569 = vmatpush1.msra.mxu0 0.0
  %3570 = vmatprep.subr.mxu0 0.0
  %3571 = vmatpush1.msra.mxu0 0.0
  %3572 = vmatprep.subr.mxu0 0.0
  %3573 = vmatpush1.msra.mxu0 0.0
  %3574 = vmatprep.subr.mxu0 0.0
  %3575 = vmatpush1.msra.mxu0 0.0
  %3576 = vmatprep.subr.mxu0 0.0
  %3577 = vmatpush1.msra.mxu0 0.0
  %3578 = vmatprep.subr.mxu0 0.0
  %3579 = vmatpush1.msra.mxu0 0.0
  %3580 = vmatprep.subr.mxu0 0.0
  %3581 = vmatpush1.msra.mxu0 0.0
  %3582 = vmatprep.subr.mxu0 0.0
  %3583 = vmatpush1.msra.mxu0 0.0
  %3584 = vmatprep.subr.mxu0 0.0
  %3585 = vmatpush1.msra.mxu0 0.0
  %3586 = vmatprep.subr.mxu0 0.0
  %3587 = vmatpush1.msra.mxu0 0.0
  %3588 = vmatprep.subr.mxu0 0.0
  %3589 = vmatpush1.msra.mxu0 0.0
  %3590 = vmatprep.subr.mxu0 0.0
  %3591 = vmatpush1.msra.mxu0 0.0
  %3592 = vmatprep.subr.mxu0 0.0
  %3593 = vmatpush1.msra.mxu0 0.0
  %3594 = vmatprep.subr.mxu0 0.0
  %3595 = vmatpush1.msra.mxu0 0.0
  %3596 = vmatprep.subr.mxu0 0.0
  %3597 = vmatpush1.msra.mxu0 0.0
  %3598 = vmatprep.subr.mxu0 0.0
  %3599 = vmatpush1.msra.mxu0 0.0
  %3600 = vmatprep.subr.mxu0 0.0
  %3601 = vmatpush1.msra.mxu0 0.0
  %3602 = vmatprep.subr.mxu0 0.0
  %3603 = vmatpush1.msra.mxu0 0.0
  %3604 = vmatprep.mubr.f32.mxu0 0.0
  %3605 = vmatmul.mubr.f32.gmra.mrb[0].mxu0 %v3324
  %v3606 = vpop.f32.mrb[0].mxu0
  %v3607 = vadd.f32 %v1741, %v3606
  %v3608 = vpop.f32.mrb[0].mxu0
  %3609 = vmatprep.mubr.f32.mxu0 0.0
  %3610 = vmatmul.mubr.f32.gmra.mrb[0].mxu0 %v3326
  %v3611 = vpop.f32.mrb[0].mxu0
  %v3612 = vadd.f32 %v1741, %v3611
  %v3613 = vpop.f32.mrb[0].mxu0
  %3614 = vdwg.mxu0
  %v3617 = vrot.slane %v3607, 6
  %v3618 = vrot.slane %v3612, 6
  %v3619 = vsel %vm1745, %v3617, %v3618
  %v3622 = vadd.f32 %v1632, %v3617
  %v3623 = vadd.f32 %v1637, %v3619
  %v3624 = vxor.u32 %v3622, 2147483648
  %v3625 = vxor.u32 %v3623, 2147483648
  %v3626 = vmul.f32 %v3624, 1.442695
  %v3627 = vpow.pop %v3626
  %v3628 = vmul.f32 %v3625, 1.442695
  %v3629 = vpow.pop %v3628
  %v3630 = vadd.f32 %v3627, 1.0
  %v3631 = vadd.f32 %v3629, 1.0
  %v3632 = vrcp.pop %v3630
  %v3633 = vmul.f32 1.0, %v3632
  %v3634 = vrcp.pop %v3631
  %v3635 = vmul.f32 1.0, %v3634
  %3636 = vrot.lane.b32.xlu0 %v3617, 108
  %v3637 = vpop.permute.xlu0 %3636
  %3638 = vrot.lane.b32.xlu0 %v3619, 108
  %v3639 = vpop.permute.xlu0 %3638
  %v3642 = vmul.f32 %v3633, %v3637
  %v3643 = vmul.f32 %v3635, %v3639
  %3646 = vrot.lane.b32.xlu0 %v3642, 20
  %v3647 = vpop.permute.xlu0 %3646
  %3648 = vrot.lane.b32.xlu0 %v3643, 20
  %v3649 = vpop.permute.xlu0 %3648
  %v3652 = vadd.f32 %v1632, %v3647
  %v3653 = vadd.f32 %v1637, %v3649
  %v3654 = vtanh.pop %v3652
  %v3655 = vtanh.pop %v3653
  %v3656 = vsub.f32 1.0, %v3633
  %v3657 = vsub.f32 1.0, %v3635
  %3660 = vrot.lane.b32.xlu0 %v3654, 118
  %v3661 = vpop.permute.xlu0 %3660
  %3662 = vrot.lane.b32.xlu0 %v3655, 118
  %v3663 = vpop.permute.xlu0 %3662
  %v3666 = vmul.f32 %v3656, %v3661
  %v3667 = vmul.f32 %v3657, %v3663
  %v3668 = vrot.slane %v3316, 6
  %v3669 = vrot.slane %v3317, 6
  %v3670 = vsel %vm1745, %v3668, %v3669
  %v3673 = vmul.f32 %v3633, %v3668
  %v3674 = vmul.f32 %v3635, %v3670
  %v3675 = vadd.f32 %v3666, %v3673
  %v3676 = vadd.f32 %v3667, %v3674
  %v3679 = vrot.slane %v3675, 2
  %v3680 = vrot.slane %v3676, 2
  %v3681 = vsel %vm2241, %v3679, %v3680
  %3682 = vrot.lane.b32.xlu0 %v3681, 118
  %v3683 = vpop.permute.xlu0 %3682
  %3684 = vrot.lane.b32.xlu0 %v3680, 118
  %v3685 = vpop.permute.xlu0 %3684
  %v3686 = vsel %vm365, %v3683, 0
  %v3688 = vsel %vm365, %v3685, 0
  %3690 = vmatprep.subr.mxu0 0.0
  %3691 = vmatpush1.msra.mxu0 %v59
  %3692 = vmatprep.subr.mxu0 0.0
  %3693 = vmatpush1.msra.mxu0 %v1891
  %3694 = vmatprep.subr.mxu0 0.0
  %3695 = vmatpush1.msra.mxu0 0.0
  %3696 = vmatprep.subr.mxu0 0.0
  %3697 = vmatpush1.msra.mxu0 0.0
  %3698 = vmatprep.subr.mxu0 0.0
  %3699 = vmatpush1.msra.mxu0 0.0
  %3700 = vmatprep.subr.mxu0 0.0
  %3701 = vmatpush1.msra.mxu0 0.0
  %3702 = vmatprep.subr.mxu0 0.0
  %3703 = vmatpush1.msra.mxu0 0.0
  %3704 = vmatprep.subr.mxu0 0.0
  %3705 = vmatpush1.msra.mxu0 0.0
  %3706 = vmatprep.subr.mxu0 0.0
  %3707 = vmatpush1.msra.mxu0 0.0
  %3708 = vmatprep.subr.mxu0 0.0
  %3709 = vmatpush1.msra.mxu0 0.0
  %3710 = vmatprep.subr.mxu0 0.0
  %3711 = vmatpush1.msra.mxu0 0.0
  %3712 = vmatprep.subr.mxu0 0.0
  %3713 = vmatpush1.msra.mxu0 0.0
  %3714 = vmatprep.subr.mxu0 0.0
  %3715 = vmatpush1.msra.mxu0 0.0
  %3716 = vmatprep.subr.mxu0 0.0
  %3717 = vmatpush1.msra.mxu0 0.0
  %3718 = vmatprep.subr.mxu0 0.0
  %3719 = vmatpush1.msra.mxu0 0.0
  %3720 = vmatprep.subr.mxu0 0.0
  %3721 = vmatpush1.msra.mxu0 0.0
  %3722 = vmatprep.subr.mxu0 0.0
  %3723 = vmatpush1.msra.mxu0 0.0
  %3724 = vmatprep.subr.mxu0 0.0
  %3725 = vmatpush1.msra.mxu0 0.0
  %3726 = vmatprep.subr.mxu0 0.0
  %3727 = vmatpush1.msra.mxu0 0.0
  %3728 = vmatprep.subr.mxu0 0.0
  %3729 = vmatpush1.msra.mxu0 0.0
  %3730 = vmatprep.subr.mxu0 0.0
  %3731 = vmatpush1.msra.mxu0 0.0
  %3732 = vmatprep.subr.mxu0 0.0
  %3733 = vmatpush1.msra.mxu0 0.0
  %3734 = vmatprep.subr.mxu0 0.0
  %3735 = vmatpush1.msra.mxu0 0.0
  %3736 = vmatprep.subr.mxu0 0.0
  %3737 = vmatpush1.msra.mxu0 0.0
  %3738 = vmatprep.subr.mxu0 0.0
  %3739 = vmatpush1.msra.mxu0 0.0
  %3740 = vmatprep.subr.mxu0 0.0
  %3741 = vmatpush1.msra.mxu0 0.0
  %3742 = vmatprep.subr.mxu0 0.0
  %3743 = vmatpush1.msra.mxu0 0.0
  %3744 = vmatprep.subr.mxu0 0.0
  %3745 = vmatpush1.msra.mxu0 0.0
  %3746 = vmatprep.subr.mxu0 0.0
  %3747 = vmatpush1.msra.mxu0 0.0
  %3748 = vmatprep.subr.mxu0 0.0
  %3749 = vmatpush1.msra.mxu0 0.0
  %3750 = vmatprep.subr.mxu0 0.0
  %3751 = vmatpush1.msra.mxu0 0.0
  %3752 = vmatprep.subr.mxu0 0.0
  %3753 = vmatpush1.msra.mxu0 0.0
  %3754 = vmatprep.mubr.f32.mxu0 0.0
  %3755 = vmatmul.mubr.f32.gmra.mrb[0].mxu0 %v3686
  %v3756 = vpop.f32.mrb[0].mxu0
  %v3757 = vadd.f32 %v1879, %v3756
  %v3758 = vpop.f32.mrb[0].mxu0
  %3759 = vmatprep.mubr.f32.mxu0 0.0
  %3760 = vmatmul.mubr.f32.gmra.mrb[0].mxu0 %v3688
  %v3761 = vpop.f32.mrb[0].mxu0
  %v3762 = vadd.f32 %v1879, %v3761
  %v3763 = vpop.f32.mrb[0].mxu0
  %3764 = vdwg.mxu0
  %3767 = vrot.lane.b32.xlu0 %v3538, 118
  %v3768 = vpop.permute.xlu0 %3767
  %3769 = vrot.lane.b32.xlu0 %v3539, 118
  %v3770 = vpop.permute.xlu0 %3769
  %v3771 = vsel %vm365, %v3768, 0
  %v3773 = vsel %vm365, %v3770, 0
  %3775 = vmatprep.subr.mxu0 0.0
  %3776 = vmatpush1.msra.mxu0 %v61
  %3777 = vmatprep.subr.mxu0 0.0
  %3778 = vmatpush1.msra.mxu0 %v1973
  %3779 = vmatprep.subr.mxu0 0.0
  %3780 = vmatpush1.msra.mxu0 0.0
  %3781 = vmatprep.subr.mxu0 0.0
  %3782 = vmatpush1.msra.mxu0 0.0
  %3783 = vmatprep.subr.mxu0 0.0
  %3784 = vmatpush1.msra.mxu0 0.0
  %3785 = vmatprep.subr.mxu0 0.0
  %3786 = vmatpush1.msra.mxu0 0.0
  %3787 = vmatprep.subr.mxu0 0.0
  %3788 = vmatpush1.msra.mxu0 0.0
  %3789 = vmatprep.subr.mxu0 0.0
  %3790 = vmatpush1.msra.mxu0 0.0
  %3791 = vmatprep.subr.mxu0 0.0
  %3792 = vmatpush1.msra.mxu0 0.0
  %3793 = vmatprep.subr.mxu0 0.0
  %3794 = vmatpush1.msra.mxu0 0.0
  %3795 = vmatprep.subr.mxu0 0.0
  %3796 = vmatpush1.msra.mxu0 0.0
  %3797 = vmatprep.subr.mxu0 0.0
  %3798 = vmatpush1.msra.mxu0 0.0
  %3799 = vmatprep.subr.mxu0 0.0
  %3800 = vmatpush1.msra.mxu0 0.0
  %3801 = vmatprep.subr.mxu0 0.0
  %3802 = vmatpush1.msra.mxu0 0.0
  %3803 = vmatprep.subr.mxu0 0.0
  %3804 = vmatpush1.msra.mxu0 0.0
  %3805 = vmatprep.subr.mxu0 0.0
  %3806 = vmatpush1.msra.mxu0 0.0
  %3807 = vmatprep.subr.mxu0 0.0
  %3808 = vmatpush1.msra.mxu0 0.0
  %3809 = vmatprep.subr.mxu0 0.0
  %3810 = vmatpush1.msra.mxu0 0.0
  %3811 = vmatprep.subr.mxu0 0.0
  %3812 = vmatpush1.msra.mxu0 0.0
  %3813 = vmatprep.subr.mxu0 0.0
  %3814 = vmatpush1.msra.mxu0 0.0
  %3815 = vmatprep.subr.mxu0 0.0
  %3816 = vmatpush1.msra.mxu0 0.0
  %3817 = vmatprep.subr.mxu0 0.0
  %3818 = vmatpush1.msra.mxu0 0.0
  %3819 = vmatprep.subr.mxu0 0.0
  %3820 = vmatpush1.msra.mxu0 0.0
  %3821 = vmatprep.subr.mxu0 0.0
  %3822 = vmatpush1.msra.mxu0 0.0
  %3823 = vmatprep.subr.mxu0 0.0
  %3824 = vmatpush1.msra.mxu0 0.0
  %3825 = vmatprep.subr.mxu0 0.0
  %3826 = vmatpush1.msra.mxu0 0.0
  %3827 = vmatprep.subr.mxu0 0.0
  %3828 = vmatpush1.msra.mxu0 0.0
  %3829 = vmatprep.subr.mxu0 0.0
  %3830 = vmatpush1.msra.mxu0 0.0
  %3831 = vmatprep.subr.mxu0 0.0
  %3832 = vmatpush1.msra.mxu0 0.0
  %3833 = vmatprep.subr.mxu0 0.0
  %3834 = vmatpush1.msra.mxu0 0.0
  %3835 = vmatprep.subr.mxu0 0.0
  %3836 = vmatpush1.msra.mxu0 0.0
  %3837 = vmatprep.subr.mxu0 0.0
  %3838 = vmatpush1.msra.mxu0 0.0
  %3839 = vmatprep.mubr.f32.mxu0 0.0
  %3840 = vmatmul.mubr.f32.gmra.mrb[0].mxu0 %v3771
  %v3841 = vpop.f32.mrb[0].mxu0
  %v3842 = vadd.f32 %v1971, %v3841
  %v3843 = vpop.f32.mrb[0].mxu0
  %3844 = vmatprep.mubr.f32.mxu0 0.0
  %3845 = vmatmul.mubr.f32.gmra.mrb[0].mxu0 %v3773
  %v3846 = vpop.f32.mrb[0].mxu0
  %v3847 = vadd.f32 %v1971, %v3846
  %v3848 = vpop.f32.mrb[0].mxu0
  %3849 = vdwg.mxu0
  %v3850 = vadd.f32 %v3757, %v3842
  %v3851 = vadd.f32 %v3762, %v3847
  %v3852 = vxor.u32 %v3850, 2147483648
  %v3853 = vxor.u32 %v3851, 2147483648
  %v3854 = vmul.f32 %v3852, 1.442695
  %v3855 = vpow.pop %v3854
  %v3856 = vmul.f32 %v3853, 1.442695
  %v3857 = vpow.pop %v3856
  %v3858 = vadd.f32 %v3855, 1.0
  %v3859 = vadd.f32 %v3857, 1.0
  %v3860 = vrcp.pop %v3858
  %v3861 = vmul.f32 1.0, %v3860
  %v3862 = vrcp.pop %v3859
  %v3863 = vmul.f32 1.0, %v3862
  %3866 = vrot.lane.b32.xlu0 %v3842, 108
  %v3867 = vpop.permute.xlu0 %3866
  %3868 = vrot.lane.b32.xlu0 %v3847, 108
  %v3869 = vpop.permute.xlu0 %3868
  %v3872 = vmul.f32 %v3861, %v3867
  %v3873 = vmul.f32 %v3863, %v3869
  %3876 = vrot.lane.b32.xlu0 %v3872, 20
  %v3877 = vpop.permute.xlu0 %3876
  %3878 = vrot.lane.b32.xlu0 %v3873, 20
  %v3879 = vpop.permute.xlu0 %3878
  %v3882 = vadd.f32 %v3757, %v3877
  %v3883 = vadd.f32 %v3762, %v3879
  %v3884 = vtanh.pop %v3882
  %v3885 = vtanh.pop %v3883
  %v3886 = vsub.f32 1.0, %v3861
  %v3887 = vsub.f32 1.0, %v3863
  %3890 = vrot.lane.b32.xlu0 %v3884, 118
  %v3891 = vpop.permute.xlu0 %3890
  %3892 = vrot.lane.b32.xlu0 %v3885, 118
  %v3893 = vpop.permute.xlu0 %3892
  %v3896 = vmul.f32 %v3886, %v3891
  %v3897 = vmul.f32 %v3887, %v3893
  %v3898 = vmul.f32 %v3861, %v3538
  %v3899 = vmul.f32 %v3863, %v3539
  %v3900 = vadd.f32 %v3896, %v3898
  %v3901 = vadd.f32 %v3897, %v3899
  %3902 = vmatprep.subr.mxu0 0.0
  %3903 = vmatpush1.msra.mxu0 %v57
  %3904 = vmatprep.subr.mxu0 0.0
  %3905 = vmatpush1.msra.mxu0 %v1747
  %3906 = vmatprep.subr.mxu0 0.0
  %3907 = vmatpush1.msra.mxu0 0.0
  %3908 = vmatprep.subr.mxu0 0.0
  %3909 = vmatpush1.msra.mxu0 0.0
  %3910 = vmatprep.subr.mxu0 0.0
  %3911 = vmatpush1.msra.mxu0 0.0
  %3912 = vmatprep.subr.mxu0 0.0
  %3913 = vmatpush1.msra.mxu0 0.0
  %3914 = vmatprep.subr.mxu0 0.0
  %3915 = vmatpush1.msra.mxu0 0.0
  %3916 = vmatprep.subr.mxu0 0.0
  %3917 = vmatpush1.msra.mxu0 0.0
  %3918 = vmatprep.subr.mxu0 0.0
  %3919 = vmatpush1.msra.mxu0 0.0
  %3920 = vmatprep.subr.mxu0 0.0
  %3921 = vmatpush1.msra.mxu0 0.0
  %3922 = vmatprep.subr.mxu0 0.0
  %3923 = vmatpush1.msra.mxu0 0.0
  %3924 = vmatprep.subr.mxu0 0.0
  %3925 = vmatpush1.msra.mxu0 0.0
  %3926 = vmatprep.subr.mxu0 0.0
  %3927 = vmatpush1.msra.mxu0 0.0
  %3928 = vmatprep.subr.mxu0 0.0
  %3929 = vmatpush1.msra.mxu0 0.0
  %3930 = vmatprep.subr.mxu0 0.0
  %3931 = vmatpush1.msra.mxu0 0.0
  %3932 = vmatprep.subr.mxu0 0.0
  %3933 = vmatpush1.msra.mxu0 0.0
  %3934 = vmatprep.subr.mxu0 0.0
  %3935 = vmatpush1.msra.mxu0 0.0
  %3936 = vmatprep.subr.mxu0 0.0
  %3937 = vmatpush1.msra.mxu0 0.0
  %3938 = vmatprep.subr.mxu0 0.0
  %3939 = vmatpush1.msra.mxu0 0.0
  %3940 = vmatprep.subr.mxu0 0.0
  %3941 = vmatpush1.msra.mxu0 0.0
  %3942 = vmatprep.subr.mxu0 0.0
  %3943 = vmatpush1.msra.mxu0 0.0
  %3944 = vmatprep.subr.mxu0 0.0
  %3945 = vmatpush1.msra.mxu0 0.0
  %3946 = vmatprep.subr.mxu0 0.0
  %3947 = vmatpush1.msra.mxu0 0.0
  %3948 = vmatprep.subr.mxu0 0.0
  %3949 = vmatpush1.msra.mxu0 0.0
  %3950 = vmatprep.subr.mxu0 0.0
  %3951 = vmatpush1.msra.mxu0 0.0
  %3952 = vmatprep.subr.mxu0 0.0
  %3953 = vmatpush1.msra.mxu0 0.0
  %3954 = vmatprep.subr.mxu0 0.0
  %3955 = vmatpush1.msra.mxu0 0.0
  %3956 = vmatprep.subr.mxu0 0.0
  %3957 = vmatpush1.msra.mxu0 0.0
  %3958 = vmatprep.subr.mxu0 0.0
  %3959 = vmatpush1.msra.mxu0 0.0
  %3960 = vmatprep.subr.mxu0 0.0
  %3961 = vmatpush1.msra.mxu0 0.0
  %3962 = vmatprep.subr.mxu0 0.0
  %3963 = vmatpush1.msra.mxu0 0.0
  %3964 = vmatprep.subr.mxu0 0.0
  %3965 = vmatpush1.msra.mxu0 0.0
  %3966 = vmatprep.mubr.f32.mxu0 0.0
  %3967 = vmatmul.mubr.f32.gmra.mrb[0].mxu0 %v3686
  %v3968 = vpop.f32.mrb[0].mxu0
  %v3969 = vadd.f32 %v1741, %v3968
  %v3970 = vpop.f32.mrb[0].mxu0
  %3971 = vmatprep.mubr.f32.mxu0 0.0
  %3972 = vmatmul.mubr.f32.gmra.mrb[0].mxu0 %v3688
  %v3973 = vpop.f32.mrb[0].mxu0
  %v3974 = vadd.f32 %v1741, %v3973
  %v3975 = vpop.f32.mrb[0].mxu0
  %3976 = vdwg.mxu0
  %v3979 = vrot.slane %v3969, 4
  %v3980 = vrot.slane %v3974, 4
  %v3981 = vsel %vm938, %v3979, %v3980
  %v3984 = vadd.f32 %v1637, %v3979
  %v3985 = vadd.f32 %v1642, %v3981
  %v3986 = vxor.u32 %v3984, 2147483648
  %v3987 = vxor.u32 %v3985, 2147483648
  %v3988 = vmul.f32 %v3986, 1.442695
  %v3989 = vpow.pop %v3988
  %v3990 = vmul.f32 %v3987, 1.442695
  %v3991 = vpow.pop %v3990
  %v3992 = vadd.f32 %v3989, 1.0
  %v3993 = vadd.f32 %v3991, 1.0
  %v3994 = vrcp.pop %v3992
  %v3995 = vmul.f32 1.0, %v3994
  %v3996 = vrcp.pop %v3993
  %v3997 = vmul.f32 1.0, %v3996
  %3998 = vrot.lane.b32.xlu0 %v3979, 108
  %v3999 = vpop.permute.xlu0 %3998
  %4000 = vrot.lane.b32.xlu0 %v3981, 108
  %v4001 = vpop.permute.xlu0 %4000
  %v4004 = vmul.f32 %v3995, %v3999
  %v4005 = vmul.f32 %v3997, %v4001
  %4008 = vrot.lane.b32.xlu0 %v4004, 20
  %v4009 = vpop.permute.xlu0 %4008
  %4010 = vrot.lane.b32.xlu0 %v4005, 20
  %v4011 = vpop.permute.xlu0 %4010
  %v4014 = vadd.f32 %v1637, %v4009
  %v4015 = vadd.f32 %v1642, %v4011
  %v4016 = vtanh.pop %v4014
  %v4017 = vtanh.pop %v4015
  %v4018 = vsub.f32 1.0, %v3995
  %v4019 = vsub.f32 1.0, %v3997
  %4022 = vrot.lane.b32.xlu0 %v4016, 118
  %v4023 = vpop.permute.xlu0 %4022
  %4024 = vrot.lane.b32.xlu0 %v4017, 118
  %v4025 = vpop.permute.xlu0 %4024
  %v4028 = vmul.f32 %v4018, %v4023
  %v4029 = vmul.f32 %v4019, %v4025
  %v4030 = vrot.slane %v3675, 6
  %v4031 = vrot.slane %v3676, 6
  %v4032 = vsel %vm1745, %v4030, %v4031
  %v4035 = vmul.f32 %v3995, %v4030
  %v4036 = vmul.f32 %v3997, %v4032
  %v4037 = vadd.f32 %v4028, %v4035
  %v4038 = vadd.f32 %v4029, %v4036
  %v4041 = vrot.slane %v4037, 4
  %v4042 = vrot.slane %v4038, 4
  %v4043 = vsel %vm938, %v4041, %v4042
  %4044 = vrot.lane.b32.xlu0 %v4043, 118
  %v4045 = vpop.permute.xlu0 %4044
  %4046 = vrot.lane.b32.xlu0 %v4042, 118
  %v4047 = vpop.permute.xlu0 %4046
  %v4048 = vsel %vm365, %v4045, 0
  %v4050 = vsel %vm365, %v4047, 0
  %4052 = vmatprep.subr.mxu0 0.0
  %4053 = vmatpush1.msra.mxu0 %v59
  %4054 = vmatprep.subr.mxu0 0.0
  %4055 = vmatpush1.msra.mxu0 %v1891
  %4056 = vmatprep.subr.mxu0 0.0
  %4057 = vmatpush1.msra.mxu0 0.0
  %4058 = vmatprep.subr.mxu0 0.0
  %4059 = vmatpush1.msra.mxu0 0.0
  %4060 = vmatprep.subr.mxu0 0.0
  %4061 = vmatpush1.msra.mxu0 0.0
  %4062 = vmatprep.subr.mxu0 0.0
  %4063 = vmatpush1.msra.mxu0 0.0
  %4064 = vmatprep.subr.mxu0 0.0
  %4065 = vmatpush1.msra.mxu0 0.0
  %4066 = vmatprep.subr.mxu0 0.0
  %4067 = vmatpush1.msra.mxu0 0.0
  %4068 = vmatprep.subr.mxu0 0.0
  %4069 = vmatpush1.msra.mxu0 0.0
  %4070 = vmatprep.subr.mxu0 0.0
  %4071 = vmatpush1.msra.mxu0 0.0
  %4072 = vmatprep.subr.mxu0 0.0
  %4073 = vmatpush1.msra.mxu0 0.0
  %4074 = vmatprep.subr.mxu0 0.0
  %4075 = vmatpush1.msra.mxu0 0.0
  %4076 = vmatprep.subr.mxu0 0.0
  %4077 = vmatpush1.msra.mxu0 0.0
  %4078 = vmatprep.subr.mxu0 0.0
  %4079 = vmatpush1.msra.mxu0 0.0
  %4080 = vmatprep.subr.mxu0 0.0
  %4081 = vmatpush1.msra.mxu0 0.0
  %4082 = vmatprep.subr.mxu0 0.0
  %4083 = vmatpush1.msra.mxu0 0.0
  %4084 = vmatprep.subr.mxu0 0.0
  %4085 = vmatpush1.msra.mxu0 0.0
  %4086 = vmatprep.subr.mxu0 0.0
  %4087 = vmatpush1.msra.mxu0 0.0
  %4088 = vmatprep.subr.mxu0 0.0
  %4089 = vmatpush1.msra.mxu0 0.0
  %4090 = vmatprep.subr.mxu0 0.0
  %4091 = vmatpush1.msra.mxu0 0.0
  %4092 = vmatprep.subr.mxu0 0.0
  %4093 = vmatpush1.msra.mxu0 0.0
  %4094 = vmatprep.subr.mxu0 0.0
  %4095 = vmatpush1.msra.mxu0 0.0
  %4096 = vmatprep.subr.mxu0 0.0
  %4097 = vmatpush1.msra.mxu0 0.0
  %4098 = vmatprep.subr.mxu0 0.0
  %4099 = vmatpush1.msra.mxu0 0.0
  %4100 = vmatprep.subr.mxu0 0.0
  %4101 = vmatpush1.msra.mxu0 0.0
  %4102 = vmatprep.subr.mxu0 0.0
  %4103 = vmatpush1.msra.mxu0 0.0
  %4104 = vmatprep.subr.mxu0 0.0
  %4105 = vmatpush1.msra.mxu0 0.0
  %4106 = vmatprep.subr.mxu0 0.0
  %4107 = vmatpush1.msra.mxu0 0.0
  %4108 = vmatprep.subr.mxu0 0.0
  %4109 = vmatpush1.msra.mxu0 0.0
  %4110 = vmatprep.subr.mxu0 0.0
  %4111 = vmatpush1.msra.mxu0 0.0
  %4112 = vmatprep.subr.mxu0 0.0
  %4113 = vmatpush1.msra.mxu0 0.0
  %4114 = vmatprep.subr.mxu0 0.0
  %4115 = vmatpush1.msra.mxu0 0.0
  %4116 = vmatprep.mubr.f32.mxu0 0.0
  %4117 = vmatmul.mubr.f32.gmra.mrb[0].mxu0 %v4048
  %v4118 = vpop.f32.mrb[0].mxu0
  %v4119 = vadd.f32 %v1879, %v4118
  %v4120 = vpop.f32.mrb[0].mxu0
  %4121 = vmatprep.mubr.f32.mxu0 0.0
  %4122 = vmatmul.mubr.f32.gmra.mrb[0].mxu0 %v4050
  %v4123 = vpop.f32.mrb[0].mxu0
  %v4124 = vadd.f32 %v1879, %v4123
  %v4125 = vpop.f32.mrb[0].mxu0
  %4126 = vdwg.mxu0
  %4129 = vrot.lane.b32.xlu0 %v3900, 118
  %v4130 = vpop.permute.xlu0 %4129
  %4131 = vrot.lane.b32.xlu0 %v3901, 118
  %v4132 = vpop.permute.xlu0 %4131
  %v4133 = vsel %vm365, %v4130, 0
  %v4135 = vsel %vm365, %v4132, 0
  %4137 = vmatprep.subr.mxu0 0.0
  %4138 = vmatpush1.msra.mxu0 %v61
  %4139 = vmatprep.subr.mxu0 0.0
  %4140 = vmatpush1.msra.mxu0 %v1973
  %4141 = vmatprep.subr.mxu0 0.0
  %4142 = vmatpush1.msra.mxu0 0.0
  %4143 = vmatprep.subr.mxu0 0.0
  %4144 = vmatpush1.msra.mxu0 0.0
  %4145 = vmatprep.subr.mxu0 0.0
  %4146 = vmatpush1.msra.mxu0 0.0
  %4147 = vmatprep.subr.mxu0 0.0
  %4148 = vmatpush1.msra.mxu0 0.0
  %4149 = vmatprep.subr.mxu0 0.0
  %4150 = vmatpush1.msra.mxu0 0.0
  %4151 = vmatprep.subr.mxu0 0.0
  %4152 = vmatpush1.msra.mxu0 0.0
  %4153 = vmatprep.subr.mxu0 0.0
  %4154 = vmatpush1.msra.mxu0 0.0
  %4155 = vmatprep.subr.mxu0 0.0
  %4156 = vmatpush1.msra.mxu0 0.0
  %4157 = vmatprep.subr.mxu0 0.0
  %4158 = vmatpush1.msra.mxu0 0.0
  %4159 = vmatprep.subr.mxu0 0.0
  %4160 = vmatpush1.msra.mxu0 0.0
  %4161 = vmatprep.subr.mxu0 0.0
  %4162 = vmatpush1.msra.mxu0 0.0
  %4163 = vmatprep.subr.mxu0 0.0
  %4164 = vmatpush1.msra.mxu0 0.0
  %4165 = vmatprep.subr.mxu0 0.0
  %4166 = vmatpush1.msra.mxu0 0.0
  %4167 = vmatprep.subr.mxu0 0.0
  %4168 = vmatpush1.msra.mxu0 0.0
  %4169 = vmatprep.subr.mxu0 0.0
  %4170 = vmatpush1.msra.mxu0 0.0
  %4171 = vmatprep.subr.mxu0 0.0
  %4172 = vmatpush1.msra.mxu0 0.0
  %4173 = vmatprep.subr.mxu0 0.0
  %4174 = vmatpush1.msra.mxu0 0.0
  %4175 = vmatprep.subr.mxu0 0.0
  %4176 = vmatpush1.msra.mxu0 0.0
  %4177 = vmatprep.subr.mxu0 0.0
  %4178 = vmatpush1.msra.mxu0 0.0
  %4179 = vmatprep.subr.mxu0 0.0
  %4180 = vmatpush1.msra.mxu0 0.0
  %4181 = vmatprep.subr.mxu0 0.0
  %4182 = vmatpush1.msra.mxu0 0.0
  %4183 = vmatprep.subr.mxu0 0.0
  %4184 = vmatpush1.msra.mxu0 0.0
  %4185 = vmatprep.subr.mxu0 0.0
  %4186 = vmatpush1.msra.mxu0 0.0
  %4187 = vmatprep.subr.mxu0 0.0
  %4188 = vmatpush1.msra.mxu0 0.0
  %4189 = vmatprep.subr.mxu0 0.0
  %4190 = vmatpush1.msra.mxu0 0.0
  %4191 = vmatprep.subr.mxu0 0.0
  %4192 = vmatpush1.msra.mxu0 0.0
  %4193 = vmatprep.subr.mxu0 0.0
  %4194 = vmatpush1.msra.mxu0 0.0
  %4195 = vmatprep.subr.mxu0 0.0
  %4196 = vmatpush1.msra.mxu0 0.0
  %4197 = vmatprep.subr.mxu0 0.0
  %4198 = vmatpush1.msra.mxu0 0.0
  %4199 = vmatprep.subr.mxu0 0.0
  %4200 = vmatpush1.msra.mxu0 0.0
  %4201 = vmatprep.mubr.f32.mxu0 0.0
  %4202 = vmatmul.mubr.f32.gmra.mrb[0].mxu0 %v4133
  %v4203 = vpop.f32.mrb[0].mxu0
  %v4204 = vadd.f32 %v1971, %v4203
  %v4205 = vpop.f32.mrb[0].mxu0
  %4206 = vmatprep.mubr.f32.mxu0 0.0
  %4207 = vmatmul.mubr.f32.gmra.mrb[0].mxu0 %v4135
  %v4208 = vpop.f32.mrb[0].mxu0
  %v4209 = vadd.f32 %v1971, %v4208
  %v4210 = vpop.f32.mrb[0].mxu0
  %4211 = vdwg.mxu0
  %v4212 = vadd.f32 %v4119, %v4204
  %v4213 = vadd.f32 %v4124, %v4209
  %v4214 = vxor.u32 %v4212, 2147483648
  %v4215 = vxor.u32 %v4213, 2147483648
  %v4216 = vmul.f32 %v4214, 1.442695
  %v4217 = vpow.pop %v4216
  %v4218 = vmul.f32 %v4215, 1.442695
  %v4219 = vpow.pop %v4218
  %v4220 = vadd.f32 %v4217, 1.0
  %v4221 = vadd.f32 %v4219, 1.0
  %v4222 = vrcp.pop %v4220
  %v4223 = vmul.f32 1.0, %v4222
  %v4224 = vrcp.pop %v4221
  %v4225 = vmul.f32 1.0, %v4224
  %4228 = vrot.lane.b32.xlu0 %v4204, 108
  %v4229 = vpop.permute.xlu0 %4228
  %4230 = vrot.lane.b32.xlu0 %v4209, 108
  %v4231 = vpop.permute.xlu0 %4230
  %v4234 = vmul.f32 %v4223, %v4229
  %v4235 = vmul.f32 %v4225, %v4231
  %4238 = vrot.lane.b32.xlu0 %v4234, 20
  %v4239 = vpop.permute.xlu0 %4238
  %4240 = vrot.lane.b32.xlu0 %v4235, 20
  %v4241 = vpop.permute.xlu0 %4240
  %v4244 = vadd.f32 %v4119, %v4239
  %v4245 = vadd.f32 %v4124, %v4241
  %v4246 = vtanh.pop %v4244
  %v4247 = vtanh.pop %v4245
  %v4248 = vsub.f32 1.0, %v4223
  %v4249 = vsub.f32 1.0, %v4225
  %4252 = vrot.lane.b32.xlu0 %v4246, 118
  %v4253 = vpop.permute.xlu0 %4252
  %4254 = vrot.lane.b32.xlu0 %v4247, 118
  %v4255 = vpop.permute.xlu0 %4254
  %v4258 = vmul.f32 %v4248, %v4253
  %v4259 = vmul.f32 %v4249, %v4255
  %v4260 = vmul.f32 %v4223, %v3900
  %v4261 = vmul.f32 %v4225, %v3901
  %v4262 = vadd.f32 %v4258, %v4260
  %v4263 = vadd.f32 %v4259, %v4261
  %4264 = vmatprep.subr.mxu0 0.0
  %4265 = vmatpush1.msra.mxu0 %v57
  %4266 = vmatprep.subr.mxu0 0.0
  %4267 = vmatpush1.msra.mxu0 %v1747
  %4268 = vmatprep.subr.mxu0 0.0
  %4269 = vmatpush1.msra.mxu0 0.0
  %4270 = vmatprep.subr.mxu0 0.0
  %4271 = vmatpush1.msra.mxu0 0.0
  %4272 = vmatprep.subr.mxu0 0.0
  %4273 = vmatpush1.msra.mxu0 0.0
  %4274 = vmatprep.subr.mxu0 0.0
  %4275 = vmatpush1.msra.mxu0 0.0
  %4276 = vmatprep.subr.mxu0 0.0
  %4277 = vmatpush1.msra.mxu0 0.0
  %4278 = vmatprep.subr.mxu0 0.0
  %4279 = vmatpush1.msra.mxu0 0.0
  %4280 = vmatprep.subr.mxu0 0.0
  %4281 = vmatpush1.msra.mxu0 0.0
  %4282 = vmatprep.subr.mxu0 0.0
  %4283 = vmatpush1.msra.mxu0 0.0
  %4284 = vmatprep.subr.mxu0 0.0
  %4285 = vmatpush1.msra.mxu0 0.0
  %4286 = vmatprep.subr.mxu0 0.0
  %4287 = vmatpush1.msra.mxu0 0.0
  %4288 = vmatprep.subr.mxu0 0.0
  %4289 = vmatpush1.msra.mxu0 0.0
  %4290 = vmatprep.subr.mxu0 0.0
  %4291 = vmatpush1.msra.mxu0 0.0
  %4292 = vmatprep.subr.mxu0 0.0
  %4293 = vmatpush1.msra.mxu0 0.0
  %4294 = vmatprep.subr.mxu0 0.0
  %4295 = vmatpush1.msra.mxu0 0.0
  %4296 = vmatprep.subr.mxu0 0.0
  %4297 = vmatpush1.msra.mxu0 0.0
  %4298 = vmatprep.subr.mxu0 0.0
  %4299 = vmatpush1.msra.mxu0 0.0
  %4300 = vmatprep.subr.mxu0 0.0
  %4301 = vmatpush1.msra.mxu0 0.0
  %4302 = vmatprep.subr.mxu0 0.0
  %4303 = vmatpush1.msra.mxu0 0.0
  %4304 = vmatprep.subr.mxu0 0.0
  %4305 = vmatpush1.msra.mxu0 0.0
  %4306 = vmatprep.subr.mxu0 0.0
  %4307 = vmatpush1.msra.mxu0 0.0
  %4308 = vmatprep.subr.mxu0 0.0
  %4309 = vmatpush1.msra.mxu0 0.0
  %4310 = vmatprep.subr.mxu0 0.0
  %4311 = vmatpush1.msra.mxu0 0.0
  %4312 = vmatprep.subr.mxu0 0.0
  %4313 = vmatpush1.msra.mxu0 0.0
  %4314 = vmatprep.subr.mxu0 0.0
  %4315 = vmatpush1.msra.mxu0 0.0
  %4316 = vmatprep.subr.mxu0 0.0
  %4317 = vmatpush1.msra.mxu0 0.0
  %4318 = vmatprep.subr.mxu0 0.0
  %4319 = vmatpush1.msra.mxu0 0.0
  %4320 = vmatprep.subr.mxu0 0.0
  %4321 = vmatpush1.msra.mxu0 0.0
  %4322 = vmatprep.subr.mxu0 0.0
  %4323 = vmatpush1.msra.mxu0 0.0
  %4324 = vmatprep.subr.mxu0 0.0
  %4325 = vmatpush1.msra.mxu0 0.0
  %4326 = vmatprep.subr.mxu0 0.0
  %4327 = vmatpush1.msra.mxu0 0.0
  %4328 = vmatprep.mubr.f32.mxu0 0.0
  %4329 = vmatmul.mubr.f32.gmra.mrb[0].mxu0 %v4048
  %v4330 = vpop.f32.mrb[0].mxu0
  %v4331 = vadd.f32 %v1741, %v4330
  %v4332 = vpop.f32.mrb[0].mxu0
  %4333 = vmatprep.mubr.f32.mxu0 0.0
  %4334 = vmatmul.mubr.f32.gmra.mrb[0].mxu0 %v4050
  %v4335 = vpop.f32.mrb[0].mxu0
  %v4336 = vadd.f32 %v1741, %v4335
  %v4337 = vpop.f32.mrb[0].mxu0
  %4338 = vdwg.mxu0
  %v4341 = vrot.slane %v4331, 2
  %v4342 = vrot.slane %v4336, 2
  %v4343 = vsel %vm2241, %v4341, %v4342
  %v4346 = vadd.f32 %v1642, %v4341
  %v4347 = vadd.f32 %v1647, %v4343
  %v4348 = vxor.u32 %v4346, 2147483648
  %v4349 = vxor.u32 %v4347, 2147483648
  %v4350 = vmul.f32 %v4348, 1.442695
  %v4351 = vpow.pop %v4350
  %v4352 = vmul.f32 %v4349, 1.442695
  %v4353 = vpow.pop %v4352
  %v4354 = vadd.f32 %v4351, 1.0
  %v4355 = vadd.f32 %v4353, 1.0
  %v4356 = vrcp.pop %v4354
  %v4357 = vmul.f32 1.0, %v4356
  %v4358 = vrcp.pop %v4355
  %v4359 = vmul.f32 1.0, %v4358
  %4360 = vrot.lane.b32.xlu0 %v4341, 108
  %v4361 = vpop.permute.xlu0 %4360
  %4362 = vrot.lane.b32.xlu0 %v4343, 108
  %v4363 = vpop.permute.xlu0 %4362
  %v4366 = vmul.f32 %v4357, %v4361
  %v4367 = vmul.f32 %v4359, %v4363
  %4370 = vrot.lane.b32.xlu0 %v4366, 20
  %v4371 = vpop.permute.xlu0 %4370
  %4372 = vrot.lane.b32.xlu0 %v4367, 20
  %v4373 = vpop.permute.xlu0 %4372
  %v4376 = vadd.f32 %v1642, %v4371
  %v4377 = vadd.f32 %v1647, %v4373
  %v4378 = vtanh.pop %v4376
  %v4379 = vtanh.pop %v4377
  %v4380 = vsub.f32 1.0, %v4357
  %v4381 = vsub.f32 1.0, %v4359
  %4384 = vrot.lane.b32.xlu0 %v4378, 118
  %v4385 = vpop.permute.xlu0 %4384
  %4386 = vrot.lane.b32.xlu0 %v4379, 118
  %v4387 = vpop.permute.xlu0 %4386
  %v4390 = vmul.f32 %v4380, %v4385
  %v4391 = vmul.f32 %v4381, %v4387
  %v4392 = vrot.slane %v4037, 6
  %v4393 = vrot.slane %v4038, 6
  %v4394 = vsel %vm1745, %v4392, %v4393
  %v4397 = vmul.f32 %v4357, %v4392
  %v4398 = vmul.f32 %v4359, %v4394
  %v4399 = vadd.f32 %v4390, %v4397
  %v4400 = vadd.f32 %v4391, %v4398
  %v4403 = vrot.slane %v4399, 6
  %v4404 = vrot.slane %v4400, 6
  %v4405 = vsel %vm1745, %v4403, %v4404
  %4406 = vrot.lane.b32.xlu0 %v4405, 118
  %v4407 = vpop.permute.xlu0 %4406
  %4408 = vrot.lane.b32.xlu0 %v4404, 118
  %v4409 = vpop.permute.xlu0 %4408
  %v4410 = vsel %vm365, %v4407, 0
  %v4412 = vsel %vm365, %v4409, 0
  %4414 = vmatprep.subr.mxu0 0.0
  %4415 = vmatpush1.msra.mxu0 %v59
  %4416 = vmatprep.subr.mxu0 0.0
  %4417 = vmatpush1.msra.mxu0 %v1891
  %4418 = vmatprep.subr.mxu0 0.0
  %4419 = vmatpush1.msra.mxu0 0.0
  %4420 = vmatprep.subr.mxu0 0.0
  %4421 = vmatpush1.msra.mxu0 0.0
  %4422 = vmatprep.subr.mxu0 0.0
  %4423 = vmatpush1.msra.mxu0 0.0
  %4424 = vmatprep.subr.mxu0 0.0
  %4425 = vmatpush1.msra.mxu0 0.0
  %4426 = vmatprep.subr.mxu0 0.0
  %4427 = vmatpush1.msra.mxu0 0.0
  %4428 = vmatprep.subr.mxu0 0.0
  %4429 = vmatpush1.msra.mxu0 0.0
  %4430 = vmatprep.subr.mxu0 0.0
  %4431 = vmatpush1.msra.mxu0 0.0
  %4432 = vmatprep.subr.mxu0 0.0
  %4433 = vmatpush1.msra.mxu0 0.0
  %4434 = vmatprep.subr.mxu0 0.0
  %4435 = vmatpush1.msra.mxu0 0.0
  %4436 = vmatprep.subr.mxu0 0.0
  %4437 = vmatpush1.msra.mxu0 0.0
  %4438 = vmatprep.subr.mxu0 0.0
  %4439 = vmatpush1.msra.mxu0 0.0
  %4440 = vmatprep.subr.mxu0 0.0
  %4441 = vmatpush1.msra.mxu0 0.0
  %4442 = vmatprep.subr.mxu0 0.0
  %4443 = vmatpush1.msra.mxu0 0.0
  %4444 = vmatprep.subr.mxu0 0.0
  %4445 = vmatpush1.msra.mxu0 0.0
  %4446 = vmatprep.subr.mxu0 0.0
  %4447 = vmatpush1.msra.mxu0 0.0
  %4448 = vmatprep.subr.mxu0 0.0
  %4449 = vmatpush1.msra.mxu0 0.0
  %4450 = vmatprep.subr.mxu0 0.0
  %4451 = vmatpush1.msra.mxu0 0.0
  %4452 = vmatprep.subr.mxu0 0.0
  %4453 = vmatpush1.msra.mxu0 0.0
  %4454 = vmatprep.subr.mxu0 0.0
  %4455 = vmatpush1.msra.mxu0 0.0
  %4456 = vmatprep.subr.mxu0 0.0
  %4457 = vmatpush1.msra.mxu0 0.0
  %4458 = vmatprep.subr.mxu0 0.0
  %4459 = vmatpush1.msra.mxu0 0.0
  %4460 = vmatprep.subr.mxu0 0.0
  %4461 = vmatpush1.msra.mxu0 0.0
  %4462 = vmatprep.subr.mxu0 0.0
  %4463 = vmatpush1.msra.mxu0 0.0
  %4464 = vmatprep.subr.mxu0 0.0
  %4465 = vmatpush1.msra.mxu0 0.0
  %4466 = vmatprep.subr.mxu0 0.0
  %4467 = vmatpush1.msra.mxu0 0.0
  %4468 = vmatprep.subr.mxu0 0.0
  %4469 = vmatpush1.msra.mxu0 0.0
  %4470 = vmatprep.subr.mxu0 0.0
  %4471 = vmatpush1.msra.mxu0 0.0
  %4472 = vmatprep.subr.mxu0 0.0
  %4473 = vmatpush1.msra.mxu0 0.0
  %4474 = vmatprep.subr.mxu0 0.0
  %4475 = vmatpush1.msra.mxu0 0.0
  %4476 = vmatprep.subr.mxu0 0.0
  %4477 = vmatpush1.msra.mxu0 0.0
  %4478 = vmatprep.mubr.f32.mxu0 0.0
  %4479 = vmatmul.mubr.f32.gmra.mrb[0].mxu0 %v4410
  %v4480 = vpop.f32.mrb[0].mxu0
  %v4481 = vadd.f32 %v1879, %v4480
  %v4482 = vpop.f32.mrb[0].mxu0
  %4483 = vmatprep.mubr.f32.mxu0 0.0
  %4484 = vmatmul.mubr.f32.gmra.mrb[0].mxu0 %v4412
  %v4485 = vpop.f32.mrb[0].mxu0
  %v4486 = vadd.f32 %v1879, %v4485
  %v4487 = vpop.f32.mrb[0].mxu0
  %4488 = vdwg.mxu0
  %4491 = vrot.lane.b32.xlu0 %v4262, 118
  %v4492 = vpop.permute.xlu0 %4491
  %4493 = vrot.lane.b32.xlu0 %v4263, 118
  %v4494 = vpop.permute.xlu0 %4493
  %v4495 = vsel %vm365, %v4492, 0
  %v4497 = vsel %vm365, %v4494, 0
  %4499 = vmatprep.subr.mxu0 0.0
  %4500 = vmatpush1.msra.mxu0 %v61
  %4501 = vmatprep.subr.mxu0 0.0
  %4502 = vmatpush1.msra.mxu0 %v1973
  %4503 = vmatprep.subr.mxu0 0.0
  %4504 = vmatpush1.msra.mxu0 0.0
  %4505 = vmatprep.subr.mxu0 0.0
  %4506 = vmatpush1.msra.mxu0 0.0
  %4507 = vmatprep.subr.mxu0 0.0
  %4508 = vmatpush1.msra.mxu0 0.0
  %4509 = vmatprep.subr.mxu0 0.0
  %4510 = vmatpush1.msra.mxu0 0.0
  %4511 = vmatprep.subr.mxu0 0.0
  %4512 = vmatpush1.msra.mxu0 0.0
  %4513 = vmatprep.subr.mxu0 0.0
  %4514 = vmatpush1.msra.mxu0 0.0
  %4515 = vmatprep.subr.mxu0 0.0
  %4516 = vmatpush1.msra.mxu0 0.0
  %4517 = vmatprep.subr.mxu0 0.0
  %4518 = vmatpush1.msra.mxu0 0.0
  %4519 = vmatprep.subr.mxu0 0.0
  %4520 = vmatpush1.msra.mxu0 0.0
  %4521 = vmatprep.subr.mxu0 0.0
  %4522 = vmatpush1.msra.mxu0 0.0
  %4523 = vmatprep.subr.mxu0 0.0
  %4524 = vmatpush1.msra.mxu0 0.0
  %4525 = vmatprep.subr.mxu0 0.0
  %4526 = vmatpush1.msra.mxu0 0.0
  %4527 = vmatprep.subr.mxu0 0.0
  %4528 = vmatpush1.msra.mxu0 0.0
  %4529 = vmatprep.subr.mxu0 0.0
  %4530 = vmatpush1.msra.mxu0 0.0
  %4531 = vmatprep.subr.mxu0 0.0
  %4532 = vmatpush1.msra.mxu0 0.0
  %4533 = vmatprep.subr.mxu0 0.0
  %4534 = vmatpush1.msra.mxu0 0.0
  %4535 = vmatprep.subr.mxu0 0.0
  %4536 = vmatpush1.msra.mxu0 0.0
  %4537 = vmatprep.subr.mxu0 0.0
  %4538 = vmatpush1.msra.mxu0 0.0
  %4539 = vmatprep.subr.mxu0 0.0
  %4540 = vmatpush1.msra.mxu0 0.0
  %4541 = vmatprep.subr.mxu0 0.0
  %4542 = vmatpush1.msra.mxu0 0.0
  %4543 = vmatprep.subr.mxu0 0.0
  %4544 = vmatpush1.msra.mxu0 0.0
  %4545 = vmatprep.subr.mxu0 0.0
  %4546 = vmatpush1.msra.mxu0 0.0
  %4547 = vmatprep.subr.mxu0 0.0
  %4548 = vmatpush1.msra.mxu0 0.0
  %4549 = vmatprep.subr.mxu0 0.0
  %4550 = vmatpush1.msra.mxu0 0.0
  %4551 = vmatprep.subr.mxu0 0.0
  %4552 = vmatpush1.msra.mxu0 0.0
  %4553 = vmatprep.subr.mxu0 0.0
  %4554 = vmatpush1.msra.mxu0 0.0
  %4555 = vmatprep.subr.mxu0 0.0
  %4556 = vmatpush1.msra.mxu0 0.0
  %4557 = vmatprep.subr.mxu0 0.0
  %4558 = vmatpush1.msra.mxu0 0.0
  %4559 = vmatprep.subr.mxu0 0.0
  %4560 = vmatpush1.msra.mxu0 0.0
  %4561 = vmatprep.subr.mxu0 0.0
  %4562 = vmatpush1.msra.mxu0 0.0
  %4563 = vmatprep.mubr.f32.mxu0 0.0
  %4564 = vmatmul.mubr.f32.gmra.mrb[0].mxu0 %v4495
  %v4565 = vpop.f32.mrb[0].mxu0
  %v4566 = vadd.f32 %v1971, %v4565
  %v4567 = vpop.f32.mrb[0].mxu0
  %4568 = vmatprep.mubr.f32.mxu0 0.0
  %4569 = vmatmul.mubr.f32.gmra.mrb[0].mxu0 %v4497
  %v4570 = vpop.f32.mrb[0].mxu0
  %v4571 = vadd.f32 %v1971, %v4570
  %v4572 = vpop.f32.mrb[0].mxu0
  %4573 = vdwg.mxu0
  %v4574 = vadd.f32 %v4481, %v4566
  %v4575 = vadd.f32 %v4486, %v4571
  %v4576 = vxor.u32 %v4574, 2147483648
  %v4577 = vxor.u32 %v4575, 2147483648
  %v4578 = vmul.f32 %v4576, 1.442695
  %v4579 = vpow.pop %v4578
  %v4580 = vmul.f32 %v4577, 1.442695
  %v4581 = vpow.pop %v4580
  %v4582 = vadd.f32 %v4579, 1.0
  %v4583 = vadd.f32 %v4581, 1.0
  %v4584 = vrcp.pop %v4582
  %v4585 = vmul.f32 1.0, %v4584
  %v4586 = vrcp.pop %v4583
  %v4587 = vmul.f32 1.0, %v4586
  %4590 = vrot.lane.b32.xlu0 %v4566, 108
  %v4591 = vpop.permute.xlu0 %4590
  %4592 = vrot.lane.b32.xlu0 %v4571, 108
  %v4593 = vpop.permute.xlu0 %4592
  %v4596 = vmul.f32 %v4585, %v4591
  %v4597 = vmul.f32 %v4587, %v4593
  %4600 = vrot.lane.b32.xlu0 %v4596, 20
  %v4601 = vpop.permute.xlu0 %4600
  %4602 = vrot.lane.b32.xlu0 %v4597, 20
  %v4603 = vpop.permute.xlu0 %4602
  %v4606 = vadd.f32 %v4481, %v4601
  %v4607 = vadd.f32 %v4486, %v4603
  %v4608 = vtanh.pop %v4606
  %v4609 = vtanh.pop %v4607
  %v4610 = vsub.f32 1.0, %v4585
  %v4611 = vsub.f32 1.0, %v4587
  %4614 = vrot.lane.b32.xlu0 %v4608, 118
  %v4615 = vpop.permute.xlu0 %4614
  %4616 = vrot.lane.b32.xlu0 %v4609, 118
  %v4617 = vpop.permute.xlu0 %4616
  %v4620 = vmul.f32 %v4610, %v4615
  %v4621 = vmul.f32 %v4611, %v4617
  %v4622 = vmul.f32 %v4585, %v4262
  %v4623 = vmul.f32 %v4587, %v4263
  %v4624 = vadd.f32 %v4620, %v4622
  %v4625 = vadd.f32 %v4621, %v4623
  %4626 = vrot.lane.b32.xlu0 %v4399, 118
  %v4627 = vpop.permute.xlu0 %4626
  %4628 = vrot.lane.b32.xlu0 %v4400, 118
  %v4629 = vpop.permute.xlu0 %4628
  %v4634 = vrot.slane %v4624, 2
  %v4635 = vrot.slane %v4625, 2
  %v4636 = vsel %vm2241, %v4634, %v4635
  %v4639 = vsel %vm365, %v4627, %v4634
  %v4640 = vsel %vm365, %v4629, %v4636
  %v4641 = vmax.f32 %v4639, 0.0
  %v4642 = vmax.f32 %v4640, 0.0
  %v4645 = vrot.slane %v4641, 6
  %v4646 = vrot.slane %v4642, 6
  %v4647 = vsel %vm1745, %v4645, %v4646
  %v4648 = vsel %vm907, %v4647, 0
  %v4650 = vsel %vm907, %v4646, 0
  %v4653 = vsel %vm938, %v66, 0
  %4655 = vmatprep.subr.mxu0 0.0
  %4656 = vmatpush1.msra.mxu0 %v64
  %4657 = vmatprep.subr.mxu0 0.0
  %4658 = vmatpush1.msra.mxu0 %v65
  %4659 = vmatprep.subr.mxu0 0.0
  %4660 = vmatpush1.msra.mxu0 %v4653
  %4661 = vmatprep.subr.mxu0 0.0
  %4662 = vmatpush1.msra.mxu0 0.0
  %4663 = vmatprep.subr.mxu0 0.0
  %4664 = vmatpush1.msra.mxu0 0.0
  %4665 = vmatprep.subr.mxu0 0.0
  %4666 = vmatpush1.msra.mxu0 0.0
  %4667 = vmatprep.subr.mxu0 0.0
  %4668 = vmatpush1.msra.mxu0 0.0
  %4669 = vmatprep.subr.mxu0 0.0
  %4670 = vmatpush1.msra.mxu0 0.0
  %4671 = vmatprep.subr.mxu0 0.0
  %4672 = vmatpush1.msra.mxu0 0.0
  %4673 = vmatprep.subr.mxu0 0.0
  %4674 = vmatpush1.msra.mxu0 0.0
  %4675 = vmatprep.subr.mxu0 0.0
  %4676 = vmatpush1.msra.mxu0 0.0
  %4677 = vmatprep.subr.mxu0 0.0
  %4678 = vmatpush1.msra.mxu0 0.0
  %4679 = vmatprep.subr.mxu0 0.0
  %4680 = vmatpush1.msra.mxu0 0.0
  %4681 = vmatprep.subr.mxu0 0.0
  %4682 = vmatpush1.msra.mxu0 0.0
  %4683 = vmatprep.subr.mxu0 0.0
  %4684 = vmatpush1.msra.mxu0 0.0
  %4685 = vmatprep.subr.mxu0 0.0
  %4686 = vmatpush1.msra.mxu0 0.0
  %4687 = vmatprep.subr.mxu0 0.0
  %4688 = vmatpush1.msra.mxu0 0.0
  %4689 = vmatprep.subr.mxu0 0.0
  %4690 = vmatpush1.msra.mxu0 0.0
  %4691 = vmatprep.subr.mxu0 0.0
  %4692 = vmatpush1.msra.mxu0 0.0
  %4693 = vmatprep.subr.mxu0 0.0
  %4694 = vmatpush1.msra.mxu0 0.0
  %4695 = vmatprep.subr.mxu0 0.0
  %4696 = vmatpush1.msra.mxu0 0.0
  %4697 = vmatprep.subr.mxu0 0.0
  %4698 = vmatpush1.msra.mxu0 0.0
  %4699 = vmatprep.subr.mxu0 0.0
  %4700 = vmatpush1.msra.mxu0 0.0
  %4701 = vmatprep.subr.mxu0 0.0
  %4702 = vmatpush1.msra.mxu0 0.0
  %4703 = vmatprep.subr.mxu0 0.0
  %4704 = vmatpush1.msra.mxu0 0.0
  %4705 = vmatprep.subr.mxu0 0.0
  %4706 = vmatpush1.msra.mxu0 0.0
  %4707 = vmatprep.subr.mxu0 0.0
  %4708 = vmatpush1.msra.mxu0 0.0
  %4709 = vmatprep.subr.mxu0 0.0
  %4710 = vmatpush1.msra.mxu0 0.0
  %4711 = vmatprep.subr.mxu0 0.0
  %4712 = vmatpush1.msra.mxu0 0.0
  %4713 = vmatprep.subr.mxu0 0.0
  %4714 = vmatpush1.msra.mxu0 0.0
  %4715 = vmatprep.subr.mxu0 0.0
  %4716 = vmatpush1.msra.mxu0 0.0
  %4717 = vmatprep.subr.mxu0 0.0
  %4718 = vmatpush1.msra.mxu0 0.0
  %4719 = vmatprep.mubr.f32.mxu0 0.0
  %4720 = vmatmul.mubr.f32.gmra.mrb[0].mxu0 %v4648
  %v4721 = vpop.f32.mrb[0].mxu0
  %v4722 = vadd.f32 0.0, %v4721
  %v4723 = vpop.f32.mrb[0].mxu0
  %4724 = vmatprep.mubr.f32.mxu0 0.0
  %4725 = vmatmul.mubr.f32.gmra.mrb[0].mxu0 %v4650
  %v4726 = vpop.f32.mrb[0].mxu0
  %v4727 = vadd.f32 0.0, %v4726
  %v4728 = vpop.f32.mrb[0].mxu0
  %4729 = vdwg.mxu0
  %v4730 = vadd.f32 %v1730, %v4722
  %v4731 = vadd.f32 %v1735, %v4727
  %vm4732 = vcmask 162822
  %4733 = vst.msk [vmem:[%s3 - $0x6] sm:$0xc0] %vm4732, %v4639
  %4734 = vst.msk [vmem:[%s3 + $0x2] sm:$0xff] %vm907, %v4640
  %4737 = vrot.lane.b32.xlu0 %v4730, 20
  %v4738 = vpop.permute.xlu0 %4737
  %4739 = vrot.lane.b32.xlu0 %v4731, 20
  %v4740 = vpop.permute.xlu0 %4739
  %vm4743 = vcmask 171168
  %4744 = vst.msk [vmem:[%s3] sm:$0xff] %vm4743, %v4738
  %vm4745 = vcmask 165024
  %4746 = vst.msk [vmem:[%s3 + $0x8] sm:$0x3] %vm4745, %v4740
  // Predicated region
  $region14: #{dcsage_gru_forward.1} parent=0 // pred_check
    _
  $region15: #{dcsage_gru_forward.1} parent=0 // pred_check_branch
    %4748 = sbr.rel (0) target = $region17
  $region16: #{dcsage_gru_forward.1} parent=0 // pred_region
    _
  $region17: #{dcsage_gru_forward.1} parent=0 // pred_fallthru
    _
  // Predicated region
  $region18: #{dcsage_gru_forward.1} parent=0 // pred_check
    _
  $region19: #{dcsage_gru_forward.1} parent=0 // pred_check_branch
    %4750 = sbr.rel (0) target = $region21
  $region20: #{dcsage_gru_forward.1} parent=0 // pred_region
    _
  $region21: #{dcsage_gru_forward.1} parent=0 // pred_fallthru
    _

</llo_original>
